<compile_context>
chip_gen: v7x
topology: tpu7x:2x2x1
jax: 0.10.0
libtpu: 0.0.40
codegen_flags: <defaults>
</compile_context>

<pallas_src>
import functools

import jax
import jax.numpy as jnp
from jax.experimental import pallas as pl
from jax.experimental.pallas import tpu as pltpu


# ----------------------------- Pallas kernel ------------------------------ #
def block_kernel(x_ref, ln1g_ref, ln1b_ref, wqkv_ref,
                 cos_ref, sin_rcm1_ref, sin_r1_ref, mask_ref,
                 wproj_ref, bproj_ref,
                 ln2g_ref, ln2b_ref, w1_ref, b1_ref, w2_ref, b2_ref,
                 o_ref, *, n_head, head_size):
    f32, bf16 = jnp.float32, jnp.bfloat16
    x = x_ref[0]                      # (T, C) f32
    T, C = x.shape
    H, hs = n_head, head_size

    def layer_norm(h, g, b):          # statistics kept in f32 (VPU)
        mu = jnp.mean(h, axis=-1, keepdims=True)
        var = jnp.mean((h - mu) ** 2, axis=-1, keepdims=True)
        return (h - mu) * jax.lax.rsqrt(var + 1e-5) * g + b

    # ---- self-attention branch ----
    h1 = layer_norm(x, ln1g_ref[0], ln1b_ref[0])

    # Fused QKV projection: one (T, C) x (C, 3C) bf16 matmul, f32 accumulation.
    qkv = jnp.dot(h1.astype(bf16), wqkv_ref[...], preferred_element_type=f32)
    q = qkv[:, :C]
    k = qkv[:, C:2 * C]
    v = qkv[:, 2 * C:]

    # RoPE as an elementwise lane swizzle (f32):
    #   y[2i]   = x[2i]*cos_i   - x[2i+1]*sin_i
    #   y[2i+1] = x[2i+1]*cos_i + x[2i]  *sin_i
    # Neighbours come from single XLU lane rotates; the wrapped lane of each
    # rotate is multiplied by a zero in the corresponding signed-sin table.
    # The wrapper binds sin_rcm1/sin_r1 to the roll(., C-1) / roll(., 1)
    # results so the pairing is correct for either roll direction convention.
    cos = cos_ref[...]
    sin_rcm1 = sin_rcm1_ref[...]
    sin_r1 = sin_r1_ref[...]

    def rope(z):
        z_rcm1 = pltpu.roll(z, C - 1, axis=1)   # j+1 neighbour (jnp convention)
        z_r1 = pltpu.roll(z, 1, axis=1)         # j-1 neighbour (jnp convention)
        return z * cos + z_rcm1 * sin_rcm1 + z_r1 * sin_r1

    scale = head_size ** (-0.5)
    q = rope(q) * scale               # fold 1/sqrt(hs) into q: O(T*C), not O(H*T^2)
    k = rope(k)

    # Head split.  Cast to bf16 *first* (needed at the MXU anyway) so the
    # lane-slice relayout moves half the bytes.
    qb, kb, vb = q.astype(bf16), k.astype(bf16), v.astype(bf16)

    def split_heads(z):               # (T, C) bf16 -> (H, T, hs) bf16
        return jnp.stack([z[:, i * hs:(i + 1) * hs] for i in range(H)], axis=0)

    qh, kh, vh = split_heads(qb), split_heads(kb), split_heads(vb)

    # Head-batched contractions (leading batch dim -> native batched MXU dots).
    att = jnp.einsum('hqd,hkd->hqk', qh, kh, preferred_element_type=f32)

    # Causal mask as a precomputed additive bias (0 below/on diag, -1e30 above):
    # one broadcast VPU add instead of two (H,T,T) iotas + compare + select.
    att = att + mask_ref[...]

    att = jnp.exp(att - jnp.max(att, axis=-1, keepdims=True))
    denom = jnp.sum(att, axis=-1, keepdims=True)
    att = att * pl.reciprocal(denom, approx=True)   # EUP reciprocal, no VPU divide

    out_h = jnp.einsum('hqk,hkd->hqd', att.astype(bf16), vh,
                       preferred_element_type=f32)              # (H, T, hs) f32

    # Merge heads in bf16 (needed for the proj matmul anyway -> half the copy
    # traffic of an f32 concatenate).
    sa = jnp.concatenate([out_h[i].astype(bf16) for i in range(H)], axis=-1)

    sa = jnp.dot(sa, wproj_ref[...], preferred_element_type=f32) + bproj_ref[0]
    x1 = x + sa

    # ---- feed-forward branch ----
    h2 = layer_norm(x1, ln2g_ref[0], ln2b_ref[0])
    ff = jnp.dot(h2.astype(bf16), w1_ref[...], preferred_element_type=f32) + b1_ref[0]
    ff = jnp.maximum(ff, 0.0)
    ff = jnp.dot(ff.astype(bf16), w2_ref[...], preferred_element_type=f32) + b2_ref[0]

    o_ref[0] = x1 + ff


# ----------------------- roll-direction probe ------------------------------ #
def _pltpu_roll_is_jnp_convention():
    """One-off probe kernel: True iff pltpu.roll follows the jnp.roll
    convention (result[i] = x[(i - shift) mod N]).  RoPE pairs each lane
    rotate with a signed-sin table, so the pairing must match the hardware
    convention on whatever jaxlib is installed."""
    def probe(x_ref, o_ref):
        o_ref[...] = pltpu.roll(x_ref[...], 1, axis=1)

    x = jnp.broadcast_to(jnp.arange(128, dtype=jnp.float32), (8, 128))
    try:
        y = pl.pallas_call(
            probe, out_shape=jax.ShapeDtypeStruct((8, 128), jnp.float32))(x)
        return bool(y[0, 1] == 0.0)
    except Exception:   # conservative default
        return True


# ------------------------------- wrapper ----------------------------------- #
@functools.partial(jax.jit, static_argnames=("n_head", "roll_is_jnp"))
def transformer_block(x, params, *, n_head, roll_is_jnp=True):
    B, T, C = x.shape
    head_size = C // n_head

    # Grid-invariant precompute (under jit this is traced/fused once, not
    # re-materialized on every Python call).
    theta_num = jnp.arange(0, C, 2, dtype=jnp.float32)
    inv_freq = 1.0 / (10000.0 ** (theta_num / C))                  # (C/2,)
    freqs = jnp.outer(jnp.arange(T, dtype=jnp.float32), inv_freq)  # (T, C/2)
    cos = jnp.cos(freqs)
    sin = jnp.sin(freqs)
    zeros = jnp.zeros_like(sin)
    cos_full = jnp.repeat(cos, 2, axis=-1)                    # [c0,c0,c1,c1,...]
    sin_a = jnp.stack([-sin, zeros], axis=-1).reshape(T, C)   # multiplies z[j+1]
    sin_b = jnp.stack([zeros, sin], axis=-1).reshape(T, C)    # multiplies z[j-1]
    # Pair the tables with the kernel's roll(z, C-1) / roll(z, 1) results.
    sin_for_cm1, sin_for_1 = (sin_a, sin_b) if roll_is_jnp else (sin_b, sin_a)

    # Causal mask as an additive bias (0 on/below diagonal, -1e30 above).
    tril = jnp.tril(jnp.ones((T, T), dtype=bool))
    mask_bias = jnp.where(tril, 0.0, -1e30).astype(jnp.float32)

    # Fuse QKV and cast matmul weights to bf16 (biases / LN params stay f32).
    bf16 = jnp.bfloat16
    wqkv = jnp.concatenate(
        [params["wq"], params["wk"], params["wv"]], axis=1).astype(bf16)
    wproj = params["wproj"].astype(bf16)
    w1 = params["w1"].astype(bf16)
    w2 = params["w2"].astype(bf16)

    full = lambda shape: pl.BlockSpec(shape, lambda b: (0,) * len(shape))
    # NOTE: on v7x (64 MiB VMEM) at large C the grid-invariant weight specs
    # should additionally be single-buffered (pipeline_mode=pl.Buffered(1));
    # left at the default here since all operands are tiny at these shapes.
    kernel = functools.partial(block_kernel, n_head=n_head, head_size=head_size)

    # Advisory cost hint for XLA's scheduler around the custom call.
    flops = B * (24 * T * C * C + 4 * T * T * C)
    transcendentals = B * (n_head * T * T + 2 * T)
    bytes_accessed = (2 * B * T * C * 4                 # x in + out (f32)
                      + 12 * C * C * 2                  # bf16 weights
                      + (3 * T * C + T * T + 10 * C) * 4)

    return pl.pallas_call(
        kernel,
        out_shape=jax.ShapeDtypeStruct((B, T, C), jnp.float32),
        grid=(B,),   # one lane-dense (T, C) slab per step; B>=2 feeds both v7x TCs
        in_specs=[
            pl.BlockSpec((1, T, C), lambda b: (b, 0, 0)),    # x
            full((1, C)), full((1, C)),                      # ln1 gamma/beta
            full((C, 3 * C)),                                # fused Wqkv (bf16)
            full((T, C)), full((T, C)), full((T, C)),        # cos, sin tables
            full((T, T)),                                    # causal additive mask
            full((C, C)), full((1, C)),                      # Wproj (bf16), bproj
            full((1, C)), full((1, C)),                      # ln2 gamma/beta
            full((C, 4 * C)), full((1, 4 * C)),              # W1 (bf16), b1
            full((4 * C, C)), full((1, C)),                  # W2 (bf16), b2
        ],
        out_specs=pl.BlockSpec((1, T, C), lambda b: (b, 0, 0)),
        compiler_params=pltpu.CompilerParams(
            dimension_semantics=("parallel",)),
        cost_estimate=pl.CostEstimate(
            flops=flops, transcendentals=transcendentals,
            bytes_accessed=bytes_accessed),
    )(
        x,
        params["ln1_g"], params["ln1_b"],
        wqkv,
        cos_full, sin_for_cm1, sin_for_1,
        mask_bias,
        wproj, params["bproj"],
        params["ln2_g"], params["ln2_b"],
        w1, params["b1"],
        w2, params["b2"],
    )


# ------------------------- pure-JAX reference ------------------------------ #
def reference_block(x, params, *, n_head):
    B, T, C = x.shape
    hs = C // n_head
    hi = jax.lax.Precision.HIGHEST

    def ln(h, g, b):
        mu = jnp.mean(h, axis=-1, keepdims=True)
        var = jnp.mean((h - mu) ** 2, axis=-1, keepdims=True)
        return (h - mu) / jnp.sqrt(var + 1e-5) * g[0] + b[0]

    def rope(z):  # complex formulation, as in the torch reference
        theta_num = jnp.arange(0, C, 2, dtype=jnp.float32)
        inv_freq = 1.0 / (10000.0 ** (theta_num / C))
        freqs = jnp.outer(jnp.arange(T, dtype=jnp.float32), inv_freq)
        fc = jnp.exp(1j * freqs.astype(jnp.complex64))                   # (T, C/2)
        zc = z[..., 0::2] + 1j * z[..., 1::2]                            # (B,T,C/2)
        zr = zc * fc
        return jnp.stack([zr.real, zr.imag], axis=-1).reshape(B, T, C)

    h = ln(x, params["ln1_g"], params["ln1_b"])
    q = rope(jnp.einsum("btc,cd->btd", h, params["wq"], precision=hi))
    k = rope(jnp.einsum("btc,cd->btd", h, params["wk"], precision=hi))
    v = jnp.einsum("btc,cd->btd", h, params["wv"], precision=hi)

    q = q.reshape(B, T, n_head, hs).transpose(0, 2, 1, 3)
    k = k.reshape(B, T, n_head, hs).transpose(0, 2, 1, 3)
    v = v.reshape(B, T, n_head, hs).transpose(0, 2, 1, 3)
    att = jnp.einsum("bhqd,bhkd->bhqk", q, k, precision=hi) * hs ** (-0.5)
    mask = jnp.tril(jnp.ones((T, T), bool))
    att = jnp.where(mask, att, -jnp.inf)
    att = jax.nn.softmax(att, axis=-1)
    out = jnp.einsum("bhqk,bhkd->bhqd", att, v, precision=hi)
    out = out.transpose(0, 2, 1, 3).reshape(B, T, C)
    out = jnp.einsum("btc,cd->btd", out, params["wproj"], precision=hi) + params["bproj"][0]
    x1 = x + out

    h2 = ln(x1, params["ln2_g"], params["ln2_b"])
    ff = jnp.maximum(jnp.einsum("btc,cd->btd", h2, params["w1"], precision=hi) + params["b1"][0], 0.0)
    ff = jnp.einsum("btc,cd->btd", ff, params["w2"], precision=hi) + params["b2"][0]
    return x1 + ff


# --------------------------------- main ------------------------------------ #
if __name__ == "__main__":
    # Small but layout-realistic shapes: head_size = C // H = 128 keeps every
    # per-head lane slice vreg-aligned, and B = 2 gives two parallel grid
    # steps (keeps both v7x TensorCores busy).
    B, T, C, H = 2, 8, 256, 2           # batch, seq, n_embd, n_head

    key = jax.random.PRNGKey(0)
    keys = jax.random.split(key, 8)

    def lin_w(k, out_f, in_f):          # torch Linear weight (out,in), std=0.02
        return (0.02 * jax.random.normal(k, (out_f, in_f), jnp.float32)).T  # -> (in,out)

    params = {
        "ln1_g": jnp.ones((1, C), jnp.float32),
        "ln1_b": jnp.zeros((1, C), jnp.float32),
        "wq": lin_w(keys[0], C, C),
        "wk": lin_w(keys[1], C, C),
        "wv": lin_w(keys[2], C, C),
        "wproj": lin_w(keys[3], C, C),
        "bproj": jnp.zeros((1, C), jnp.float32),
        "ln2_g": jnp.ones((1, C), jnp.float32),
        "ln2_b": jnp.zeros((1, C), jnp.float32),
        "w1": lin_w(keys[4], 4 * C, C),
        "b1": jnp.zeros((1, 4 * C), jnp.float32),
        "w2": lin_w(keys[5], C, 4 * C),
        "b2": jnp.zeros((1, C), jnp.float32),
    }

    x = jax.random.normal(keys[6], (B, T, C), jnp.float32)

    roll_is_jnp = _pltpu_roll_is_jnp_convention()
    out = transformer_block(x, params, n_head=H, roll_is_jnp=roll_is_jnp)
    out = jax.block_until_ready(out)

    ref = reference_block(x, params, n_head=H)
    assert out.shape == (B, T, C)
    # bf16 MXU operands + approx softmax reciprocal -> slightly looser tolerance.
    assert jnp.allclose(out, ref, atol=2e-2, rtol=2e-2), \
        f"max abs diff {jnp.max(jnp.abs(out - ref))}"

    print("KERNEL_OK")
</pallas_src>

<mosaic_0001>
module attributes {stable_mosaic.version = 11 : i64} {
  func.func @probe(%arg0: memref<8x128xf32, #tpu.memory_space<vmem>>, %arg1: memref<8x128xf32, #tpu.memory_space<vmem>>) attributes {dimension_semantics = [], scalar_prefetch = 0 : i64, scratch_operands = 0 : i64, tpu.core_type = #tpu.core_type<tc>} {
    %c0 = arith.constant 0 : index
    %c0_0 = arith.constant 0 : index
    %0 = vector.load %arg0[%c0, %c0_0] : memref<8x128xf32, #tpu.memory_space<vmem>>, vector<8x128xf32>
    %c1_i32 = arith.constant 1 : i32
    %1 = tpu.dynamic_rotate %0 by %c1_i32 dim 1 : vector<8x128xf32>, i32 -> vector<8x128xf32>
    %c0_1 = arith.constant 0 : index
    %c0_2 = arith.constant 0 : index
    %2 = vector.load %arg1[%c0_1, %c0_2] : memref<8x128xf32, #tpu.memory_space<vmem>>, vector<8x128xf32>
    tpu.vector_store %arg1[%c0_1, %c0_2], %1 {strides = array<i32>} : memref<8x128xf32, #tpu.memory_space<vmem>>, vector<8x128xf32>,
    return
  }
}

module attributes {stable_mosaic.version = 11 : i64} {
  func.func @block_kernel(%arg0: i32, %arg1: memref<1x8x256xf32, #tpu.memory_space<vmem>>, %arg2: memref<1x256xf32, #tpu.memory_space<vmem>>, %arg3: memref<1x256xf32, #tpu.memory_space<vmem>>, %arg4: memref<256x768xbf16, #tpu.memory_space<vmem>>, %arg5: memref<8x256xf32, #tpu.memory_space<vmem>>, %arg6: memref<8x256xf32, #tpu.memory_space<vmem>>, %arg7: memref<8x256xf32, #tpu.memory_space<vmem>>, %arg8: memref<8x8xf32, #tpu.memory_space<vmem>>, %arg9: memref<256x256xbf16, #tpu.memory_space<vmem>>, %arg10: memref<1x256xf32, #tpu.memory_space<vmem>>, %arg11: memref<1x256xf32, #tpu.memory_space<vmem>>, %arg12: memref<1x256xf32, #tpu.memory_space<vmem>>, %arg13: memref<256x1024xbf16, #tpu.memory_space<vmem>>, %arg14: memref<1x1024xf32, #tpu.memory_space<vmem>>, %arg15: memref<1024x256xbf16, #tpu.memory_space<vmem>>, %arg16: memref<1x256xf32, #tpu.memory_space<vmem>>, %arg17: memref<1x8x256xf32, #tpu.memory_space<vmem>>) attributes {dimension_semantics = [#tpu.dimension_semantics<parallel>], iteration_bounds = array<i64: 2>, scalar_prefetch = 0 : i64, scratch_operands = 0 : i64, tpu.core_type = #tpu.core_type<tc>, window_params = [{transform_indices = @transform_0, window_bounds = array<i64: 1, 8, 256>}, {pipeline_mode = #tpu.pipeline_mode<synchronous>, transform_indices = @transform_1, window_bounds = array<i64: 1, 256>}, {pipeline_mode = #tpu.pipeline_mode<synchronous>, transform_indices = @transform_2, window_bounds = array<i64: 1, 256>}, {pipeline_mode = #tpu.pipeline_mode<synchronous>, transform_indices = @transform_3, window_bounds = array<i64: 256, 768>}, {pipeline_mode = #tpu.pipeline_mode<synchronous>, transform_indices = @transform_4, window_bounds = array<i64: 8, 256>}, {pipeline_mode = #tpu.pipeline_mode<synchronous>, transform_indices = @transform_5, window_bounds = array<i64: 8, 256>}, {pipeline_mode = #tpu.pipeline_mode<synchronous>, transform_indices = @transform_6, window_bounds = array<i64: 8, 256>}, {pipeline_mode = #tpu.pipeline_mode<synchronous>, transform_indices = @transform_7, window_bounds = array<i64: 8, 8>}, {pipeline_mode = #tpu.pipeline_mode<synchronous>, transform_indices = @transform_8, window_bounds = array<i64: 256, 256>}, {pipeline_mode = #tpu.pipeline_mode<synchronous>, transform_indices = @transform_9, window_bounds = array<i64: 1, 256>}, {pipeline_mode = #tpu.pipeline_mode<synchronous>, transform_indices = @transform_10, window_bounds = array<i64: 1, 256>}, {pipeline_mode = #tpu.pipeline_mode<synchronous>, transform_indices = @transform_11, window_bounds = array<i64: 1, 256>}, {pipeline_mode = #tpu.pipeline_mode<synchronous>, transform_indices = @transform_12, window_bounds = array<i64: 256, 1024>}, {pipeline_mode = #tpu.pipeline_mode<synchronous>, transform_indices = @transform_13, window_bounds = array<i64: 1, 1024>}, {pipeline_mode = #tpu.pipeline_mode<synchronous>, transform_indices = @transform_14, window_bounds = array<i64: 1024, 256>}, {pipeline_mode = #tpu.pipeline_mode<synchronous>, transform_indices = @transform_15, window_bounds = array<i64: 1, 256>}, {transform_indices = @transform_16, window_bounds = array<i64: 1, 8, 256>}]} {
    %c0 = arith.constant 0 : index
    %c0_0 = arith.constant 0 : index
    %c0_1 = arith.constant 0 : index
    %0 = vector.load %arg1[%c0, %c0_0, %c0_1] : memref<1x8x256xf32, #tpu.memory_space<vmem>>, vector<1x8x256xf32>
    %1 = vector.shape_cast %0 : vector<1x8x256xf32> to vector<8x256xf32>
    %c0_2 = arith.constant 0 : index
    %c0_3 = arith.constant 0 : index
    %2 = vector.load %arg2[%c0_2, %c0_3] : memref<1x256xf32, #tpu.memory_space<vmem>>, vector<1x256xf32>
    %3 = vector.shape_cast %2 : vector<1x256xf32> to vector<256xf32>
    %c0_4 = arith.constant 0 : index
    %c0_5 = arith.constant 0 : index
    %4 = vector.load %arg3[%c0_4, %c0_5] : memref<1x256xf32, #tpu.memory_space<vmem>>, vector<1x256xf32>
    %5 = vector.shape_cast %4 : vector<1x256xf32> to vector<256xf32>
    %cst = arith.constant dense<0.000000e+00> : vector<8xf32>
    %6 = vector.multi_reduction <add>, %1, %cst [1] : vector<8x256xf32> to vector<8xf32>
    %7 = vector.shape_cast %6 : vector<8xf32> to vector<8x1xf32>
    %cst_6 = arith.constant 2.560000e+02 : f32
    %8 = vector.broadcast %cst_6 : f32 to vector<8x1xf32>
    %9 = arith.divf %7, %8 : vector<8x1xf32>
    %10 = vector.broadcast %9 : vector<8x1xf32> to vector<8x256xf32>
    %11 = arith.subf %1, %10 : vector<8x256xf32>
    %12 = arith.mulf %11, %11 : vector<8x256xf32>
    %cst_7 = arith.constant dense<0.000000e+00> : vector<8xf32>
    %13 = vector.multi_reduction <add>, %12, %cst_7 [1] : vector<8x256xf32> to vector<8xf32>
    %14 = vector.shape_cast %13 : vector<8xf32> to vector<8x1xf32>
    %cst_8 = arith.constant 2.560000e+02 : f32
    %15 = vector.broadcast %cst_8 : f32 to vector<8x1xf32>
    %16 = arith.divf %14, %15 : vector<8x1xf32>
    %17 = vector.broadcast %9 : vector<8x1xf32> to vector<8x256xf32>
    %18 = arith.subf %1, %17 : vector<8x256xf32>
    %cst_9 = arith.constant 9.99999974E-6 : f32
    %19 = vector.broadcast %cst_9 : f32 to vector<8x1xf32>
    %20 = arith.addf %16, %19 : vector<8x1xf32>
    %21 = math.rsqrt %20 : vector<8x1xf32>
    %22 = vector.broadcast %21 : vector<8x1xf32> to vector<8x256xf32>
    %23 = arith.mulf %18, %22 : vector<8x256xf32>
    %24 = vector.shape_cast %3 : vector<256xf32> to vector<1x256xf32>
    %25 = vector.broadcast %24 : vector<1x256xf32> to vector<8x256xf32>
    %26 = arith.mulf %23, %25 : vector<8x256xf32>
    %27 = vector.shape_cast %5 : vector<256xf32> to vector<1x256xf32>
    %28 = vector.broadcast %27 : vector<1x256xf32> to vector<8x256xf32>
    %29 = arith.addf %26, %28 : vector<8x256xf32>
    %30 = arith.truncf %29 : vector<8x256xf32> to vector<8x256xbf16>
    %c0_10 = arith.constant 0 : index
    %c0_11 = arith.constant 0 : index
    %31 = vector.load %arg4[%c0_10, %c0_11] : memref<256x768xbf16, #tpu.memory_space<vmem>>, vector<256x768xbf16>
    %cst_12 = arith.constant dense<0.000000e+00> : vector<8x768xf32>
    %32 = tpu.matmul %30, %31, %cst_12 {dimension_numbers = #tpu.dot_dimension_numbers<[1], [0], [0], [1], [0, 0, 1, 1], [], []>} : vector<8x256xbf16>, vector<256x768xbf16>, vector<8x768xf32> -> vector<8x768xf32>
    %33 = vector.extract_strided_slice %32 {offsets = [0, 0], sizes = [8, 256], strides = [1, 1]} : vector<8x768xf32> to vector<8x256xf32>
    %34 = vector.extract_strided_slice %32 {offsets = [0, 256], sizes = [8, 256], strides = [1, 1]} : vector<8x768xf32> to vector<8x256xf32>
    %35 = vector.extract_strided_slice %32 {offsets = [0, 512], sizes = [8, 256], strides = [1, 1]} : vector<8x768xf32> to vector<8x256xf32>
    %c0_13 = arith.constant 0 : index
    %c0_14 = arith.constant 0 : index
    %36 = vector.load %arg5[%c0_13, %c0_14] : memref<8x256xf32, #tpu.memory_space<vmem>>, vector<8x256xf32>
    %c0_15 = arith.constant 0 : index
    %c0_16 = arith.constant 0 : index
    %37 = vector.load %arg6[%c0_15, %c0_16] : memref<8x256xf32, #tpu.memory_space<vmem>>, vector<8x256xf32>
    %c0_17 = arith.constant 0 : index
    %c0_18 = arith.constant 0 : index
    %38 = vector.load %arg7[%c0_17, %c0_18] : memref<8x256xf32, #tpu.memory_space<vmem>>, vector<8x256xf32>
    %c255_i32 = arith.constant 255 : i32
    %39 = tpu.dynamic_rotate %33 by %c255_i32 dim 1 : vector<8x256xf32>, i32 -> vector<8x256xf32>
    %c1_i32 = arith.constant 1 : i32
    %40 = tpu.dynamic_rotate %33 by %c1_i32 dim 1 : vector<8x256xf32>, i32 -> vector<8x256xf32>
    %41 = arith.mulf %33, %36 : vector<8x256xf32>
    %42 = arith.mulf %39, %37 : vector<8x256xf32>
    %43 = arith.addf %41, %42 : vector<8x256xf32>
    %44 = arith.mulf %40, %38 : vector<8x256xf32>
    %45 = arith.addf %43, %44 : vector<8x256xf32>
    %cst_19 = arith.constant 0.0883883461 : f32
    %46 = vector.broadcast %cst_19 : f32 to vector<8x256xf32>
    %47 = arith.mulf %45, %46 : vector<8x256xf32>
    %c255_i32_20 = arith.constant 255 : i32
    %48 = tpu.dynamic_rotate %34 by %c255_i32_20 dim 1 : vector<8x256xf32>, i32 -> vector<8x256xf32>
    %c1_i32_21 = arith.constant 1 : i32
    %49 = tpu.dynamic_rotate %34 by %c1_i32_21 dim 1 : vector<8x256xf32>, i32 -> vector<8x256xf32>
    %50 = arith.mulf %34, %36 : vector<8x256xf32>
    %51 = arith.mulf %48, %37 : vector<8x256xf32>
    %52 = arith.addf %50, %51 : vector<8x256xf32>
    %53 = arith.mulf %49, %38 : vector<8x256xf32>
    %54 = arith.addf %52, %53 : vector<8x256xf32>
    %55 = arith.truncf %47 : vector<8x256xf32> to vector<8x256xbf16>
    %56 = arith.truncf %54 : vector<8x256xf32> to vector<8x256xbf16>
    %57 = arith.truncf %35 : vector<8x256xf32> to vector<8x256xbf16>
    %58 = vector.extract_strided_slice %55 {offsets = [0, 0], sizes = [8, 128], strides = [1, 1]} : vector<8x256xbf16> to vector<8x128xbf16>
    %59 = vector.extract_strided_slice %55 {offsets = [0, 128], sizes = [8, 128], strides = [1, 1]} : vector<8x256xbf16> to vector<8x128xbf16>
    %60 = vector.shape_cast %58 : vector<8x128xbf16> to vector<1x8x128xbf16>
    %61 = vector.shape_cast %59 : vector<8x128xbf16> to vector<1x8x128xbf16>
    %62 = tpu.concatenate %60, %61 in 0 : vector<1x8x128xbf16>, vector<1x8x128xbf16> -> vector<2x8x128xbf16>
    %63 = vector.extract_strided_slice %56 {offsets = [0, 0], sizes = [8, 128], strides = [1, 1]} : vector<8x256xbf16> to vector<8x128xbf16>
    %64 = vector.extract_strided_slice %56 {offsets = [0, 128], sizes = [8, 128], strides = [1, 1]} : vector<8x256xbf16> to vector<8x128xbf16>
    %65 = vector.shape_cast %63 : vector<8x128xbf16> to vector<1x8x128xbf16>
    %66 = vector.shape_cast %64 : vector<8x128xbf16> to vector<1x8x128xbf16>
    %67 = tpu.concatenate %65, %66 in 0 : vector<1x8x128xbf16>, vector<1x8x128xbf16> -> vector<2x8x128xbf16>
    %68 = vector.extract_strided_slice %57 {offsets = [0, 0], sizes = [8, 128], strides = [1, 1]} : vector<8x256xbf16> to vector<8x128xbf16>
    %69 = vector.extract_strided_slice %57 {offsets = [0, 128], sizes = [8, 128], strides = [1, 1]} : vector<8x256xbf16> to vector<8x128xbf16>
    %70 = vector.shape_cast %68 : vector<8x128xbf16> to vector<1x8x128xbf16>
    %71 = vector.shape_cast %69 : vector<8x128xbf16> to vector<1x8x128xbf16>
    %72 = tpu.concatenate %70, %71 in 0 : vector<1x8x128xbf16>, vector<1x8x128xbf16> -> vector<2x8x128xbf16>
    "tpu.trace_start"() <{level = 10 : i32, message = "hqd,hkd->hqk"}> : () -> ()
    %cst_22 = arith.constant dense<0.000000e+00> : vector<2x8x8xf32>
    %73 = tpu.matmul %62, %67, %cst_22 {dimension_numbers = #tpu.dot_dimension_numbers<[2], [2], [1], [1], [0, 0, 0, 1, 1, 1], [0], [0]>} : vector<2x8x128xbf16>, vector<2x8x128xbf16>, vector<2x8x8xf32> -> vector<2x8x8xf32>
    "tpu.trace_stop"() : () -> ()
    %c0_23 = arith.constant 0 : index
    %c0_24 = arith.constant 0 : index
    %74 = vector.load %arg8[%c0_23, %c0_24] : memref<8x8xf32, #tpu.memory_space<vmem>>, vector<8x8xf32>
    %75 = vector.shape_cast %74 : vector<8x8xf32> to vector<1x8x8xf32>
    %76 = vector.broadcast %75 : vector<1x8x8xf32> to vector<2x8x8xf32>
    %77 = arith.addf %73, %76 : vector<2x8x8xf32>
    %cst_25 = arith.constant dense<0xFF800000> : vector<2x8xf32>
    %78 = vector.multi_reduction <maximumf>, %77, %cst_25 [2] : vector<2x8x8xf32> to vector<2x8xf32>
    %79 = vector.shape_cast %78 : vector<2x8xf32> to vector<2x8x1xf32>
    %80 = vector.broadcast %79 : vector<2x8x1xf32> to vector<2x8x8xf32>
    %81 = arith.subf %77, %80 : vector<2x8x8xf32>
    %82 = math.exp %81 : vector<2x8x8xf32>
    %cst_26 = arith.constant dense<0.000000e+00> : vector<2x8xf32>
    %83 = vector.multi_reduction <add>, %82, %cst_26 [2] : vector<2x8x8xf32> to vector<2x8xf32>
    %84 = vector.shape_cast %83 : vector<2x8xf32> to vector<2x8x1xf32>
    %85 = tpu.reciprocal %84 {approx = true} : vector<2x8x1xf32> -> vector<2x8x1xf32>
    %86 = vector.broadcast %85 : vector<2x8x1xf32> to vector<2x8x8xf32>
    %87 = arith.mulf %82, %86 : vector<2x8x8xf32>
    %88 = arith.truncf %87 : vector<2x8x8xf32> to vector<2x8x8xbf16>
    "tpu.trace_start"() <{level = 10 : i32, message = "hqk,hkd->hqd"}> : () -> ()
    %cst_27 = arith.constant dense<0.000000e+00> : vector<2x8x128xf32>
    %89 = tpu.matmul %88, %72, %cst_27 {dimension_numbers = #tpu.dot_dimension_numbers<[2], [1], [1], [2], [0, 0, 0, 1, 1, 2], [0], [0]>} : vector<2x8x8xbf16>, vector<2x8x128xbf16>, vector<2x8x128xf32> -> vector<2x8x128xf32>
    "tpu.trace_stop"() : () -> ()
    %90 = vector.extract_strided_slice %89 {offsets = [0, 0, 0], sizes = [1, 8, 128], strides = [1, 1, 1]} : vector<2x8x128xf32> to vector<1x8x128xf32>
    %91 = vector.shape_cast %90 : vector<1x8x128xf32> to vector<8x128xf32>
    %92 = arith.truncf %91 : vector<8x128xf32> to vector<8x128xbf16>
    %93 = vector.extract_strided_slice %89 {offsets = [1, 0, 0], sizes = [1, 8, 128], strides = [1, 1, 1]} : vector<2x8x128xf32> to vector<1x8x128xf32>
    %94 = vector.shape_cast %93 : vector<1x8x128xf32> to vector<8x128xf32>
    %95 = arith.truncf %94 : vector<8x128xf32> to vector<8x128xbf16>
    %96 = tpu.concatenate %92, %95 in 1 : vector<8x128xbf16>, vector<8x128xbf16> -> vector<8x256xbf16>
    %c0_28 = arith.constant 0 : index
    %c0_29 = arith.constant 0 : index
    %97 = vector.load %arg9[%c0_28, %c0_29] : memref<256x256xbf16, #tpu.memory_space<vmem>>, vector<256x256xbf16>
    %cst_30 = arith.constant dense<0.000000e+00> : vector<8x256xf32>
    %98 = tpu.matmul %96, %97, %cst_30 {dimension_numbers = #tpu.dot_dimension_numbers<[1], [0], [0], [1], [0, 0, 1, 1], [], []>} : vector<8x256xbf16>, vector<256x256xbf16>, vector<8x256xf32> -> vector<8x256xf32>
    %c0_31 = arith.constant 0 : index
    %c0_32 = arith.constant 0 : index
    %99 = vector.load %arg10[%c0_31, %c0_32] : memref<1x256xf32, #tpu.memory_space<vmem>>, vector<1x256xf32>
    %100 = vector.shape_cast %99 : vector<1x256xf32> to vector<256xf32>
    %101 = vector.shape_cast %100 : vector<256xf32> to vector<1x256xf32>
    %102 = vector.broadcast %101 : vector<1x256xf32> to vector<8x256xf32>
    %103 = arith.addf %98, %102 : vector<8x256xf32>
    %104 = arith.addf %1, %103 : vector<8x256xf32>
    %c0_33 = arith.constant 0 : index
    %c0_34 = arith.constant 0 : index
    %105 = vector.load %arg11[%c0_33, %c0_34] : memref<1x256xf32, #tpu.memory_space<vmem>>, vector<1x256xf32>
    %106 = vector.shape_cast %105 : vector<1x256xf32> to vector<256xf32>
    %c0_35 = arith.constant 0 : index
    %c0_36 = arith.constant 0 : index
    %107 = vector.load %arg12[%c0_35, %c0_36] : memref<1x256xf32, #tpu.memory_space<vmem>>, vector<1x256xf32>
    %108 = vector.shape_cast %107 : vector<1x256xf32> to vector<256xf32>
    %cst_37 = arith.constant dense<0.000000e+00> : vector<8xf32>
    %109 = vector.multi_reduction <add>, %104, %cst_37 [1] : vector<8x256xf32> to vector<8xf32>
    %110 = vector.shape_cast %109 : vector<8xf32> to vector<8x1xf32>
    %cst_38 = arith.constant 2.560000e+02 : f32
    %111 = vector.broadcast %cst_38 : f32 to vector<8x1xf32>
    %112 = arith.divf %110, %111 : vector<8x1xf32>
    %113 = vector.broadcast %112 : vector<8x1xf32> to vector<8x256xf32>
    %114 = arith.subf %104, %113 : vector<8x256xf32>
    %115 = arith.mulf %114, %114 : vector<8x256xf32>
    %cst_39 = arith.constant dense<0.000000e+00> : vector<8xf32>
    %116 = vector.multi_reduction <add>, %115, %cst_39 [1] : vector<8x256xf32> to vector<8xf32>
    %117 = vector.shape_cast %116 : vector<8xf32> to vector<8x1xf32>
    %cst_40 = arith.constant 2.560000e+02 : f32
    %118 = vector.broadcast %cst_40 : f32 to vector<8x1xf32>
    %119 = arith.divf %117, %118 : vector<8x1xf32>
    %120 = vector.broadcast %112 : vector<8x1xf32> to vector<8x256xf32>
    %121 = arith.subf %104, %120 : vector<8x256xf32>
    %cst_41 = arith.constant 9.99999974E-6 : f32
    %122 = vector.broadcast %cst_41 : f32 to vector<8x1xf32>
    %123 = arith.addf %119, %122 : vector<8x1xf32>
    %124 = math.rsqrt %123 : vector<8x1xf32>
    %125 = vector.broadcast %124 : vector<8x1xf32> to vector<8x256xf32>
    %126 = arith.mulf %121, %125 : vector<8x256xf32>
    %127 = vector.shape_cast %106 : vector<256xf32> to vector<1x256xf32>
    %128 = vector.broadcast %127 : vector<1x256xf32> to vector<8x256xf32>
    %129 = arith.mulf %126, %128 : vector<8x256xf32>
    %130 = vector.shape_cast %108 : vector<256xf32> to vector<1x256xf32>
    %131 = vector.broadcast %130 : vector<1x256xf32> to vector<8x256xf32>
    %132 = arith.addf %129, %131 : vector<8x256xf32>
    %133 = arith.truncf %132 : vector<8x256xf32> to vector<8x256xbf16>
    %c0_42 = arith.constant 0 : index
    %c0_43 = arith.constant 0 : index
    %134 = vector.load %arg13[%c0_42, %c0_43] : memref<256x1024xbf16, #tpu.memory_space<vmem>>, vector<256x1024xbf16>
    %cst_44 = arith.constant dense<0.000000e+00> : vector<8x1024xf32>
    %135 = tpu.matmul %133, %134, %cst_44 {dimension_numbers = #tpu.dot_dimension_numbers<[1], [0], [0], [1], [0, 0, 1, 1], [], []>} : vector<8x256xbf16>, vector<256x1024xbf16>, vector<8x1024xf32> -> vector<8x1024xf32>
    %c0_45 = arith.constant 0 : index
    %c0_46 = arith.constant 0 : index
    %136 = vector.load %arg14[%c0_45, %c0_46] : memref<1x1024xf32, #tpu.memory_space<vmem>>, vector<1x1024xf32>
    %137 = vector.shape_cast %136 : vector<1x1024xf32> to vector<1024xf32>
    %138 = vector.shape_cast %137 : vector<1024xf32> to vector<1x1024xf32>
    %139 = vector.broadcast %138 : vector<1x1024xf32> to vector<8x1024xf32>
    %140 = arith.addf %135, %139 : vector<8x1024xf32>
    %cst_47 = arith.constant 0.000000e+00 : f32
    %141 = vector.broadcast %cst_47 : f32 to vector<8x1024xf32>
    %142 = arith.maximumf %140, %141 : vector<8x1024xf32>
    %143 = arith.truncf %142 : vector<8x1024xf32> to vector<8x1024xbf16>
    %c0_48 = arith.constant 0 : index
    %c0_49 = arith.constant 0 : index
    %144 = vector.load %arg15[%c0_48, %c0_49] : memref<1024x256xbf16, #tpu.memory_space<vmem>>, vector<1024x256xbf16>
    %cst_50 = arith.constant dense<0.000000e+00> : vector<8x256xf32>
    %145 = tpu.matmul %143, %144, %cst_50 {dimension_numbers = #tpu.dot_dimension_numbers<[1], [0], [0], [1], [0, 0, 1, 1], [], []>} : vector<8x1024xbf16>, vector<1024x256xbf16>, vector<8x256xf32> -> vector<8x256xf32>
    %c0_51 = arith.constant 0 : index
    %c0_52 = arith.constant 0 : index
    %146 = vector.load %arg16[%c0_51, %c0_52] : memref<1x256xf32, #tpu.memory_space<vmem>>, vector<1x256xf32>
    %147 = vector.shape_cast %146 : vector<1x256xf32> to vector<256xf32>
    %148 = vector.shape_cast %147 : vector<256xf32> to vector<1x256xf32>
    %149 = vector.broadcast %148 : vector<1x256xf32> to vector<8x256xf32>
    %150 = arith.addf %145, %149 : vector<8x256xf32>
    %151 = arith.addf %104, %150 : vector<8x256xf32>
    %c0_53 = arith.constant 0 : index
    %c0_54 = arith.constant 0 : index
    %c0_55 = arith.constant 0 : index
    %152 = vector.load %arg17[%c0_53, %c0_54, %c0_55] : memref<1x8x256xf32, #tpu.memory_space<vmem>>, vector<1x8x256xf32>
    %153 = vector.shape_cast %152 : vector<1x8x256xf32> to vector<8x256xf32>
    %154 = vector.shape_cast %151 : vector<8x256xf32> to vector<1x8x256xf32>
    tpu.vector_store %arg17[%c0_53, %c0_54, %c0_55], %154 {strides = array<i32>} : memref<1x8x256xf32, #tpu.memory_space<vmem>>, vector<1x8x256xf32>,
    return
  }
  func.func @transform_0(%arg0: i32) -> (i32, i32, i32) {
    %c0_i32 = arith.constant 0 : i32
    %c0_i32_0 = arith.constant 0 : i32
    %c0_i32_1 = arith.constant 0 : i32
    return %arg0, %c0_i32, %c0_i32_0 : i32, i32, i32
  }
  func.func @transform_1(%arg0: i32) -> (i32, i32) {
    %c0_i32 = arith.constant 0 : i32
    %c0_i32_0 = arith.constant 0 : i32
    %c0_i32_1 = arith.constant 0 : i32
    return %c0_i32, %c0_i32_0 : i32, i32
  }
  func.func @transform_2(%arg0: i32) -> (i32, i32) {
    %c0_i32 = arith.constant 0 : i32
    %c0_i32_0 = arith.constant 0 : i32
    %c0_i32_1 = arith.constant 0 : i32
    return %c0_i32, %c0_i32_0 : i32, i32
  }
  func.func @transform_3(%arg0: i32) -> (i32, i32) {
    %c0_i32 = arith.constant 0 : i32
    %c0_i32_0 = arith.constant 0 : i32
    %c0_i32_1 = arith.constant 0 : i32
    return %c0_i32, %c0_i32_0 : i32, i32
  }
  func.func @transform_4(%arg0: i32) -> (i32, i32) {
    %c0_i32 = arith.constant 0 : i32
    %c0_i32_0 = arith.constant 0 : i32
    %c0_i32_1 = arith.constant 0 : i32
    return %c0_i32, %c0_i32_0 : i32, i32
  }
  func.func @transform_5(%arg0: i32) -> (i32, i32) {
    %c0_i32 = arith.constant 0 : i32
    %c0_i32_0 = arith.constant 0 : i32
    %c0_i32_1 = arith.constant 0 : i32
    return %c0_i32, %c0_i32_0 : i32, i32
  }
  func.func @transform_6(%arg0: i32) -> (i32, i32) {
    %c0_i32 = arith.constant 0 : i32
    %c0_i32_0 = arith.constant 0 : i32
    %c0_i32_1 = arith.constant 0 : i32
    return %c0_i32, %c0_i32_0 : i32, i32
  }
  func.func @transform_7(%arg0: i32) -> (i32, i32) {
    %c0_i32 = arith.constant 0 : i32
    %c0_i32_0 = arith.constant 0 : i32
    %c0_i32_1 = arith.constant 0 : i32
    return %c0_i32, %c0_i32_0 : i32, i32
  }
  func.func @transform_8(%arg0: i32) -> (i32, i32) {
    %c0_i32 = arith.constant 0 : i32
    %c0_i32_0 = arith.constant 0 : i32
    %c0_i32_1 = arith.constant 0 : i32
    return %c0_i32, %c0_i32_0 : i32, i32
  }
  func.func @transform_9(%arg0: i32) -> (i32, i32) {
    %c0_i32 = arith.constant 0 : i32
    %c0_i32_0 = arith.constant 0 : i32
    %c0_i32_1 = arith.constant 0 : i32
    return %c0_i32, %c0_i32_0 : i32, i32
  }
  func.func @transform_10(%arg0: i32) -> (i32, i32) {
    %c0_i32 = arith.constant 0 : i32
    %c0_i32_0 = arith.constant 0 : i32
    %c0_i32_1 = arith.constant 0 : i32
    return %c0_i32, %c0_i32_0 : i32, i32
  }
  func.func @transform_11(%arg0: i32) -> (i32, i32) {
    %c0_i32 = arith.constant 0 : i32
    %c0_i32_0 = arith.constant 0 : i32
    %c0_i32_1 = arith.constant 0 : i32
    return %c0_i32, %c0_i32_0 : i32, i32
  }
  func.func @transform_12(%arg0: i32) -> (i32, i32) {
    %c0_i32 = arith.constant 0 : i32
    %c0_i32_0 = arith.constant 0 : i32
    %c0_i32_1 = arith.constant 0 : i32
    return %c0_i32, %c0_i32_0 : i32, i32
  }
  func.func @transform_13(%arg0: i32) -> (i32, i32) {
    %c0_i32 = arith.constant 0 : i32
    %c0_i32_0 = arith.constant 0 : i32
    %c0_i32_1 = arith.constant 0 : i32
    return %c0_i32, %c0_i32_0 : i32, i32
  }
  func.func @transform_14(%arg0: i32) -> (i32, i32) {
    %c0_i32 = arith.constant 0 : i32
    %c0_i32_0 = arith.constant 0 : i32
    %c0_i32_1 = arith.constant 0 : i32
    return %c0_i32, %c0_i32_0 : i32, i32
  }
  func.func @transform_15(%arg0: i32) -> (i32, i32) {
    %c0_i32 = arith.constant 0 : i32
    %c0_i32_0 = arith.constant 0 : i32
    %c0_i32_1 = arith.constant 0 : i32
    return %c0_i32, %c0_i32_0 : i32, i32
  }
  func.func @transform_16(%arg0: i32) -> (i32, i32, i32) {
    %c0_i32 = arith.constant 0 : i32
    %c0_i32_0 = arith.constant 0 : i32
    %c0_i32_1 = arith.constant 0 : i32
    return %arg0, %c0_i32, %c0_i32_0 : i32, i32, i32
  }
}

</mosaic_0001>

<llo_original>
// kernel: tpu_custom_call.1
$region0: #{tpu_custom_call.1}
  #allocation0 [shape = 'u32[]', space=smem, size = 0x4, offset = 0x4, fixed_abs, tag = 'smem constant byte address 0x4 - core index']
  #allocation1 [shape = 'u32[144,128]{1,0:T(1,128)}', space=vmem, size = 0x12000, scoped, tag = 'internal scratch']
  %s0 = inlined_call_operand.hbm [shape: f32[8,128], index: 0, kind: input, shape index: {}]
  %s1 = inlined_call_operand.hbm [shape: f32[8,128], index: 1, kind: output, shape index: {}]
  %s2 = sld [smem:[#allocation0]]
  $region18: #{tpu_custom_call.1} parent=0
    _
  %s4 = ssub.s32 1, %s2
  %s5 = scalar_select 0, %s4, %s2
  $region1: #{tpu_custom_call.1} parent=0
    #allocation2 [shape = 'u8[4096]{0}', space=vmem, size = 0x1000, scoped, tag = 'input window, operand 0, single buffered']
    #allocation3 [shape = 's32[1]{0}', space=sflag, size = 0x4, scoped, tag = 'scoped memory for tpu_custom_call.1']
    #allocation4 [shape = 's32[1]{0}', space=sflag, size = 0x4, scoped, tag = 'scoped memory for tpu_custom_call.1']
    #allocation5 [shape = 'u8[4096]{0}', space=vmem, size = 0x1000, scoped, tag = 'output window, operand 0, single buffered']
    %6 = vsyncpa [#allocation3], 0
    %7 = vsyncpa [#allocation4], 0
    // Predicated region
    $region2: #{tpu_custom_call.1} parent=1 // pred_check
      _
    $region3: #{tpu_custom_call.1} parent=1 // pred_check_branch
      %9 = sbr.rel (0) target = $region5
    $region4: #{tpu_custom_call.1} parent=1 // pred_region
      %s11 = ssub.s32 128, 128
      %12 = vsyncadd [#allocation3], %s11
      %s14 = sshll.u32 [#allocation2], 4
      %s15 = int_to_ptr.vmem [resolvable:$true] %s14
      %17 = dma.hbm_to_vmem [thread:$0]  %s0, 128, %s15, [#allocation3]
    $region5: #{tpu_custom_call.1} parent=1 // pred_fallthru
      _
    // Predicated region
    $region6: #{tpu_custom_call.1} parent=1 // pred_check
      _
    $region7: #{tpu_custom_call.1} parent=1 // pred_check_branch
      %19 = sbr.rel (0) target = $region9
    $region8: #{tpu_custom_call.1} parent=1 // pred_region
      %20 = dma.done [#allocation3], 128
    $region9: #{tpu_custom_call.1} parent=1 // pred_fallthru
      _
    %v21 = vld [vmem:[#allocation2] sm:$0xff]
    %22 = vrot.lane.b32.xlu0 %v21, 1
    %v23 = vpop.permute.xlu0 %22
    %24 = vst [vmem:[#allocation5] sm:$0xff] %v23
    // Predicated region
    $region10: #{tpu_custom_call.1} parent=1 // pred_check
      _
    $region11: #{tpu_custom_call.1} parent=1 // pred_check_branch
      %26 = sbr.rel (0) target = $region13
    $region12: #{tpu_custom_call.1} parent=1 // pred_region
      %s28 = ssub.s32 128, 128
      %29 = vsyncadd [#allocation4], %s28
      %s31 = sshll.u32 [#allocation5], 4
      %s32 = int_to_ptr.vmem [resolvable:$true] %s31
      %34 = dma.vmem_to_hbm [thread:$0]  %s32, 128, %s1, [#allocation4]
    $region13: #{tpu_custom_call.1} parent=1 // pred_fallthru
      _
    // Predicated region
    $region14: #{tpu_custom_call.1} parent=1 // pred_check
      _
    $region15: #{tpu_custom_call.1} parent=1 // pred_check_branch
      %36 = sbr.rel (0) target = $region17
    $region16: #{tpu_custom_call.1} parent=1 // pred_region
      %37 = dma.done [#allocation4], 128
    $region17: #{tpu_custom_call.1} parent=1 // pred_fallthru
      _
    %38 = vsyncpa [#allocation3], 1
    %39 = vsyncpa [#allocation4], 1

// kernel: transformer_block.1
$region0: #{transformer_block.1}
  #allocation0 [shape = 'u32[]', space=smem, size = 0x4, offset = 0x4, fixed_abs, tag = 'smem constant byte address 0x4 - core index']
  #allocation1 [shape = 'u32[144,128]{1,0:T(1,128)}', space=vmem, size = 0x12000, scoped, tag = 'internal scratch']
  %s0 = inlined_call_operand.vmem [shape: f32[2,8,256], index: 0, kind: input, shape index: {}]
  %s1 = inlined_call_operand.vmem [shape: f32[1,256], index: 1, kind: input, shape index: {}]
  %s2 = inlined_call_operand.vmem [shape: f32[1,256], index: 2, kind: input, shape index: {}]
  %s3 = inlined_call_operand.vmem [shape: bf16[256,768], index: 3, kind: input, shape index: {}]
  %s4 = inlined_call_operand.vmem [shape: f32[8,256], index: 4, kind: input, shape index: {}]
  %s5 = inlined_call_operand.vmem [shape: f32[8,256], index: 5, kind: input, shape index: {}]
  %s6 = inlined_call_operand.vmem [shape: f32[8,256], index: 6, kind: input, shape index: {}]
  %s7 = inlined_call_operand.vmem [shape: f32[8,8], index: 7, kind: input, shape index: {}]
  %s8 = inlined_call_operand.vmem [shape: bf16[256,256], index: 8, kind: input, shape index: {}]
  %s9 = inlined_call_operand.vmem [shape: f32[1,256], index: 9, kind: input, shape index: {}]
  %s10 = inlined_call_operand.vmem [shape: f32[1,256], index: 10, kind: input, shape index: {}]
  %s11 = inlined_call_operand.vmem [shape: f32[1,256], index: 11, kind: input, shape index: {}]
  %s12 = inlined_call_operand.vmem [shape: bf16[256,1024], index: 12, kind: input, shape index: {}]
  %s13 = inlined_call_operand.vmem [shape: f32[1,1024], index: 13, kind: input, shape index: {}]
  %s14 = inlined_call_operand.vmem [shape: bf16[1024,256], index: 14, kind: input, shape index: {}]
  %s15 = inlined_call_operand.vmem [shape: f32[1,256], index: 15, kind: input, shape index: {}]
  %s16 = inlined_call_operand.hbm [shape: f32[2,8,256], index: 16, kind: output, shape index: {}]
  %s17 = sld [smem:[#allocation0]]
  $region97: #{transformer_block.1} parent=0
    _
  %s19 = ssub.s32 1, %s17
  %s20 = scalar_select 0, %s19, %s17
  $region1: #{transformer_block.1} parent=0
    #allocation2 [shape = 'u8[16384]{0}', space=vmem, size = 0x4000, scoped, tag = 'output window, operand 0']
    #allocation3 [shape = 's32[2]{0}', space=sflag, size = 0x8, scoped, tag = 'scoped memory for transformer_block.1']
    %21 = vsyncpa [#allocation3], 0
    %s22 = scalar_lea.sflag [#allocation3], 1
    %23 = vsyncpa %s22, 0
    loop: start=0, step=1, limit=4
    $region2: #{transformer_block.1} parent=1 // loop_pre_header
      _
    $region3: #{transformer_block.1} parent=1 // loop_header
      %s25 = sphi 0, %s29
      %p26 = scmp.ge.s32.totalorder %s25, 4
      %s35 = sphi 0, %s37
      %s38 = sphi 0, %s35
      %s39 = sphi 0, %s38
      %s55 = sphi 0, %s39
      %s59 = sphi 0, %s59
      %s61 = sphi 0, %s59
      %s62 = sphi 0, %s61
      %s76 = sphi 0, %s62
      %s80 = sphi 0, %s80
      %s82 = sphi 0, %s80
      %s83 = sphi 0, %s82
      %s97 = sphi 0, %s83
      %s101 = sphi 0, %s101
      %s103 = sphi 0, %s101
      %s104 = sphi 0, %s103
      %s118 = sphi 0, %s104
      %s122 = sphi 0, %s122
      %s124 = sphi 0, %s122
      %s125 = sphi 0, %s124
      %s139 = sphi 0, %s125
      %s143 = sphi 0, %s143
      %s145 = sphi 0, %s143
      %s146 = sphi 0, %s145
      %s160 = sphi 0, %s146
      %s164 = sphi 0, %s164
      %s166 = sphi 0, %s164
      %s167 = sphi 0, %s166
      %s181 = sphi 0, %s167
      %s185 = sphi 0, %s185
      %s187 = sphi 0, %s185
      %s188 = sphi 0, %s187
      %s202 = sphi 0, %s188
      %s206 = sphi 0, %s206
      %s208 = sphi 0, %s206
      %s209 = sphi 0, %s208
      %s223 = sphi 0, %s209
      %s227 = sphi 0, %s227
      %s229 = sphi 0, %s227
      %s230 = sphi 0, %s229
      %s244 = sphi 0, %s230
      %s248 = sphi 0, %s248
      %s250 = sphi 0, %s248
      %s251 = sphi 0, %s250
      %s265 = sphi 0, %s251
      %s269 = sphi 0, %s269
      %s271 = sphi 0, %s269
      %s272 = sphi 0, %s271
      %s286 = sphi 0, %s272
      %s290 = sphi 0, %s290
      %s292 = sphi 0, %s290
      %s293 = sphi 0, %s292
      %s307 = sphi 0, %s293
      %s311 = sphi 0, %s311
      %s313 = sphi 0, %s311
      %s314 = sphi 0, %s313
      %s328 = sphi 0, %s314
      %s332 = sphi 0, %s332
      %s334 = sphi 0, %s332
      %s335 = sphi 0, %s334
      %s349 = sphi 0, %s335
      %s353 = sphi 0, %s353
      %s355 = sphi 0, %s353
      %s356 = sphi 0, %s355
      %s370 = sphi 0, %s356
      %s376 = sphi 0, %s378
      %s379 = sphi 0, %s376
      %s380 = sphi 0, %s379
      %s396 = sphi 0, %s380
    $region4: #{transformer_block.1} parent=1 // loop_header_branch
      %28 = sbr.rel (%p26) target = $region8
    $region5: #{transformer_block.1} parent=1 // loop_body
      %s30 = ssub.s32 %s25, 1
      %s31 = ssub.s32 %s25, 2
      %s32 = sadd.s32 %s25, 1
      %s33 = ssub.s32 %s25, %s32
      %p34 = scmp.eq.s32.totalorder %s33, 0
      %s36 = sadd.s32 %s35, 1
      %s37 = scalar_select %p34, %s35, %s36
      %p40 = pneg %p34
      %p41 = scmp.eq.s32.totalorder %s25, 1
      %p42 = por %p40, %p41
      %p43 = scmp.ne.s32.totalorder %s35, %s38
      %p44 = scmp.eq.s32.totalorder %s25, 0
      %p45 = por %p43, %p44
      %p46 = scmp.ne.s32.totalorder %s35, %s38
      %p47 = scmp.eq.s32.totalorder %s30, 1
      %p48 = por %p46, %p47
      %p49 = scmp.ne.s32.totalorder %s38, %s39
      %p50 = scmp.eq.s32.totalorder %s30, 0
      %p51 = por %p49, %p50
      %p52 = scmp.ne.s32.totalorder %s38, %s39
      %p53 = scmp.eq.s32.totalorder %s31, 1
      %p54 = por %p52, %p53
      %p56 = scmp.ne.s32.totalorder %s39, %s55
      %p57 = scmp.eq.s32.totalorder %s31, 0
      %p58 = por %p56, %p57
      %s60 = sadd.s32 %s59, 1
      %p63 = scmp.eq.s32.totalorder %s25, 1
      %p64 = scmp.ne.s32.totalorder %s59, %s61
      %p65 = scmp.eq.s32.totalorder %s25, 0
      %p66 = por %p64, %p65
      %p67 = scmp.ne.s32.totalorder %s59, %s61
      %p68 = scmp.eq.s32.totalorder %s30, 1
      %p69 = por %p67, %p68
      %p70 = scmp.ne.s32.totalorder %s61, %s62
      %p71 = scmp.eq.s32.totalorder %s30, 0
      %p72 = por %p70, %p71
      %p73 = scmp.ne.s32.totalorder %s61, %s62
      %p74 = scmp.eq.s32.totalorder %s31, 1
      %p75 = por %p73, %p74
      %p77 = scmp.ne.s32.totalorder %s62, %s76
      %p78 = scmp.eq.s32.totalorder %s31, 0
      %p79 = por %p77, %p78
      %s81 = sadd.s32 %s80, 1
      %p84 = scmp.eq.s32.totalorder %s25, 1
      %p85 = scmp.ne.s32.totalorder %s80, %s82
      %p86 = scmp.eq.s32.totalorder %s25, 0
      %p87 = por %p85, %p86
      %p88 = scmp.ne.s32.totalorder %s80, %s82
      %p89 = scmp.eq.s32.totalorder %s30, 1
      %p90 = por %p88, %p89
      %p91 = scmp.ne.s32.totalorder %s82, %s83
      %p92 = scmp.eq.s32.totalorder %s30, 0
      %p93 = por %p91, %p92
      %p94 = scmp.ne.s32.totalorder %s82, %s83
      %p95 = scmp.eq.s32.totalorder %s31, 1
      %p96 = por %p94, %p95
      %p98 = scmp.ne.s32.totalorder %s83, %s97
      %p99 = scmp.eq.s32.totalorder %s31, 0
      %p100 = por %p98, %p99
      %s102 = sadd.s32 %s101, 1
      %p105 = scmp.eq.s32.totalorder %s25, 1
      %p106 = scmp.ne.s32.totalorder %s101, %s103
      %p107 = scmp.eq.s32.totalorder %s25, 0
      %p108 = por %p106, %p107
      %p109 = scmp.ne.s32.totalorder %s101, %s103
      %p110 = scmp.eq.s32.totalorder %s30, 1
      %p111 = por %p109, %p110
      %p112 = scmp.ne.s32.totalorder %s103, %s104
      %p113 = scmp.eq.s32.totalorder %s30, 0
      %p114 = por %p112, %p113
      %p115 = scmp.ne.s32.totalorder %s103, %s104
      %p116 = scmp.eq.s32.totalorder %s31, 1
      %p117 = por %p115, %p116
      %p119 = scmp.ne.s32.totalorder %s104, %s118
      %p120 = scmp.eq.s32.totalorder %s31, 0
      %p121 = por %p119, %p120
      %s123 = sadd.s32 %s122, 1
      %p126 = scmp.eq.s32.totalorder %s25, 1
      %p127 = scmp.ne.s32.totalorder %s122, %s124
      %p128 = scmp.eq.s32.totalorder %s25, 0
      %p129 = por %p127, %p128
      %p130 = scmp.ne.s32.totalorder %s122, %s124
      %p131 = scmp.eq.s32.totalorder %s30, 1
      %p132 = por %p130, %p131
      %p133 = scmp.ne.s32.totalorder %s124, %s125
      %p134 = scmp.eq.s32.totalorder %s30, 0
      %p135 = por %p133, %p134
      %p136 = scmp.ne.s32.totalorder %s124, %s125
      %p137 = scmp.eq.s32.totalorder %s31, 1
      %p138 = por %p136, %p137
      %p140 = scmp.ne.s32.totalorder %s125, %s139
      %p141 = scmp.eq.s32.totalorder %s31, 0
      %p142 = por %p140, %p141
      %s144 = sadd.s32 %s143, 1
      %p147 = scmp.eq.s32.totalorder %s25, 1
      %p148 = scmp.ne.s32.totalorder %s143, %s145
      %p149 = scmp.eq.s32.totalorder %s25, 0
      %p150 = por %p148, %p149
      %p151 = scmp.ne.s32.totalorder %s143, %s145
      %p152 = scmp.eq.s32.totalorder %s30, 1
      %p153 = por %p151, %p152
      %p154 = scmp.ne.s32.totalorder %s145, %s146
      %p155 = scmp.eq.s32.totalorder %s30, 0
      %p156 = por %p154, %p155
      %p157 = scmp.ne.s32.totalorder %s145, %s146
      %p158 = scmp.eq.s32.totalorder %s31, 1
      %p159 = por %p157, %p158
      %p161 = scmp.ne.s32.totalorder %s146, %s160
      %p162 = scmp.eq.s32.totalorder %s31, 0
      %p163 = por %p161, %p162
      %s165 = sadd.s32 %s164, 1
      %p168 = scmp.eq.s32.totalorder %s25, 1
      %p169 = scmp.ne.s32.totalorder %s164, %s166
      %p170 = scmp.eq.s32.totalorder %s25, 0
      %p171 = por %p169, %p170
      %p172 = scmp.ne.s32.totalorder %s164, %s166
      %p173 = scmp.eq.s32.totalorder %s30, 1
      %p174 = por %p172, %p173
      %p175 = scmp.ne.s32.totalorder %s166, %s167
      %p176 = scmp.eq.s32.totalorder %s30, 0
      %p177 = por %p175, %p176
      %p178 = scmp.ne.s32.totalorder %s166, %s167
      %p179 = scmp.eq.s32.totalorder %s31, 1
      %p180 = por %p178, %p179
      %p182 = scmp.ne.s32.totalorder %s167, %s181
      %p183 = scmp.eq.s32.totalorder %s31, 0
      %p184 = por %p182, %p183
      %s186 = sadd.s32 %s185, 1
      %p189 = scmp.eq.s32.totalorder %s25, 1
      %p190 = scmp.ne.s32.totalorder %s185, %s187
      %p191 = scmp.eq.s32.totalorder %s25, 0
      %p192 = por %p190, %p191
      %p193 = scmp.ne.s32.totalorder %s185, %s187
      %p194 = scmp.eq.s32.totalorder %s30, 1
      %p195 = por %p193, %p194
      %p196 = scmp.ne.s32.totalorder %s187, %s188
      %p197 = scmp.eq.s32.totalorder %s30, 0
      %p198 = por %p196, %p197
      %p199 = scmp.ne.s32.totalorder %s187, %s188
      %p200 = scmp.eq.s32.totalorder %s31, 1
      %p201 = por %p199, %p200
      %p203 = scmp.ne.s32.totalorder %s188, %s202
      %p204 = scmp.eq.s32.totalorder %s31, 0
      %p205 = por %p203, %p204
      %s207 = sadd.s32 %s206, 1
      %p210 = scmp.eq.s32.totalorder %s25, 1
      %p211 = scmp.ne.s32.totalorder %s206, %s208
      %p212 = scmp.eq.s32.totalorder %s25, 0
      %p213 = por %p211, %p212
      %p214 = scmp.ne.s32.totalorder %s206, %s208
      %p215 = scmp.eq.s32.totalorder %s30, 1
      %p216 = por %p214, %p215
      %p217 = scmp.ne.s32.totalorder %s208, %s209
      %p218 = scmp.eq.s32.totalorder %s30, 0
      %p219 = por %p217, %p218
      %p220 = scmp.ne.s32.totalorder %s208, %s209
      %p221 = scmp.eq.s32.totalorder %s31, 1
      %p222 = por %p220, %p221
      %p224 = scmp.ne.s32.totalorder %s209, %s223
      %p225 = scmp.eq.s32.totalorder %s31, 0
      %p226 = por %p224, %p225
      %s228 = sadd.s32 %s227, 1
      %p231 = scmp.eq.s32.totalorder %s25, 1
      %p232 = scmp.ne.s32.totalorder %s227, %s229
      %p233 = scmp.eq.s32.totalorder %s25, 0
      %p234 = por %p232, %p233
      %p235 = scmp.ne.s32.totalorder %s227, %s229
      %p236 = scmp.eq.s32.totalorder %s30, 1
      %p237 = por %p235, %p236
      %p238 = scmp.ne.s32.totalorder %s229, %s230
      %p239 = scmp.eq.s32.totalorder %s30, 0
      %p240 = por %p238, %p239
      %p241 = scmp.ne.s32.totalorder %s229, %s230
      %p242 = scmp.eq.s32.totalorder %s31, 1
      %p243 = por %p241, %p242
      %p245 = scmp.ne.s32.totalorder %s230, %s244
      %p246 = scmp.eq.s32.totalorder %s31, 0
      %p247 = por %p245, %p246
      %s249 = sadd.s32 %s248, 1
      %p252 = scmp.eq.s32.totalorder %s25, 1
      %p253 = scmp.ne.s32.totalorder %s248, %s250
      %p254 = scmp.eq.s32.totalorder %s25, 0
      %p255 = por %p253, %p254
      %p256 = scmp.ne.s32.totalorder %s248, %s250
      %p257 = scmp.eq.s32.totalorder %s30, 1
      %p258 = por %p256, %p257
      %p259 = scmp.ne.s32.totalorder %s250, %s251
      %p260 = scmp.eq.s32.totalorder %s30, 0
      %p261 = por %p259, %p260
      %p262 = scmp.ne.s32.totalorder %s250, %s251
      %p263 = scmp.eq.s32.totalorder %s31, 1
      %p264 = por %p262, %p263
      %p266 = scmp.ne.s32.totalorder %s251, %s265
      %p267 = scmp.eq.s32.totalorder %s31, 0
      %p268 = por %p266, %p267
      %s270 = sadd.s32 %s269, 1
      %p273 = scmp.eq.s32.totalorder %s25, 1
      %p274 = scmp.ne.s32.totalorder %s269, %s271
      %p275 = scmp.eq.s32.totalorder %s25, 0
      %p276 = por %p274, %p275
      %p277 = scmp.ne.s32.totalorder %s269, %s271
      %p278 = scmp.eq.s32.totalorder %s30, 1
      %p279 = por %p277, %p278
      %p280 = scmp.ne.s32.totalorder %s271, %s272
      %p281 = scmp.eq.s32.totalorder %s30, 0
      %p282 = por %p280, %p281
      %p283 = scmp.ne.s32.totalorder %s271, %s272
      %p284 = scmp.eq.s32.totalorder %s31, 1
      %p285 = por %p283, %p284
      %p287 = scmp.ne.s32.totalorder %s272, %s286
      %p288 = scmp.eq.s32.totalorder %s31, 0
      %p289 = por %p287, %p288
      %s291 = sadd.s32 %s290, 1
      %p294 = scmp.eq.s32.totalorder %s25, 1
      %p295 = scmp.ne.s32.totalorder %s290, %s292
      %p296 = scmp.eq.s32.totalorder %s25, 0
      %p297 = por %p295, %p296
      %p298 = scmp.ne.s32.totalorder %s290, %s292
      %p299 = scmp.eq.s32.totalorder %s30, 1
      %p300 = por %p298, %p299
      %p301 = scmp.ne.s32.totalorder %s292, %s293
      %p302 = scmp.eq.s32.totalorder %s30, 0
      %p303 = por %p301, %p302
      %p304 = scmp.ne.s32.totalorder %s292, %s293
      %p305 = scmp.eq.s32.totalorder %s31, 1
      %p306 = por %p304, %p305
      %p308 = scmp.ne.s32.totalorder %s293, %s307
      %p309 = scmp.eq.s32.totalorder %s31, 0
      %p310 = por %p308, %p309
      %s312 = sadd.s32 %s311, 1
      %p315 = scmp.eq.s32.totalorder %s25, 1
      %p316 = scmp.ne.s32.totalorder %s311, %s313
      %p317 = scmp.eq.s32.totalorder %s25, 0
      %p318 = por %p316, %p317
      %p319 = scmp.ne.s32.totalorder %s311, %s313
      %p320 = scmp.eq.s32.totalorder %s30, 1
      %p321 = por %p319, %p320
      %p322 = scmp.ne.s32.totalorder %s313, %s314
      %p323 = scmp.eq.s32.totalorder %s30, 0
      %p324 = por %p322, %p323
      %p325 = scmp.ne.s32.totalorder %s313, %s314
      %p326 = scmp.eq.s32.totalorder %s31, 1
      %p327 = por %p325, %p326
      %p329 = scmp.ne.s32.totalorder %s314, %s328
      %p330 = scmp.eq.s32.totalorder %s31, 0
      %p331 = por %p329, %p330
      %s333 = sadd.s32 %s332, 1
      %p336 = scmp.eq.s32.totalorder %s25, 1
      %p337 = scmp.ne.s32.totalorder %s332, %s334
      %p338 = scmp.eq.s32.totalorder %s25, 0
      %p339 = por %p337, %p338
      %p340 = scmp.ne.s32.totalorder %s332, %s334
      %p341 = scmp.eq.s32.totalorder %s30, 1
      %p342 = por %p340, %p341
      %p343 = scmp.ne.s32.totalorder %s334, %s335
      %p344 = scmp.eq.s32.totalorder %s30, 0
      %p345 = por %p343, %p344
      %p346 = scmp.ne.s32.totalorder %s334, %s335
      %p347 = scmp.eq.s32.totalorder %s31, 1
      %p348 = por %p346, %p347
      %p350 = scmp.ne.s32.totalorder %s335, %s349
      %p351 = scmp.eq.s32.totalorder %s31, 0
      %p352 = por %p350, %p351
      %s354 = sadd.s32 %s353, 1
      %p357 = scmp.eq.s32.totalorder %s25, 1
      %p358 = scmp.ne.s32.totalorder %s353, %s355
      %p359 = scmp.eq.s32.totalorder %s25, 0
      %p360 = por %p358, %p359
      %p361 = scmp.ne.s32.totalorder %s353, %s355
      %p362 = scmp.eq.s32.totalorder %s30, 1
      %p363 = por %p361, %p362
      %p364 = scmp.ne.s32.totalorder %s355, %s356
      %p365 = scmp.eq.s32.totalorder %s30, 0
      %p366 = por %p364, %p365
      %p367 = scmp.ne.s32.totalorder %s355, %s356
      %p368 = scmp.eq.s32.totalorder %s31, 1
      %p369 = por %p367, %p368
      %p371 = scmp.ne.s32.totalorder %s356, %s370
      %p372 = scmp.eq.s32.totalorder %s31, 0
      %p373 = por %p371, %p372
      %s374 = ssub.s32 %s25, %s32
      %p375 = scmp.eq.s32.totalorder %s374, 0
      %s377 = sadd.s32 %s376, 1
      %s378 = scalar_select %p375, %s376, %s377
      %p381 = pneg %p375
      %p382 = scmp.eq.s32.totalorder %s25, 1
      %p383 = por %p381, %p382
      %p384 = scmp.ne.s32.totalorder %s376, %s379
      %p385 = scmp.eq.s32.totalorder %s25, 0
      %p386 = por %p384, %p385
      %p387 = scmp.ne.s32.totalorder %s376, %s379
      %p388 = scmp.eq.s32.totalorder %s30, 1
      %p389 = por %p387, %p388
      %p390 = scmp.ne.s32.totalorder %s379, %s380
      %p391 = scmp.eq.s32.totalorder %s30, 0
      %p392 = por %p390, %p391
      %p393 = scmp.ne.s32.totalorder %s379, %s380
      %p394 = scmp.eq.s32.totalorder %s31, 1
      %p395 = por %p393, %p394
      %p397 = scmp.ne.s32.totalorder %s380, %s396
      %p398 = scmp.eq.s32.totalorder %s31, 0
      %p399 = por %p397, %p398
      %p400 = scmp.le.s32.totalorder 1, %s25
      %p401 = scmp.lt.s32.totalorder %s25, 3
      %p402 = pnand %p400, %p401
      %p403 = pneg %p402
      // Predicated region
      $region9: #{transformer_block.1} parent=5 // pred_check
        _
      $region10: #{transformer_block.1} parent=5 // pred_check_branch
        %405 = sbr.rel (%p402) target = $region12
      $region11: #{transformer_block.1} parent=5 // pred_region
        %s406 = ssub.s32 %s25, 1
        // Predicated region
        $region13: #{transformer_block.1} parent=11 // pred_check
          %p407 = pneg %p72
        $region14: #{transformer_block.1} parent=11 // pred_check_branch
          %409 = sbr.rel (%p407) target = $region16
        $region15: #{transformer_block.1} parent=11 // pred_region
          _
        $region16: #{transformer_block.1} parent=11 // pred_fallthru
          _
        // Predicated region
        $region17: #{transformer_block.1} parent=11 // pred_check
          %p410 = pneg %p93
        $region18: #{transformer_block.1} parent=11 // pred_check_branch
          %412 = sbr.rel (%p410) target = $region20
        $region19: #{transformer_block.1} parent=11 // pred_region
          _
        $region20: #{transformer_block.1} parent=11 // pred_fallthru
          _
        // Predicated region
        $region21: #{transformer_block.1} parent=11 // pred_check
          %p413 = pneg %p114
        $region22: #{transformer_block.1} parent=11 // pred_check_branch
          %415 = sbr.rel (%p413) target = $region24
        $region23: #{transformer_block.1} parent=11 // pred_region
          _
        $region24: #{transformer_block.1} parent=11 // pred_fallthru
          _
        // Predicated region
        $region25: #{transformer_block.1} parent=11 // pred_check
          %p416 = pneg %p135
        $region26: #{transformer_block.1} parent=11 // pred_check_branch
          %418 = sbr.rel (%p416) target = $region28
        $region27: #{transformer_block.1} parent=11 // pred_region
          _
        $region28: #{transformer_block.1} parent=11 // pred_fallthru
          _
        // Predicated region
        $region29: #{transformer_block.1} parent=11 // pred_check
          %p419 = pneg %p156
        $region30: #{transformer_block.1} parent=11 // pred_check_branch
          %421 = sbr.rel (%p419) target = $region32
        $region31: #{transformer_block.1} parent=11 // pred_region
          _
        $region32: #{transformer_block.1} parent=11 // pred_fallthru
          _
        // Predicated region
        $region33: #{transformer_block.1} parent=11 // pred_check
          %p422 = pneg %p177
        $region34: #{transformer_block.1} parent=11 // pred_check_branch
          %424 = sbr.rel (%p422) target = $region36
        $region35: #{transformer_block.1} parent=11 // pred_region
          _
        $region36: #{transformer_block.1} parent=11 // pred_fallthru
          _
        // Predicated region
        $region37: #{transformer_block.1} parent=11 // pred_check
          %p425 = pneg %p198
        $region38: #{transformer_block.1} parent=11 // pred_check_branch
          %427 = sbr.rel (%p425) target = $region40
        $region39: #{transformer_block.1} parent=11 // pred_region
          _
        $region40: #{transformer_block.1} parent=11 // pred_fallthru
          _
        // Predicated region
        $region41: #{transformer_block.1} parent=11 // pred_check
          %p428 = pneg %p219
        $region42: #{transformer_block.1} parent=11 // pred_check_branch
          %430 = sbr.rel (%p428) target = $region44
        $region43: #{transformer_block.1} parent=11 // pred_region
          _
        $region44: #{transformer_block.1} parent=11 // pred_fallthru
          _
        // Predicated region
        $region45: #{transformer_block.1} parent=11 // pred_check
          %p431 = pneg %p240
        $region46: #{transformer_block.1} parent=11 // pred_check_branch
          %433 = sbr.rel (%p431) target = $region48
        $region47: #{transformer_block.1} parent=11 // pred_region
          _
        $region48: #{transformer_block.1} parent=11 // pred_fallthru
          _
        // Predicated region
        $region49: #{transformer_block.1} parent=11 // pred_check
          %p434 = pneg %p261
        $region50: #{transformer_block.1} parent=11 // pred_check_branch
          %436 = sbr.rel (%p434) target = $region52
        $region51: #{transformer_block.1} parent=11 // pred_region
          _
        $region52: #{transformer_block.1} parent=11 // pred_fallthru
          _
        // Predicated region
        $region53: #{transformer_block.1} parent=11 // pred_check
          %p437 = pneg %p282
        $region54: #{transformer_block.1} parent=11 // pred_check_branch
          %439 = sbr.rel (%p437) target = $region56
        $region55: #{transformer_block.1} parent=11 // pred_region
          _
        $region56: #{transformer_block.1} parent=11 // pred_fallthru
          _
        // Predicated region
        $region57: #{transformer_block.1} parent=11 // pred_check
          %p440 = pneg %p303
        $region58: #{transformer_block.1} parent=11 // pred_check_branch
          %442 = sbr.rel (%p440) target = $region60
        $region59: #{transformer_block.1} parent=11 // pred_region
          _
        $region60: #{transformer_block.1} parent=11 // pred_fallthru
          _
        // Predicated region
        $region61: #{transformer_block.1} parent=11 // pred_check
          %p443 = pneg %p324
        $region62: #{transformer_block.1} parent=11 // pred_check_branch
          %445 = sbr.rel (%p443) target = $region64
        $region63: #{transformer_block.1} parent=11 // pred_region
          _
        $region64: #{transformer_block.1} parent=11 // pred_fallthru
          _
        // Predicated region
        $region65: #{transformer_block.1} parent=11 // pred_check
          %p446 = pneg %p345
        $region66: #{transformer_block.1} parent=11 // pred_check_branch
          %448 = sbr.rel (%p446) target = $region68
        $region67: #{transformer_block.1} parent=11 // pred_region
          _
        $region68: #{transformer_block.1} parent=11 // pred_fallthru
          _
        // Predicated region
        $region69: #{transformer_block.1} parent=11 // pred_check
          %p449 = pneg %p366
        $region70: #{transformer_block.1} parent=11 // pred_check_branch
          %451 = sbr.rel (%p449) target = $region72
        $region71: #{transformer_block.1} parent=11 // pred_region
          _
        $region72: #{transformer_block.1} parent=11 // pred_fallthru
          _
      $region12: #{transformer_block.1} parent=5 // pred_fallthru
        _
      %p452 = scmp.lt.s32.totalorder %s25, 2
      // Predicated region
      $region73: #{transformer_block.1} parent=5 // pred_check
        %p453 = pneg %p452
      $region74: #{transformer_block.1} parent=5 // pred_check_branch
        %455 = sbr.rel (%p453) target = $region76
      $region75: #{transformer_block.1} parent=5 // pred_region
        // Predicated region
        $region77: #{transformer_block.1} parent=75 // pred_check
          %p456 = pneg %p45
        $region78: #{transformer_block.1} parent=75 // pred_check_branch
          %458 = sbr.rel (%p456) target = $region80
        $region79: #{transformer_block.1} parent=75 // pred_region
          %p459 = scmp.lt.s32.totalorder %s25, 1
          %s460 = scalar_select %p459, %s25, 1
          %s461 = smul.addr %s460, 2
          %s462 = smul.addr %s461, 8
          %s463 = scalar_lea.vmem %s0, %s462
        $region80: #{transformer_block.1} parent=75 // pred_fallthru
          _
      $region76: #{transformer_block.1} parent=5 // pred_fallthru
        _
      %p464 = scmp.le.s32.totalorder 1, %s25
      %p465 = scmp.lt.s32.totalorder %s25, 3
      %p466 = pnand %p464, %p465
      %p467 = pneg %p466
      // Predicated region
      $region81: #{transformer_block.1} parent=5 // pred_check
        _
      $region82: #{transformer_block.1} parent=5 // pred_check_branch
        %469 = sbr.rel (%p466) target = $region84
      $region83: #{transformer_block.1} parent=5 // pred_region
        %s470 = ssub.s32 %s25, 1
        %p471 = scmp.lt.s32.totalorder %s30, 1
        %s472 = scalar_select %p471, %s30, 1
        %s473 = smul.addr %s472, 2
        %s474 = smul.addr %s473, 8
        %s475 = scalar_lea.vmem %s0, %s474
        %p476 = pneg %p51
        %p477 = pneg %p48
        %p478 = pneg %p72
        %p479 = pneg %p69
        %p480 = pneg %p93
        %p481 = pneg %p90
        %p482 = pneg %p114
        %p483 = pneg %p111
        %p484 = pneg %p135
        %p485 = pneg %p132
        %p486 = pneg %p156
        %p487 = pneg %p153
        %p488 = pneg %p177
        %p489 = pneg %p174
        %p490 = pneg %p198
        %p491 = pneg %p195
        %p492 = pneg %p219
        %p493 = pneg %p216
        %p494 = pneg %p240
        %p495 = pneg %p237
        %p496 = pneg %p261
        %p497 = pneg %p258
        %p498 = pneg %p282
        %p499 = pneg %p279
        %p500 = pneg %p303
        %p501 = pneg %p300
        %p502 = pneg %p324
        %p503 = pneg %p321
        %p504 = pneg %p345
        %p505 = pneg %p342
        %p506 = pneg %p366
        %p507 = pneg %p363
        %p508 = pneg %p392
        %p509 = pneg %p389
        %s510 = sand.u32 %s379, 1
        %s511 = scalar_lea.sflag [#allocation3], %s510
        %s512 = sand.u32 %s379, 1
        %s513 = smul.addr %s512, 16
        %s514 = scalar_lea.vmem [#allocation2], %s513
        %p515 = scmp.lt.s32.totalorder %s30, 1
        %s516 = scalar_select %p515, %s30, 1
        %s517 = smul.addr %s516, 2
        %s518 = smul.addr %s517, 8
        %s519 = scalar_lea.vmem %s0, %s518
        %v521 = vld [vmem:[%s519] sm:$0xff]
        %v522 = vld [vmem:[%s519 + $0x8] sm:$0xff]
        %v523 = vld [vmem:[%s1] sm:$0x3]
        %v524 = vld [vmem:[%s2] sm:$0x3]
        %v525 = vadd.f32 %v521, %v522
        %526 = vadd.xlane.f32.xlu0 %v525
        %v527 = vpop.xlane.xlu0 %526
        %v528 = vrcp.pop 256.0
        %v529 = vmul.f32 %v527, %v528
        %v530 = vsub.f32 %v521, %v529
        %v531 = vsub.f32 %v522, %v529
        %v532 = vmul.f32 %v530, %v530
        %v533 = vmul.f32 %v531, %v531
        %v534 = vadd.f32 %v532, %v533
        %535 = vadd.xlane.f32.xlu0 %v534
        %v536 = vpop.xlane.xlu0 %535
        %v537 = vmul.f32 %v536, %v528
        %v538 = vadd.f32 %v537, 1e-05
        %v539 = vrsqrt.pop %v538
        %v540 = vmul.f32 %v530, %v539
        %v541 = vmul.f32 %v531, %v539
        %v543 = vlaneseq
        %v544 = vshrl.u32 %v543, 7
        %v545 = vsub.s32 0, %v544
        %v546 = vrot.slane %v523, %v545
        %v547 = vlaneseq
        %v548 = vshrl.u32 %v547, 7
        %v549 = vsub.s32 1, %v548
        %v550 = vrot.slane %v523, %v549
        %v553 = vmul.f32 %v540, %v546
        %v554 = vmul.f32 %v541, %v550
        %v556 = vlaneseq
        %v557 = vshrl.u32 %v556, 7
        %v558 = vsub.s32 0, %v557
        %v559 = vrot.slane %v524, %v558
        %v560 = vlaneseq
        %v561 = vshrl.u32 %v560, 7
        %v562 = vsub.s32 1, %v561
        %v563 = vrot.slane %v524, %v562
        %v566 = vadd.f32 %v553, %v559
        %v567 = vadd.f32 %v554, %v563
        %v568 = vpack.c.bf16 %v566, %v566
        %v569 = vpack.c.bf16 %v567, %v567
        %v570 = vld [vmem:[%s3] sm:$0xff]
        %v571 = vld [vmem:[%s3 + $0x8] sm:$0xff]
        %v572 = vld [vmem:[%s3 + $0x10] sm:$0xff]
        %v573 = vld [vmem:[%s3 + $0x18] sm:$0xff]
        %v574 = vld [vmem:[%s3 + $0x20] sm:$0xff]
        %v575 = vld [vmem:[%s3 + $0x28] sm:$0xff]
        %v576 = vld [vmem:[%s3 + $0x30] sm:$0xff]
        %v577 = vld [vmem:[%s3 + $0x38] sm:$0xff]
        %v578 = vld [vmem:[%s3 + $0x40] sm:$0xff]
        %v579 = vld [vmem:[%s3 + $0x48] sm:$0xff]
        %v580 = vld [vmem:[%s3 + $0x50] sm:$0xff]
        %v581 = vld [vmem:[%s3 + $0x58] sm:$0xff]
        %v582 = vld [vmem:[%s3 + $0x60] sm:$0xff]
        %v583 = vld [vmem:[%s3 + $0x68] sm:$0xff]
        %v584 = vld [vmem:[%s3 + $0x70] sm:$0xff]
        %v585 = vld [vmem:[%s3 + $0x78] sm:$0xff]
        %v586 = vld [vmem:[%s3 + $0x80] sm:$0xff]
        %v587 = vld [vmem:[%s3 + $0x88] sm:$0xff]
        %v588 = vld [vmem:[%s3 + $0x90] sm:$0xff]
        %v589 = vld [vmem:[%s3 + $0x98] sm:$0xff]
        %v590 = vld [vmem:[%s3 + $0xa0] sm:$0xff]
        %v591 = vld [vmem:[%s3 + $0xa8] sm:$0xff]
        %v592 = vld [vmem:[%s3 + $0xb0] sm:$0xff]
        %v593 = vld [vmem:[%s3 + $0xb8] sm:$0xff]
        %v594 = vld [vmem:[%s3 + $0xc0] sm:$0xff]
        %v595 = vld [vmem:[%s3 + $0xc8] sm:$0xff]
        %v596 = vld [vmem:[%s3 + $0xd0] sm:$0xff]
        %v597 = vld [vmem:[%s3 + $0xd8] sm:$0xff]
        %v598 = vld [vmem:[%s3 + $0xe0] sm:$0xff]
        %v599 = vld [vmem:[%s3 + $0xe8] sm:$0xff]
        %v600 = vld [vmem:[%s3 + $0xf0] sm:$0xff]
        %v601 = vld [vmem:[%s3 + $0xf8] sm:$0xff]
        %v602 = vld [vmem:[%s3 + $0x100] sm:$0xff]
        %v603 = vld [vmem:[%s3 + $0x108] sm:$0xff]
        %v604 = vld [vmem:[%s3 + $0x110] sm:$0xff]
        %v605 = vld [vmem:[%s3 + $0x118] sm:$0xff]
        %v606 = vld [vmem:[%s3 + $0x120] sm:$0xff]
        %v607 = vld [vmem:[%s3 + $0x128] sm:$0xff]
        %v608 = vld [vmem:[%s3 + $0x130] sm:$0xff]
        %v609 = vld [vmem:[%s3 + $0x138] sm:$0xff]
        %v610 = vld [vmem:[%s3 + $0x140] sm:$0xff]
        %v611 = vld [vmem:[%s3 + $0x148] sm:$0xff]
        %v612 = vld [vmem:[%s3 + $0x150] sm:$0xff]
        %v613 = vld [vmem:[%s3 + $0x158] sm:$0xff]
        %v614 = vld [vmem:[%s3 + $0x160] sm:$0xff]
        %v615 = vld [vmem:[%s3 + $0x168] sm:$0xff]
        %v616 = vld [vmem:[%s3 + $0x170] sm:$0xff]
        %v617 = vld [vmem:[%s3 + $0x178] sm:$0xff]
        %v618 = vld [vmem:[%s3 + $0x180] sm:$0xff]
        %v619 = vld [vmem:[%s3 + $0x188] sm:$0xff]
        %v620 = vld [vmem:[%s3 + $0x190] sm:$0xff]
        %v621 = vld [vmem:[%s3 + $0x198] sm:$0xff]
        %v622 = vld [vmem:[%s3 + $0x1a0] sm:$0xff]
        %v623 = vld [vmem:[%s3 + $0x1a8] sm:$0xff]
        %v624 = vld [vmem:[%s3 + $0x1b0] sm:$0xff]
        %v625 = vld [vmem:[%s3 + $0x1b8] sm:$0xff]
        %v626 = vld [vmem:[%s3 + $0x1c0] sm:$0xff]
        %v627 = vld [vmem:[%s3 + $0x1c8] sm:$0xff]
        %v628 = vld [vmem:[%s3 + $0x1d0] sm:$0xff]
        %v629 = vld [vmem:[%s3 + $0x1d8] sm:$0xff]
        %v630 = vld [vmem:[%s3 + $0x1e0] sm:$0xff]
        %v631 = vld [vmem:[%s3 + $0x1e8] sm:$0xff]
        %v632 = vld [vmem:[%s3 + $0x1f0] sm:$0xff]
        %v633 = vld [vmem:[%s3 + $0x1f8] sm:$0xff]
        %v634 = vld [vmem:[%s3 + $0x200] sm:$0xff]
        %v635 = vld [vmem:[%s3 + $0x208] sm:$0xff]
        %v636 = vld [vmem:[%s3 + $0x210] sm:$0xff]
        %v637 = vld [vmem:[%s3 + $0x218] sm:$0xff]
        %v638 = vld [vmem:[%s3 + $0x220] sm:$0xff]
        %v639 = vld [vmem:[%s3 + $0x228] sm:$0xff]
        %v640 = vld [vmem:[%s3 + $0x230] sm:$0xff]
        %v641 = vld [vmem:[%s3 + $0x238] sm:$0xff]
        %v642 = vld [vmem:[%s3 + $0x240] sm:$0xff]
        %v643 = vld [vmem:[%s3 + $0x248] sm:$0xff]
        %v644 = vld [vmem:[%s3 + $0x250] sm:$0xff]
        %v645 = vld [vmem:[%s3 + $0x258] sm:$0xff]
        %v646 = vld [vmem:[%s3 + $0x260] sm:$0xff]
        %v647 = vld [vmem:[%s3 + $0x268] sm:$0xff]
        %v648 = vld [vmem:[%s3 + $0x270] sm:$0xff]
        %v649 = vld [vmem:[%s3 + $0x278] sm:$0xff]
        %v650 = vld [vmem:[%s3 + $0x280] sm:$0xff]
        %v651 = vld [vmem:[%s3 + $0x288] sm:$0xff]
        %v652 = vld [vmem:[%s3 + $0x290] sm:$0xff]
        %v653 = vld [vmem:[%s3 + $0x298] sm:$0xff]
        %v654 = vld [vmem:[%s3 + $0x2a0] sm:$0xff]
        %v655 = vld [vmem:[%s3 + $0x2a8] sm:$0xff]
        %v656 = vld [vmem:[%s3 + $0x2b0] sm:$0xff]
        %v657 = vld [vmem:[%s3 + $0x2b8] sm:$0xff]
        %v658 = vld [vmem:[%s3 + $0x2c0] sm:$0xff]
        %v659 = vld [vmem:[%s3 + $0x2c8] sm:$0xff]
        %v660 = vld [vmem:[%s3 + $0x2d0] sm:$0xff]
        %v661 = vld [vmem:[%s3 + $0x2d8] sm:$0xff]
        %v662 = vld [vmem:[%s3 + $0x2e0] sm:$0xff]
        %v663 = vld [vmem:[%s3 + $0x2e8] sm:$0xff]
        %v664 = vld [vmem:[%s3 + $0x2f0] sm:$0xff]
        %v665 = vld [vmem:[%s3 + $0x2f8] sm:$0xff]
        %v762 = vunpack.c.l.b16 %v570
        %v763 = vunpack.c.h.b16 %v570
        %v764 = vunpack.c.l.b16 %v571
        %v765 = vunpack.c.h.b16 %v571
        %v766 = vunpack.c.l.b16 %v572
        %v767 = vunpack.c.h.b16 %v572
        %v768 = vunpack.c.l.b16 %v573
        %v769 = vunpack.c.h.b16 %v573
        %v770 = vunpack.c.l.b16 %v574
        %v771 = vunpack.c.h.b16 %v574
        %v772 = vunpack.c.l.b16 %v575
        %v773 = vunpack.c.h.b16 %v575
        %v774 = vunpack.c.l.b16 %v576
        %v775 = vunpack.c.h.b16 %v576
        %v776 = vunpack.c.l.b16 %v577
        %v777 = vunpack.c.h.b16 %v577
        %v778 = vunpack.c.l.b16 %v578
        %v779 = vunpack.c.h.b16 %v578
        %v780 = vunpack.c.l.b16 %v579
        %v781 = vunpack.c.h.b16 %v579
        %v782 = vunpack.c.l.b16 %v580
        %v783 = vunpack.c.h.b16 %v580
        %v784 = vunpack.c.l.b16 %v581
        %v785 = vunpack.c.h.b16 %v581
        %v786 = vunpack.c.l.b16 %v582
        %v787 = vunpack.c.h.b16 %v582
        %v788 = vunpack.c.l.b16 %v583
        %v789 = vunpack.c.h.b16 %v583
        %v790 = vunpack.c.l.b16 %v584
        %v791 = vunpack.c.h.b16 %v584
        %v792 = vunpack.c.l.b16 %v585
        %v793 = vunpack.c.h.b16 %v585
        %v794 = vunpack.c.l.b16 %v586
        %v795 = vunpack.c.h.b16 %v586
        %v796 = vunpack.c.l.b16 %v587
        %v797 = vunpack.c.h.b16 %v587
        %v798 = vunpack.c.l.b16 %v588
        %v799 = vunpack.c.h.b16 %v588
        %v800 = vunpack.c.l.b16 %v589
        %v801 = vunpack.c.h.b16 %v589
        %v802 = vunpack.c.l.b16 %v590
        %v803 = vunpack.c.h.b16 %v590
        %v804 = vunpack.c.l.b16 %v591
        %v805 = vunpack.c.h.b16 %v591
        %v806 = vunpack.c.l.b16 %v592
        %v807 = vunpack.c.h.b16 %v592
        %v808 = vunpack.c.l.b16 %v593
        %v809 = vunpack.c.h.b16 %v593
        %v810 = vunpack.c.l.b16 %v594
        %v811 = vunpack.c.h.b16 %v594
        %v812 = vunpack.c.l.b16 %v595
        %v813 = vunpack.c.h.b16 %v595
        %v814 = vunpack.c.l.b16 %v596
        %v815 = vunpack.c.h.b16 %v596
        %v816 = vunpack.c.l.b16 %v597
        %v817 = vunpack.c.h.b16 %v597
        %v818 = vunpack.c.l.b16 %v598
        %v819 = vunpack.c.h.b16 %v598
        %v820 = vunpack.c.l.b16 %v599
        %v821 = vunpack.c.h.b16 %v599
        %v822 = vunpack.c.l.b16 %v600
        %v823 = vunpack.c.h.b16 %v600
        %v824 = vunpack.c.l.b16 %v601
        %v825 = vunpack.c.h.b16 %v601
        %v826 = vunpack.c.l.b16 %v602
        %v827 = vunpack.c.h.b16 %v602
        %v828 = vunpack.c.l.b16 %v603
        %v829 = vunpack.c.h.b16 %v603
        %v830 = vunpack.c.l.b16 %v604
        %v831 = vunpack.c.h.b16 %v604
        %v832 = vunpack.c.l.b16 %v605
        %v833 = vunpack.c.h.b16 %v605
        %v834 = vunpack.c.l.b16 %v606
        %v835 = vunpack.c.h.b16 %v606
        %v836 = vunpack.c.l.b16 %v607
        %v837 = vunpack.c.h.b16 %v607
        %v838 = vunpack.c.l.b16 %v608
        %v839 = vunpack.c.h.b16 %v608
        %v840 = vunpack.c.l.b16 %v609
        %v841 = vunpack.c.h.b16 %v609
        %v842 = vunpack.c.l.b16 %v610
        %v843 = vunpack.c.h.b16 %v610
        %v844 = vunpack.c.l.b16 %v611
        %v845 = vunpack.c.h.b16 %v611
        %v846 = vunpack.c.l.b16 %v612
        %v847 = vunpack.c.h.b16 %v612
        %v848 = vunpack.c.l.b16 %v613
        %v849 = vunpack.c.h.b16 %v613
        %v850 = vunpack.c.l.b16 %v614
        %v851 = vunpack.c.h.b16 %v614
        %v852 = vunpack.c.l.b16 %v615
        %v853 = vunpack.c.h.b16 %v615
        %v854 = vunpack.c.l.b16 %v616
        %v855 = vunpack.c.h.b16 %v616
        %v856 = vunpack.c.l.b16 %v617
        %v857 = vunpack.c.h.b16 %v617
        %v858 = vunpack.c.l.b16 %v618
        %v859 = vunpack.c.h.b16 %v618
        %v860 = vunpack.c.l.b16 %v619
        %v861 = vunpack.c.h.b16 %v619
        %v862 = vunpack.c.l.b16 %v620
        %v863 = vunpack.c.h.b16 %v620
        %v864 = vunpack.c.l.b16 %v621
        %v865 = vunpack.c.h.b16 %v621
        %v866 = vunpack.c.l.b16 %v622
        %v867 = vunpack.c.h.b16 %v622
        %v868 = vunpack.c.l.b16 %v623
        %v869 = vunpack.c.h.b16 %v623
        %v870 = vunpack.c.l.b16 %v624
        %v871 = vunpack.c.h.b16 %v624
        %v872 = vunpack.c.l.b16 %v625
        %v873 = vunpack.c.h.b16 %v625
        %v874 = vunpack.c.l.b16 %v626
        %v875 = vunpack.c.h.b16 %v626
        %v876 = vunpack.c.l.b16 %v627
        %v877 = vunpack.c.h.b16 %v627
        %v878 = vunpack.c.l.b16 %v628
        %v879 = vunpack.c.h.b16 %v628
        %v880 = vunpack.c.l.b16 %v629
        %v881 = vunpack.c.h.b16 %v629
        %v882 = vunpack.c.l.b16 %v630
        %v883 = vunpack.c.h.b16 %v630
        %v884 = vunpack.c.l.b16 %v631
        %v885 = vunpack.c.h.b16 %v631
        %v886 = vunpack.c.l.b16 %v632
        %v887 = vunpack.c.h.b16 %v632
        %v888 = vunpack.c.l.b16 %v633
        %v889 = vunpack.c.h.b16 %v633
        %v890 = vunpack.c.l.b16 %v634
        %v891 = vunpack.c.h.b16 %v634
        %v892 = vunpack.c.l.b16 %v635
        %v893 = vunpack.c.h.b16 %v635
        %v894 = vunpack.c.l.b16 %v636
        %v895 = vunpack.c.h.b16 %v636
        %v896 = vunpack.c.l.b16 %v637
        %v897 = vunpack.c.h.b16 %v637
        %v898 = vunpack.c.l.b16 %v638
        %v899 = vunpack.c.h.b16 %v638
        %v900 = vunpack.c.l.b16 %v639
        %v901 = vunpack.c.h.b16 %v639
        %v902 = vunpack.c.l.b16 %v640
        %v903 = vunpack.c.h.b16 %v640
        %v904 = vunpack.c.l.b16 %v641
        %v905 = vunpack.c.h.b16 %v641
        %v906 = vunpack.c.l.b16 %v642
        %v907 = vunpack.c.h.b16 %v642
        %v908 = vunpack.c.l.b16 %v643
        %v909 = vunpack.c.h.b16 %v643
        %v910 = vunpack.c.l.b16 %v644
        %v911 = vunpack.c.h.b16 %v644
        %v912 = vunpack.c.l.b16 %v645
        %v913 = vunpack.c.h.b16 %v645
        %v914 = vunpack.c.l.b16 %v646
        %v915 = vunpack.c.h.b16 %v646
        %v916 = vunpack.c.l.b16 %v647
        %v917 = vunpack.c.h.b16 %v647
        %v918 = vunpack.c.l.b16 %v648
        %v919 = vunpack.c.h.b16 %v648
        %v920 = vunpack.c.l.b16 %v649
        %v921 = vunpack.c.h.b16 %v649
        %v922 = vunpack.c.l.b16 %v650
        %v923 = vunpack.c.h.b16 %v650
        %v924 = vunpack.c.l.b16 %v651
        %v925 = vunpack.c.h.b16 %v651
        %v926 = vunpack.c.l.b16 %v652
        %v927 = vunpack.c.h.b16 %v652
        %v928 = vunpack.c.l.b16 %v653
        %v929 = vunpack.c.h.b16 %v653
        %v930 = vunpack.c.l.b16 %v654
        %v931 = vunpack.c.h.b16 %v654
        %v932 = vunpack.c.l.b16 %v655
        %v933 = vunpack.c.h.b16 %v655
        %v934 = vunpack.c.l.b16 %v656
        %v935 = vunpack.c.h.b16 %v656
        %v936 = vunpack.c.l.b16 %v657
        %v937 = vunpack.c.h.b16 %v657
        %v938 = vunpack.c.l.b16 %v658
        %v939 = vunpack.c.h.b16 %v658
        %v940 = vunpack.c.l.b16 %v659
        %v941 = vunpack.c.h.b16 %v659
        %v942 = vunpack.c.l.b16 %v660
        %v943 = vunpack.c.h.b16 %v660
        %v944 = vunpack.c.l.b16 %v661
        %v945 = vunpack.c.h.b16 %v661
        %v946 = vunpack.c.l.b16 %v662
        %v947 = vunpack.c.h.b16 %v662
        %v948 = vunpack.c.l.b16 %v663
        %v949 = vunpack.c.h.b16 %v663
        %v950 = vunpack.c.l.b16 %v664
        %v951 = vunpack.c.h.b16 %v664
        %v952 = vunpack.c.l.b16 %v665
        %v953 = vunpack.c.h.b16 %v665
        %v954 = vpack.c.b16 %v768, %v762
        %v955 = vpack.c.b16 %v769, %v763
        %v956 = vpack.c.b16 %v770, %v764
        %v957 = vpack.c.b16 %v771, %v765
        %v958 = vpack.c.b16 %v772, %v766
        %v959 = vpack.c.b16 %v773, %v767
        %v960 = vpack.c.b16 %v780, %v774
        %v961 = vpack.c.b16 %v781, %v775
        %v962 = vpack.c.b16 %v782, %v776
        %v963 = vpack.c.b16 %v783, %v777
        %v964 = vpack.c.b16 %v784, %v778
        %v965 = vpack.c.b16 %v785, %v779
        %v966 = vpack.c.b16 %v792, %v786
        %v967 = vpack.c.b16 %v793, %v787
        %v968 = vpack.c.b16 %v794, %v788
        %v969 = vpack.c.b16 %v795, %v789
        %v970 = vpack.c.b16 %v796, %v790
        %v971 = vpack.c.b16 %v797, %v791
        %v972 = vpack.c.b16 %v804, %v798
        %v973 = vpack.c.b16 %v805, %v799
        %v974 = vpack.c.b16 %v806, %v800
        %v975 = vpack.c.b16 %v807, %v801
        %v976 = vpack.c.b16 %v808, %v802
        %v977 = vpack.c.b16 %v809, %v803
        %v978 = vpack.c.b16 %v816, %v810
        %v979 = vpack.c.b16 %v817, %v811
        %v980 = vpack.c.b16 %v818, %v812
        %v981 = vpack.c.b16 %v819, %v813
        %v982 = vpack.c.b16 %v820, %v814
        %v983 = vpack.c.b16 %v821, %v815
        %v984 = vpack.c.b16 %v828, %v822
        %v985 = vpack.c.b16 %v829, %v823
        %v986 = vpack.c.b16 %v830, %v824
        %v987 = vpack.c.b16 %v831, %v825
        %v988 = vpack.c.b16 %v832, %v826
        %v989 = vpack.c.b16 %v833, %v827
        %v990 = vpack.c.b16 %v840, %v834
        %v991 = vpack.c.b16 %v841, %v835
        %v992 = vpack.c.b16 %v842, %v836
        %v993 = vpack.c.b16 %v843, %v837
        %v994 = vpack.c.b16 %v844, %v838
        %v995 = vpack.c.b16 %v845, %v839
        %v996 = vpack.c.b16 %v852, %v846
        %v997 = vpack.c.b16 %v853, %v847
        %v998 = vpack.c.b16 %v854, %v848
        %v999 = vpack.c.b16 %v855, %v849
        %v1000 = vpack.c.b16 %v856, %v850
        %v1001 = vpack.c.b16 %v857, %v851
        %v1002 = vpack.c.b16 %v864, %v858
        %v1003 = vpack.c.b16 %v865, %v859
        %v1004 = vpack.c.b16 %v866, %v860
        %v1005 = vpack.c.b16 %v867, %v861
        %v1006 = vpack.c.b16 %v868, %v862
        %v1007 = vpack.c.b16 %v869, %v863
        %v1008 = vpack.c.b16 %v876, %v870
        %v1009 = vpack.c.b16 %v877, %v871
        %v1010 = vpack.c.b16 %v878, %v872
        %v1011 = vpack.c.b16 %v879, %v873
        %v1012 = vpack.c.b16 %v880, %v874
        %v1013 = vpack.c.b16 %v881, %v875
        %v1014 = vpack.c.b16 %v888, %v882
        %v1015 = vpack.c.b16 %v889, %v883
        %v1016 = vpack.c.b16 %v890, %v884
        %v1017 = vpack.c.b16 %v891, %v885
        %v1018 = vpack.c.b16 %v892, %v886
        %v1019 = vpack.c.b16 %v893, %v887
        %v1020 = vpack.c.b16 %v900, %v894
        %v1021 = vpack.c.b16 %v901, %v895
        %v1022 = vpack.c.b16 %v902, %v896
        %v1023 = vpack.c.b16 %v903, %v897
        %v1024 = vpack.c.b16 %v904, %v898
        %v1025 = vpack.c.b16 %v905, %v899
        %v1026 = vpack.c.b16 %v912, %v906
        %v1027 = vpack.c.b16 %v913, %v907
        %v1028 = vpack.c.b16 %v914, %v908
        %v1029 = vpack.c.b16 %v915, %v909
        %v1030 = vpack.c.b16 %v916, %v910
        %v1031 = vpack.c.b16 %v917, %v911
        %v1032 = vpack.c.b16 %v924, %v918
        %v1033 = vpack.c.b16 %v925, %v919
        %v1034 = vpack.c.b16 %v926, %v920
        %v1035 = vpack.c.b16 %v927, %v921
        %v1036 = vpack.c.b16 %v928, %v922
        %v1037 = vpack.c.b16 %v929, %v923
        %v1038 = vpack.c.b16 %v936, %v930
        %v1039 = vpack.c.b16 %v937, %v931
        %v1040 = vpack.c.b16 %v938, %v932
        %v1041 = vpack.c.b16 %v939, %v933
        %v1042 = vpack.c.b16 %v940, %v934
        %v1043 = vpack.c.b16 %v941, %v935
        %v1044 = vpack.c.b16 %v948, %v942
        %v1045 = vpack.c.b16 %v949, %v943
        %v1046 = vpack.c.b16 %v950, %v944
        %v1047 = vpack.c.b16 %v951, %v945
        %v1048 = vpack.c.b16 %v952, %v946
        %v1049 = vpack.c.b16 %v953, %v947
        %1146 = vmatprep.subr.bf16.mxu0 %v955
        %1147 = vmatpush1.bf16.msra.mxu0 %v954
        %1148 = vmatprep.subr.bf16.mxu0 %v961
        %1149 = vmatpush1.bf16.msra.mxu0 %v960
        %1150 = vmatprep.subr.bf16.mxu0 %v967
        %1151 = vmatpush1.bf16.msra.mxu0 %v966
        %1152 = vmatprep.subr.bf16.mxu0 %v973
        %1153 = vmatpush1.bf16.msra.mxu0 %v972
        %1154 = vmatprep.subr.bf16.mxu0 %v979
        %1155 = vmatpush1.bf16.msra.mxu0 %v978
        %1156 = vmatprep.subr.bf16.mxu0 %v985
        %1157 = vmatpush1.bf16.msra.mxu0 %v984
        %1158 = vmatprep.subr.bf16.mxu0 %v991
        %1159 = vmatpush1.bf16.msra.mxu0 %v990
        %1160 = vmatprep.subr.bf16.mxu0 %v997
        %1161 = vmatpush1.bf16.msra.mxu0 %v996
        %1162 = vmatprep.subr.bf16.mxu0 %v1003
        %1163 = vmatpush1.bf16.msra.mxu0 %v1002
        %1164 = vmatprep.subr.bf16.mxu0 %v1009
        %1165 = vmatpush1.bf16.msra.mxu0 %v1008
        %1166 = vmatprep.subr.bf16.mxu0 %v1015
        %1167 = vmatpush1.bf16.msra.mxu0 %v1014
        %1168 = vmatprep.subr.bf16.mxu0 %v1021
        %1169 = vmatpush1.bf16.msra.mxu0 %v1020
        %1170 = vmatprep.subr.bf16.mxu0 %v1027
        %1171 = vmatpush1.bf16.msra.mxu0 %v1026
        %1172 = vmatprep.subr.bf16.mxu0 %v1033
        %1173 = vmatpush1.bf16.msra.mxu0 %v1032
        %1174 = vmatprep.subr.bf16.mxu0 %v1039
        %1175 = vmatpush1.bf16.msra.mxu0 %v1038
        %1176 = vmatprep.subr.bf16.mxu0 %v1045
        %1177 = vmatpush1.bf16.msra.mxu0 %v1044
        %1178 = vmatprep.mubr.bf16.mxu0 %v569
        %1179 = vmatmul.mubr.bf16.gmra.mrb[0].mxu0 %v568
        %v1180 = vpop.f32.mrb[0].mxu0
        %v1181 = vadd.f32 0.0, %v1180
        %v1182 = vpop.f32.mrb[0].mxu0
        %v1183 = vadd.f32 0.0, %v1182
        %v1184 = vpop.f32.mrb[0].mxu0
        %v1185 = vpop.f32.mrb[0].mxu0
        %1186 = vdwg.mxu0
        %1187 = vmatprep.subr.bf16.mxu0 %v957
        %1188 = vmatpush1.bf16.msra.mxu0 %v956
        %1189 = vmatprep.subr.bf16.mxu0 %v963
        %1190 = vmatpush1.bf16.msra.mxu0 %v962
        %1191 = vmatprep.subr.bf16.mxu0 %v969
        %1192 = vmatpush1.bf16.msra.mxu0 %v968
        %1193 = vmatprep.subr.bf16.mxu0 %v975
        %1194 = vmatpush1.bf16.msra.mxu0 %v974
        %1195 = vmatprep.subr.bf16.mxu0 %v981
        %1196 = vmatpush1.bf16.msra.mxu0 %v980
        %1197 = vmatprep.subr.bf16.mxu0 %v987
        %1198 = vmatpush1.bf16.msra.mxu0 %v986
        %1199 = vmatprep.subr.bf16.mxu0 %v993
        %1200 = vmatpush1.bf16.msra.mxu0 %v992
        %1201 = vmatprep.subr.bf16.mxu0 %v999
        %1202 = vmatpush1.bf16.msra.mxu0 %v998
        %1203 = vmatprep.subr.bf16.mxu0 %v1005
        %1204 = vmatpush1.bf16.msra.mxu0 %v1004
        %1205 = vmatprep.subr.bf16.mxu0 %v1011
        %1206 = vmatpush1.bf16.msra.mxu0 %v1010
        %1207 = vmatprep.subr.bf16.mxu0 %v1017
        %1208 = vmatpush1.bf16.msra.mxu0 %v1016
        %1209 = vmatprep.subr.bf16.mxu0 %v1023
        %1210 = vmatpush1.bf16.msra.mxu0 %v1022
        %1211 = vmatprep.subr.bf16.mxu0 %v1029
        %1212 = vmatpush1.bf16.msra.mxu0 %v1028
        %1213 = vmatprep.subr.bf16.mxu0 %v1035
        %1214 = vmatpush1.bf16.msra.mxu0 %v1034
        %1215 = vmatprep.subr.bf16.mxu0 %v1041
        %1216 = vmatpush1.bf16.msra.mxu0 %v1040
        %1217 = vmatprep.subr.bf16.mxu0 %v1047
        %1218 = vmatpush1.bf16.msra.mxu0 %v1046
        %1219 = vmatprep.mubr.bf16.mxu0 %v569
        %1220 = vmatmul.mubr.bf16.gmra.mrb[0].mxu0 %v568
        %v1221 = vpop.f32.mrb[0].mxu0
        %v1222 = vadd.f32 0.0, %v1221
        %v1223 = vpop.f32.mrb[0].mxu0
        %v1224 = vadd.f32 0.0, %v1223
        %v1225 = vpop.f32.mrb[0].mxu0
        %v1226 = vpop.f32.mrb[0].mxu0
        %1227 = vdwg.mxu0
        %1228 = vmatprep.subr.bf16.mxu0 %v959
        %1229 = vmatpush1.bf16.msra.mxu0 %v958
        %1230 = vmatprep.subr.bf16.mxu0 %v965
        %1231 = vmatpush1.bf16.msra.mxu0 %v964
        %1232 = vmatprep.subr.bf16.mxu0 %v971
        %1233 = vmatpush1.bf16.msra.mxu0 %v970
        %1234 = vmatprep.subr.bf16.mxu0 %v977
        %1235 = vmatpush1.bf16.msra.mxu0 %v976
        %1236 = vmatprep.subr.bf16.mxu0 %v983
        %1237 = vmatpush1.bf16.msra.mxu0 %v982
        %1238 = vmatprep.subr.bf16.mxu0 %v989
        %1239 = vmatpush1.bf16.msra.mxu0 %v988
        %1240 = vmatprep.subr.bf16.mxu0 %v995
        %1241 = vmatpush1.bf16.msra.mxu0 %v994
        %1242 = vmatprep.subr.bf16.mxu0 %v1001
        %1243 = vmatpush1.bf16.msra.mxu0 %v1000
        %1244 = vmatprep.subr.bf16.mxu0 %v1007
        %1245 = vmatpush1.bf16.msra.mxu0 %v1006
        %1246 = vmatprep.subr.bf16.mxu0 %v1013
        %1247 = vmatpush1.bf16.msra.mxu0 %v1012
        %1248 = vmatprep.subr.bf16.mxu0 %v1019
        %1249 = vmatpush1.bf16.msra.mxu0 %v1018
        %1250 = vmatprep.subr.bf16.mxu0 %v1025
        %1251 = vmatpush1.bf16.msra.mxu0 %v1024
        %1252 = vmatprep.subr.bf16.mxu0 %v1031
        %1253 = vmatpush1.bf16.msra.mxu0 %v1030
        %1254 = vmatprep.subr.bf16.mxu0 %v1037
        %1255 = vmatpush1.bf16.msra.mxu0 %v1036
        %1256 = vmatprep.subr.bf16.mxu0 %v1043
        %1257 = vmatpush1.bf16.msra.mxu0 %v1042
        %1258 = vmatprep.subr.bf16.mxu0 %v1049
        %1259 = vmatpush1.bf16.msra.mxu0 %v1048
        %1260 = vmatprep.mubr.bf16.mxu0 %v569
        %1261 = vmatmul.mubr.bf16.gmra.mrb[0].mxu0 %v568
        %v1262 = vpop.f32.mrb[0].mxu0
        %v1263 = vadd.f32 0.0, %v1262
        %v1264 = vpop.f32.mrb[0].mxu0
        %v1265 = vadd.f32 0.0, %v1264
        %v1266 = vpop.f32.mrb[0].mxu0
        %v1267 = vpop.f32.mrb[0].mxu0
        %1268 = vdwg.mxu0
        %v1269 = vld [vmem:[%s4] sm:$0xff]
        %v1270 = vld [vmem:[%s4 + $0x8] sm:$0xff]
        %v1271 = vld [vmem:[%s5] sm:$0xff]
        %v1272 = vld [vmem:[%s5 + $0x8] sm:$0xff]
        %v1273 = vld [vmem:[%s6] sm:$0xff]
        %v1274 = vld [vmem:[%s6 + $0x8] sm:$0xff]
        %1275 = vrot.lane.b32.xlu0 %v1181, 127
        %v1276 = vpop.permute.xlu0 %1275
        %1277 = vrot.lane.b32.xlu0 %v1183, 127
        %v1278 = vpop.permute.xlu0 %1277
        %v1279 = vlaneseq
        %v1280 = vand.u32 %v1279, 127
        %vm1281 = vcmp.lt.s32.totalorder %v1280, 127
        %v1282 = vsel %vm1281, %v1276, %v1278
        %v1283 = vsel %vm1281, %v1278, %v1276
        %1284 = vrot.lane.b32.xlu0 %v1181, 1
        %v1285 = vpop.permute.xlu0 %1284
        %1286 = vrot.lane.b32.xlu0 %v1183, 1
        %v1287 = vpop.permute.xlu0 %1286
        %vm1288 = vcmp.lt.s32.totalorder %v1280, 1
        %v1289 = vsel %vm1288, %v1285, %v1287
        %v1290 = vsel %vm1288, %v1287, %v1285
        %v1291 = vmul.f32 %v1181, %v1269
        %v1292 = vmul.f32 %v1183, %v1270
        %v1293 = vmul.f32 %v1282, %v1271
        %v1294 = vmul.f32 %v1283, %v1272
        %v1295 = vadd.f32 %v1291, %v1293
        %v1296 = vadd.f32 %v1292, %v1294
        %v1297 = vmul.f32 %v1290, %v1273
        %v1298 = vmul.f32 %v1289, %v1274
        %v1299 = vadd.f32 %v1295, %v1297
        %v1300 = vadd.f32 %v1296, %v1298
        %v1301 = vmul.f32 %v1299, 0.088388346
        %v1302 = vmul.f32 %v1300, 0.088388346
        %1303 = vrot.lane.b32.xlu0 %v1222, 127
        %v1304 = vpop.permute.xlu0 %1303
        %1305 = vrot.lane.b32.xlu0 %v1224, 127
        %v1306 = vpop.permute.xlu0 %1305
        %v1307 = vsel %vm1281, %v1304, %v1306
        %v1308 = vsel %vm1281, %v1306, %v1304
        %1309 = vrot.lane.b32.xlu0 %v1222, 1
        %v1310 = vpop.permute.xlu0 %1309
        %1311 = vrot.lane.b32.xlu0 %v1224, 1
        %v1312 = vpop.permute.xlu0 %1311
        %v1313 = vsel %vm1288, %v1310, %v1312
        %v1314 = vsel %vm1288, %v1312, %v1310
        %v1315 = vmul.f32 %v1222, %v1269
        %v1316 = vmul.f32 %v1224, %v1270
        %v1317 = vmul.f32 %v1307, %v1271
        %v1318 = vmul.f32 %v1308, %v1272
        %v1319 = vadd.f32 %v1315, %v1317
        %v1320 = vadd.f32 %v1316, %v1318
        %v1321 = vmul.f32 %v1314, %v1273
        %v1322 = vmul.f32 %v1313, %v1274
        %v1323 = vadd.f32 %v1319, %v1321
        %v1324 = vadd.f32 %v1320, %v1322
        %v1325 = vpack.c.bf16 %v1301, %v1301
        %v1326 = vpack.c.bf16 %v1302, %v1302
        %v1327 = vpack.c.bf16 %v1323, %v1323
        %v1328 = vpack.c.bf16 %v1324, %v1324
        %v1329 = vpack.c.bf16 %v1263, %v1263
        %v1330 = vpack.c.bf16 %v1265, %v1265
        %v1331 = vld [vmem:[%s7] sm:$0xff]
        %1332 = vmatprep.subr.bf16.mxu0 0
        %1333 = vmatpush1.bf16.xpose.msra.mxu0 %v1327
        %1334 = vmatprep.subr.bf16.mxu0 0
        %1335 = vmatpush1.bf16.xpose.msra.mxu0 0
        %1336 = vmatprep.subr.bf16.mxu0 0
        %1337 = vmatpush1.bf16.xpose.msra.mxu0 0
        %1338 = vmatprep.subr.bf16.mxu0 0
        %1339 = vmatpush1.bf16.xpose.msra.mxu0 0
        %1340 = vmatprep.subr.bf16.mxu0 0
        %1341 = vmatpush1.bf16.xpose.msra.mxu0 0
        %1342 = vmatprep.subr.bf16.mxu0 0
        %1343 = vmatpush1.bf16.xpose.msra.mxu0 0
        %1344 = vmatprep.subr.bf16.mxu0 0
        %1345 = vmatpush1.bf16.xpose.msra.mxu0 0
        %1346 = vmatprep.subr.bf16.mxu0 0
        %1347 = vmatpush1.bf16.xpose.msra.mxu0 0
        %1348 = vmatprep.subr.bf16.mxu0 0
        %1349 = vmatpush1.bf16.xpose.msra.mxu0 0
        %1350 = vmatprep.subr.bf16.mxu0 0
        %1351 = vmatpush1.bf16.xpose.msra.mxu0 0
        %1352 = vmatprep.subr.bf16.mxu0 0
        %1353 = vmatpush1.bf16.xpose.msra.mxu0 0
        %1354 = vmatprep.subr.bf16.mxu0 0
        %1355 = vmatpush1.bf16.xpose.msra.mxu0 0
        %1356 = vmatprep.subr.bf16.mxu0 0
        %1357 = vmatpush1.bf16.xpose.msra.mxu0 0
        %1358 = vmatprep.subr.bf16.mxu0 0
        %1359 = vmatpush1.bf16.xpose.msra.mxu0 0
        %1360 = vmatprep.subr.bf16.mxu0 0
        %1361 = vmatpush1.bf16.xpose.msra.mxu0 0
        %1362 = vmatprep.subr.bf16.mxu0 0
        %1363 = vmatpush1.bf16.xpose.msra.mxu0 0
        %1364 = vmatprep.mubr.bf16.mxu0 0
        %1365 = vmatmul.mubr.bf16.gmra.mrb[0].mxu0 %v1325
        %v1366 = vpop.f32.mrb[0].mxu0
        %v1367 = vadd.f32 %v1331, %v1366
        %v1368 = vpop.f32.mrb[0].mxu0
        %v1369 = vpop.f32.mrb[0].mxu0
        %v1370 = vpop.f32.mrb[0].mxu0
        %1371 = vdwg.mxu0
        %1372 = vmatprep.subr.bf16.mxu0 0
        %1373 = vmatpush1.bf16.xpose.msra.mxu0 %v1328
        %1374 = vmatprep.subr.bf16.mxu0 0
        %1375 = vmatpush1.bf16.xpose.msra.mxu0 0
        %1376 = vmatprep.subr.bf16.mxu0 0
        %1377 = vmatpush1.bf16.xpose.msra.mxu0 0
        %1378 = vmatprep.subr.bf16.mxu0 0
        %1379 = vmatpush1.bf16.xpose.msra.mxu0 0
        %1380 = vmatprep.subr.bf16.mxu0 0
        %1381 = vmatpush1.bf16.xpose.msra.mxu0 0
        %1382 = vmatprep.subr.bf16.mxu0 0
        %1383 = vmatpush1.bf16.xpose.msra.mxu0 0
        %1384 = vmatprep.subr.bf16.mxu0 0
        %1385 = vmatpush1.bf16.xpose.msra.mxu0 0
        %1386 = vmatprep.subr.bf16.mxu0 0
        %1387 = vmatpush1.bf16.xpose.msra.mxu0 0
        %1388 = vmatprep.subr.bf16.mxu0 0
        %1389 = vmatpush1.bf16.xpose.msra.mxu0 0
        %1390 = vmatprep.subr.bf16.mxu0 0
        %1391 = vmatpush1.bf16.xpose.msra.mxu0 0
        %1392 = vmatprep.subr.bf16.mxu0 0
        %1393 = vmatpush1.bf16.xpose.msra.mxu0 0
        %1394 = vmatprep.subr.bf16.mxu0 0
        %1395 = vmatpush1.bf16.xpose.msra.mxu0 0
        %1396 = vmatprep.subr.bf16.mxu0 0
        %1397 = vmatpush1.bf16.xpose.msra.mxu0 0
        %1398 = vmatprep.subr.bf16.mxu0 0
        %1399 = vmatpush1.bf16.xpose.msra.mxu0 0
        %1400 = vmatprep.subr.bf16.mxu0 0
        %1401 = vmatpush1.bf16.xpose.msra.mxu0 0
        %1402 = vmatprep.subr.bf16.mxu0 0
        %1403 = vmatpush1.bf16.xpose.msra.mxu0 0
        %1404 = vmatprep.mubr.bf16.mxu0 0
        %1405 = vmatmul.mubr.bf16.gmra.mrb[0].mxu0 %v1326
        %v1406 = vpop.f32.mrb[0].mxu0
        %v1407 = vadd.f32 %v1331, %v1406
        %v1408 = vpop.f32.mrb[0].mxu0
        %v1409 = vpop.f32.mrb[0].mxu0
        %v1410 = vpop.f32.mrb[0].mxu0
        %1411 = vdwg.mxu0
        %vm1412 = vcmask 64512
        %v1413 = vsel %vm1412, %v1367, -inf
        %1414 = vmax.xlane.f32.xlu0 %v1413
        %v1415 = vpop.xlane.xlu0 %1414
        %v1416 = vsel %vm1412, %v1407, -inf
        %1417 = vmax.xlane.f32.xlu0 %v1416
        %v1418 = vpop.xlane.xlu0 %1417
        %v1419 = vsub.f32 %v1367, %v1415
        %v1420 = vsub.f32 %v1407, %v1418
        %v1421 = vmul.f32 %v1419, 1.442695
        %v1422 = vpow.pop %v1421
        %v1423 = vmul.f32 %v1420, 1.442695
        %v1424 = vpow.pop %v1423
        %v1425 = vsel %vm1412, %v1422, 0.0
        %1426 = vadd.xlane.f32.xlu0 %v1425
        %v1427 = vpop.xlane.xlu0 %1426
        %v1428 = vsel %vm1412, %v1424, 0.0
        %1429 = vadd.xlane.f32.xlu0 %v1428
        %v1430 = vpop.xlane.xlu0 %1429
        %v1431 = vrcp.pop %v1427
        %v1432 = vrcp.pop %v1430
        %v1433 = vmul.f32 %v1422, %v1431
        %v1434 = vmul.f32 %v1424, %v1432
        %v1435 = vpack.c.bf16 %v1433, %v1433
        %v1436 = vpack.c.bf16 %v1434, %v1434
        %v1438 = vsel %vm1412, %v1435, 0
        %vm1440 = vcmask 1043456
        %v1442 = vsel %vm1440, %v1329, 0
        %1444 = vmatprep.subr.bf16.mxu0 0
        %1445 = vmatpush1.bf16.msra.mxu0 %v1442
        %1446 = vmatprep.subr.bf16.mxu0 0
        %1447 = vmatpush1.bf16.msra.mxu0 0
        %1448 = vmatprep.subr.bf16.mxu0 0
        %1449 = vmatpush1.bf16.msra.mxu0 0
        %1450 = vmatprep.subr.bf16.mxu0 0
        %1451 = vmatpush1.bf16.msra.mxu0 0
        %1452 = vmatprep.subr.bf16.mxu0 0
        %1453 = vmatpush1.bf16.msra.mxu0 0
        %1454 = vmatprep.subr.bf16.mxu0 0
        %1455 = vmatpush1.bf16.msra.mxu0 0
        %1456 = vmatprep.subr.bf16.mxu0 0
        %1457 = vmatpush1.bf16.msra.mxu0 0
        %1458 = vmatprep.subr.bf16.mxu0 0
        %1459 = vmatpush1.bf16.msra.mxu0 0
        %1460 = vmatprep.subr.bf16.mxu0 0
        %1461 = vmatpush1.bf16.msra.mxu0 0
        %1462 = vmatprep.subr.bf16.mxu0 0
        %1463 = vmatpush1.bf16.msra.mxu0 0
        %1464 = vmatprep.subr.bf16.mxu0 0
        %1465 = vmatpush1.bf16.msra.mxu0 0
        %1466 = vmatprep.subr.bf16.mxu0 0
        %1467 = vmatpush1.bf16.msra.mxu0 0
        %1468 = vmatprep.subr.bf16.mxu0 0
        %1469 = vmatpush1.bf16.msra.mxu0 0
        %1470 = vmatprep.subr.bf16.mxu0 0
        %1471 = vmatpush1.bf16.msra.mxu0 0
        %1472 = vmatprep.subr.bf16.mxu0 0
        %1473 = vmatpush1.bf16.msra.mxu0 0
        %1474 = vmatprep.subr.bf16.mxu0 0
        %1475 = vmatpush1.bf16.msra.mxu0 0
        %1476 = vmatprep.mubr.bf16.mxu0 0
        %1477 = vmatmul.mubr.bf16.gmra.mrb[0].mxu0 %v1438
        %v1478 = vpop.f32.mrb[0].mxu0
        %v1479 = vadd.f32 0.0, %v1478
        %v1480 = vpop.f32.mrb[0].mxu0
        %v1481 = vpop.f32.mrb[0].mxu0
        %v1482 = vpop.f32.mrb[0].mxu0
        %1483 = vdwg.mxu0
        %v1485 = vsel %vm1412, %v1436, 0
        %v1488 = vsel %vm1440, %v1330, 0
        %1490 = vmatprep.subr.bf16.mxu0 0
        %1491 = vmatpush1.bf16.msra.mxu0 %v1488
        %1492 = vmatprep.subr.bf16.mxu0 0
        %1493 = vmatpush1.bf16.msra.mxu0 0
        %1494 = vmatprep.subr.bf16.mxu0 0
        %1495 = vmatpush1.bf16.msra.mxu0 0
        %1496 = vmatprep.subr.bf16.mxu0 0
        %1497 = vmatpush1.bf16.msra.mxu0 0
        %1498 = vmatprep.subr.bf16.mxu0 0
        %1499 = vmatpush1.bf16.msra.mxu0 0
        %1500 = vmatprep.subr.bf16.mxu0 0
        %1501 = vmatpush1.bf16.msra.mxu0 0
        %1502 = vmatprep.subr.bf16.mxu0 0
        %1503 = vmatpush1.bf16.msra.mxu0 0
        %1504 = vmatprep.subr.bf16.mxu0 0
        %1505 = vmatpush1.bf16.msra.mxu0 0
        %1506 = vmatprep.subr.bf16.mxu0 0
        %1507 = vmatpush1.bf16.msra.mxu0 0
        %1508 = vmatprep.subr.bf16.mxu0 0
        %1509 = vmatpush1.bf16.msra.mxu0 0
        %1510 = vmatprep.subr.bf16.mxu0 0
        %1511 = vmatpush1.bf16.msra.mxu0 0
        %1512 = vmatprep.subr.bf16.mxu0 0
        %1513 = vmatpush1.bf16.msra.mxu0 0
        %1514 = vmatprep.subr.bf16.mxu0 0
        %1515 = vmatpush1.bf16.msra.mxu0 0
        %1516 = vmatprep.subr.bf16.mxu0 0
        %1517 = vmatpush1.bf16.msra.mxu0 0
        %1518 = vmatprep.subr.bf16.mxu0 0
        %1519 = vmatpush1.bf16.msra.mxu0 0
        %1520 = vmatprep.subr.bf16.mxu0 0
        %1521 = vmatpush1.bf16.msra.mxu0 0
        %1522 = vmatprep.mubr.bf16.mxu0 0
        %1523 = vmatmul.mubr.bf16.gmra.mrb[0].mxu0 %v1485
        %v1524 = vpop.f32.mrb[0].mxu0
        %v1525 = vadd.f32 0.0, %v1524
        %v1526 = vpop.f32.mrb[0].mxu0
        %v1527 = vpop.f32.mrb[0].mxu0
        %v1528 = vpop.f32.mrb[0].mxu0
        %1529 = vdwg.mxu0
        %v1530 = vpack.c.bf16 %v1479, %v1479
        %v1531 = vpack.c.bf16 %v1525, %v1525
        %v1532 = vld [vmem:[%s8] sm:$0xff]
        %v1533 = vld [vmem:[%s8 + $0x8] sm:$0xff]
        %v1534 = vld [vmem:[%s8 + $0x10] sm:$0xff]
        %v1535 = vld [vmem:[%s8 + $0x18] sm:$0xff]
        %v1536 = vld [vmem:[%s8 + $0x20] sm:$0xff]
        %v1537 = vld [vmem:[%s8 + $0x28] sm:$0xff]
        %v1538 = vld [vmem:[%s8 + $0x30] sm:$0xff]
        %v1539 = vld [vmem:[%s8 + $0x38] sm:$0xff]
        %v1540 = vld [vmem:[%s8 + $0x40] sm:$0xff]
        %v1541 = vld [vmem:[%s8 + $0x48] sm:$0xff]
        %v1542 = vld [vmem:[%s8 + $0x50] sm:$0xff]
        %v1543 = vld [vmem:[%s8 + $0x58] sm:$0xff]
        %v1544 = vld [vmem:[%s8 + $0x60] sm:$0xff]
        %v1545 = vld [vmem:[%s8 + $0x68] sm:$0xff]
        %v1546 = vld [vmem:[%s8 + $0x70] sm:$0xff]
        %v1547 = vld [vmem:[%s8 + $0x78] sm:$0xff]
        %v1548 = vld [vmem:[%s8 + $0x80] sm:$0xff]
        %v1549 = vld [vmem:[%s8 + $0x88] sm:$0xff]
        %v1550 = vld [vmem:[%s8 + $0x90] sm:$0xff]
        %v1551 = vld [vmem:[%s8 + $0x98] sm:$0xff]
        %v1552 = vld [vmem:[%s8 + $0xa0] sm:$0xff]
        %v1553 = vld [vmem:[%s8 + $0xa8] sm:$0xff]
        %v1554 = vld [vmem:[%s8 + $0xb0] sm:$0xff]
        %v1555 = vld [vmem:[%s8 + $0xb8] sm:$0xff]
        %v1556 = vld [vmem:[%s8 + $0xc0] sm:$0xff]
        %v1557 = vld [vmem:[%s8 + $0xc8] sm:$0xff]
        %v1558 = vld [vmem:[%s8 + $0xd0] sm:$0xff]
        %v1559 = vld [vmem:[%s8 + $0xd8] sm:$0xff]
        %v1560 = vld [vmem:[%s8 + $0xe0] sm:$0xff]
        %v1561 = vld [vmem:[%s8 + $0xe8] sm:$0xff]
        %v1562 = vld [vmem:[%s8 + $0xf0] sm:$0xff]
        %v1563 = vld [vmem:[%s8 + $0xf8] sm:$0xff]
        %v1564 = vld [vmem:[%s9] sm:$0x3]
        %v1566 = vlaneseq
        %v1567 = vshrl.u32 %v1566, 7
        %v1568 = vsub.s32 0, %v1567
        %v1569 = vrot.slane %v1564, %v1568
        %v1570 = vlaneseq
        %v1571 = vshrl.u32 %v1570, 7
        %v1572 = vsub.s32 1, %v1571
        %v1573 = vrot.slane %v1564, %v1572
        %v1608 = vunpack.c.l.b16 %v1532
        %v1609 = vunpack.c.h.b16 %v1532
        %v1610 = vunpack.c.l.b16 %v1533
        %v1611 = vunpack.c.h.b16 %v1533
        %v1612 = vunpack.c.l.b16 %v1534
        %v1613 = vunpack.c.h.b16 %v1534
        %v1614 = vunpack.c.l.b16 %v1535
        %v1615 = vunpack.c.h.b16 %v1535
        %v1616 = vunpack.c.l.b16 %v1536
        %v1617 = vunpack.c.h.b16 %v1536
        %v1618 = vunpack.c.l.b16 %v1537
        %v1619 = vunpack.c.h.b16 %v1537
        %v1620 = vunpack.c.l.b16 %v1538
        %v1621 = vunpack.c.h.b16 %v1538
        %v1622 = vunpack.c.l.b16 %v1539
        %v1623 = vunpack.c.h.b16 %v1539
        %v1624 = vunpack.c.l.b16 %v1540
        %v1625 = vunpack.c.h.b16 %v1540
        %v1626 = vunpack.c.l.b16 %v1541
        %v1627 = vunpack.c.h.b16 %v1541
        %v1628 = vunpack.c.l.b16 %v1542
        %v1629 = vunpack.c.h.b16 %v1542
        %v1630 = vunpack.c.l.b16 %v1543
        %v1631 = vunpack.c.h.b16 %v1543
        %v1632 = vunpack.c.l.b16 %v1544
        %v1633 = vunpack.c.h.b16 %v1544
        %v1634 = vunpack.c.l.b16 %v1545
        %v1635 = vunpack.c.h.b16 %v1545
        %v1636 = vunpack.c.l.b16 %v1546
        %v1637 = vunpack.c.h.b16 %v1546
        %v1638 = vunpack.c.l.b16 %v1547
        %v1639 = vunpack.c.h.b16 %v1547
        %v1640 = vunpack.c.l.b16 %v1548
        %v1641 = vunpack.c.h.b16 %v1548
        %v1642 = vunpack.c.l.b16 %v1549
        %v1643 = vunpack.c.h.b16 %v1549
        %v1644 = vunpack.c.l.b16 %v1550
        %v1645 = vunpack.c.h.b16 %v1550
        %v1646 = vunpack.c.l.b16 %v1551
        %v1647 = vunpack.c.h.b16 %v1551
        %v1648 = vunpack.c.l.b16 %v1552
        %v1649 = vunpack.c.h.b16 %v1552
        %v1650 = vunpack.c.l.b16 %v1553
        %v1651 = vunpack.c.h.b16 %v1553
        %v1652 = vunpack.c.l.b16 %v1554
        %v1653 = vunpack.c.h.b16 %v1554
        %v1654 = vunpack.c.l.b16 %v1555
        %v1655 = vunpack.c.h.b16 %v1555
        %v1656 = vunpack.c.l.b16 %v1556
        %v1657 = vunpack.c.h.b16 %v1556
        %v1658 = vunpack.c.l.b16 %v1557
        %v1659 = vunpack.c.h.b16 %v1557
        %v1660 = vunpack.c.l.b16 %v1558
        %v1661 = vunpack.c.h.b16 %v1558
        %v1662 = vunpack.c.l.b16 %v1559
        %v1663 = vunpack.c.h.b16 %v1559
        %v1664 = vunpack.c.l.b16 %v1560
        %v1665 = vunpack.c.h.b16 %v1560
        %v1666 = vunpack.c.l.b16 %v1561
        %v1667 = vunpack.c.h.b16 %v1561
        %v1668 = vunpack.c.l.b16 %v1562
        %v1669 = vunpack.c.h.b16 %v1562
        %v1670 = vunpack.c.l.b16 %v1563
        %v1671 = vunpack.c.h.b16 %v1563
        %v1672 = vpack.c.b16 %v1610, %v1608
        %v1673 = vpack.c.b16 %v1611, %v1609
        %v1674 = vpack.c.b16 %v1614, %v1612
        %v1675 = vpack.c.b16 %v1615, %v1613
        %v1676 = vpack.c.b16 %v1618, %v1616
        %v1677 = vpack.c.b16 %v1619, %v1617
        %v1678 = vpack.c.b16 %v1622, %v1620
        %v1679 = vpack.c.b16 %v1623, %v1621
        %v1680 = vpack.c.b16 %v1626, %v1624
        %v1681 = vpack.c.b16 %v1627, %v1625
        %v1682 = vpack.c.b16 %v1630, %v1628
        %v1683 = vpack.c.b16 %v1631, %v1629
        %v1684 = vpack.c.b16 %v1634, %v1632
        %v1685 = vpack.c.b16 %v1635, %v1633
        %v1686 = vpack.c.b16 %v1638, %v1636
        %v1687 = vpack.c.b16 %v1639, %v1637
        %v1688 = vpack.c.b16 %v1642, %v1640
        %v1689 = vpack.c.b16 %v1643, %v1641
        %v1690 = vpack.c.b16 %v1646, %v1644
        %v1691 = vpack.c.b16 %v1647, %v1645
        %v1692 = vpack.c.b16 %v1650, %v1648
        %v1693 = vpack.c.b16 %v1651, %v1649
        %v1694 = vpack.c.b16 %v1654, %v1652
        %v1695 = vpack.c.b16 %v1655, %v1653
        %v1696 = vpack.c.b16 %v1658, %v1656
        %v1697 = vpack.c.b16 %v1659, %v1657
        %v1698 = vpack.c.b16 %v1662, %v1660
        %v1699 = vpack.c.b16 %v1663, %v1661
        %v1700 = vpack.c.b16 %v1666, %v1664
        %v1701 = vpack.c.b16 %v1667, %v1665
        %v1702 = vpack.c.b16 %v1670, %v1668
        %v1703 = vpack.c.b16 %v1671, %v1669
        %1736 = vmatprep.subr.bf16.mxu0 %v1673
        %1737 = vmatpush1.bf16.msra.mxu0 %v1672
        %1738 = vmatprep.subr.bf16.mxu0 %v1675
        %1739 = vmatpush1.bf16.msra.mxu0 %v1674
        %1740 = vmatprep.subr.bf16.mxu0 %v1677
        %1741 = vmatpush1.bf16.msra.mxu0 %v1676
        %1742 = vmatprep.subr.bf16.mxu0 %v1679
        %1743 = vmatpush1.bf16.msra.mxu0 %v1678
        %1744 = vmatprep.subr.bf16.mxu0 %v1681
        %1745 = vmatpush1.bf16.msra.mxu0 %v1680
        %1746 = vmatprep.subr.bf16.mxu0 %v1683
        %1747 = vmatpush1.bf16.msra.mxu0 %v1682
        %1748 = vmatprep.subr.bf16.mxu0 %v1685
        %1749 = vmatpush1.bf16.msra.mxu0 %v1684
        %1750 = vmatprep.subr.bf16.mxu0 %v1687
        %1751 = vmatpush1.bf16.msra.mxu0 %v1686
        %1752 = vmatprep.subr.bf16.mxu0 %v1689
        %1753 = vmatpush1.bf16.msra.mxu0 %v1688
        %1754 = vmatprep.subr.bf16.mxu0 %v1691
        %1755 = vmatpush1.bf16.msra.mxu0 %v1690
        %1756 = vmatprep.subr.bf16.mxu0 %v1693
        %1757 = vmatpush1.bf16.msra.mxu0 %v1692
        %1758 = vmatprep.subr.bf16.mxu0 %v1695
        %1759 = vmatpush1.bf16.msra.mxu0 %v1694
        %1760 = vmatprep.subr.bf16.mxu0 %v1697
        %1761 = vmatpush1.bf16.msra.mxu0 %v1696
        %1762 = vmatprep.subr.bf16.mxu0 %v1699
        %1763 = vmatpush1.bf16.msra.mxu0 %v1698
        %1764 = vmatprep.subr.bf16.mxu0 %v1701
        %1765 = vmatpush1.bf16.msra.mxu0 %v1700
        %1766 = vmatprep.subr.bf16.mxu0 %v1703
        %1767 = vmatpush1.bf16.msra.mxu0 %v1702
        %1768 = vmatprep.mubr.bf16.mxu0 %v1531
        %1769 = vmatmul.mubr.bf16.gmra.mrb[0].mxu0 %v1530
        %v1770 = vpop.f32.mrb[0].mxu0
        %v1771 = vadd.f32 %v1569, %v1770
        %v1772 = vpop.f32.mrb[0].mxu0
        %v1773 = vadd.f32 %v1573, %v1772
        %v1774 = vpop.f32.mrb[0].mxu0
        %v1775 = vpop.f32.mrb[0].mxu0
        %1776 = vdwg.mxu0
        %v1777 = vadd.f32 %v521, %v1771
        %v1778 = vadd.f32 %v522, %v1773
        %v1779 = vld [vmem:[%s10] sm:$0x3]
        %v1780 = vld [vmem:[%s11] sm:$0x3]
        %v1781 = vadd.f32 %v1777, %v1778
        %1782 = vadd.xlane.f32.xlu0 %v1781
        %v1783 = vpop.xlane.xlu0 %1782
        %v1784 = vmul.f32 %v1783, %v528
        %v1785 = vsub.f32 %v1777, %v1784
        %v1786 = vsub.f32 %v1778, %v1784
        %v1787 = vmul.f32 %v1785, %v1785
        %v1788 = vmul.f32 %v1786, %v1786
        %v1789 = vadd.f32 %v1787, %v1788
        %1790 = vadd.xlane.f32.xlu0 %v1789
        %v1791 = vpop.xlane.xlu0 %1790
        %v1792 = vmul.f32 %v1791, %v528
        %v1793 = vadd.f32 %v1792, 1e-05
        %v1794 = vrsqrt.pop %v1793
        %v1795 = vmul.f32 %v1785, %v1794
        %v1796 = vmul.f32 %v1786, %v1794
        %v1798 = vlaneseq
        %v1799 = vshrl.u32 %v1798, 7
        %v1800 = vsub.s32 0, %v1799
        %v1801 = vrot.slane %v1779, %v1800
        %v1802 = vlaneseq
        %v1803 = vshrl.u32 %v1802, 7
        %v1804 = vsub.s32 1, %v1803
        %v1805 = vrot.slane %v1779, %v1804
        %v1808 = vmul.f32 %v1795, %v1801
        %v1809 = vmul.f32 %v1796, %v1805
        %v1811 = vlaneseq
        %v1812 = vshrl.u32 %v1811, 7
        %v1813 = vsub.s32 0, %v1812
        %v1814 = vrot.slane %v1780, %v1813
        %v1815 = vlaneseq
        %v1816 = vshrl.u32 %v1815, 7
        %v1817 = vsub.s32 1, %v1816
        %v1818 = vrot.slane %v1780, %v1817
        %v1821 = vadd.f32 %v1808, %v1814
        %v1822 = vadd.f32 %v1809, %v1818
        %v1823 = vpack.c.bf16 %v1821, %v1821
        %v1824 = vpack.c.bf16 %v1822, %v1822
        %v1825 = vld [vmem:[%s12] sm:$0xff]
        %v1826 = vld [vmem:[%s12 + $0x8] sm:$0xff]
        %v1827 = vld [vmem:[%s12 + $0x10] sm:$0xff]
        %v1828 = vld [vmem:[%s12 + $0x18] sm:$0xff]
        %v1829 = vld [vmem:[%s12 + $0x20] sm:$0xff]
        %v1830 = vld [vmem:[%s12 + $0x28] sm:$0xff]
        %v1831 = vld [vmem:[%s12 + $0x30] sm:$0xff]
        %v1832 = vld [vmem:[%s12 + $0x38] sm:$0xff]
        %v1833 = vld [vmem:[%s12 + $0x40] sm:$0xff]
        %v1834 = vld [vmem:[%s12 + $0x48] sm:$0xff]
        %v1835 = vld [vmem:[%s12 + $0x50] sm:$0xff]
        %v1836 = vld [vmem:[%s12 + $0x58] sm:$0xff]
        %v1837 = vld [vmem:[%s12 + $0x60] sm:$0xff]
        %v1838 = vld [vmem:[%s12 + $0x68] sm:$0xff]
        %v1839 = vld [vmem:[%s12 + $0x70] sm:$0xff]
        %v1840 = vld [vmem:[%s12 + $0x78] sm:$0xff]
        %v1841 = vld [vmem:[%s12 + $0x80] sm:$0xff]
        %v1842 = vld [vmem:[%s12 + $0x88] sm:$0xff]
        %v1843 = vld [vmem:[%s12 + $0x90] sm:$0xff]
        %v1844 = vld [vmem:[%s12 + $0x98] sm:$0xff]
        %v1845 = vld [vmem:[%s12 + $0xa0] sm:$0xff]
        %v1846 = vld [vmem:[%s12 + $0xa8] sm:$0xff]
        %v1847 = vld [vmem:[%s12 + $0xb0] sm:$0xff]
        %v1848 = vld [vmem:[%s12 + $0xb8] sm:$0xff]
        %v1849 = vld [vmem:[%s12 + $0xc0] sm:$0xff]
        %v1850 = vld [vmem:[%s12 + $0xc8] sm:$0xff]
        %v1851 = vld [vmem:[%s12 + $0xd0] sm:$0xff]
        %v1852 = vld [vmem:[%s12 + $0xd8] sm:$0xff]
        %v1853 = vld [vmem:[%s12 + $0xe0] sm:$0xff]
        %v1854 = vld [vmem:[%s12 + $0xe8] sm:$0xff]
        %v1855 = vld [vmem:[%s12 + $0xf0] sm:$0xff]
        %v1856 = vld [vmem:[%s12 + $0xf8] sm:$0xff]
        %v1857 = vld [vmem:[%s12 + $0x100] sm:$0xff]
        %v1858 = vld [vmem:[%s12 + $0x108] sm:$0xff]
        %v1859 = vld [vmem:[%s12 + $0x110] sm:$0xff]
        %v1860 = vld [vmem:[%s12 + $0x118] sm:$0xff]
        %v1861 = vld [vmem:[%s12 + $0x120] sm:$0xff]
        %v1862 = vld [vmem:[%s12 + $0x128] sm:$0xff]
        %v1863 = vld [vmem:[%s12 + $0x130] sm:$0xff]
        %v1864 = vld [vmem:[%s12 + $0x138] sm:$0xff]
        %v1865 = vld [vmem:[%s12 + $0x140] sm:$0xff]
        %v1866 = vld [vmem:[%s12 + $0x148] sm:$0xff]
        %v1867 = vld [vmem:[%s12 + $0x150] sm:$0xff]
        %v1868 = vld [vmem:[%s12 + $0x158] sm:$0xff]
        %v1869 = vld [vmem:[%s12 + $0x160] sm:$0xff]
        %v1870 = vld [vmem:[%s12 + $0x168] sm:$0xff]
        %v1871 = vld [vmem:[%s12 + $0x170] sm:$0xff]
        %v1872 = vld [vmem:[%s12 + $0x178] sm:$0xff]
        %v1873 = vld [vmem:[%s12 + $0x180] sm:$0xff]
        %v1874 = vld [vmem:[%s12 + $0x188] sm:$0xff]
        %v1875 = vld [vmem:[%s12 + $0x190] sm:$0xff]
        %v1876 = vld [vmem:[%s12 + $0x198] sm:$0xff]
        %v1877 = vld [vmem:[%s12 + $0x1a0] sm:$0xff]
        %v1878 = vld [vmem:[%s12 + $0x1a8] sm:$0xff]
        %v1879 = vld [vmem:[%s12 + $0x1b0] sm:$0xff]
        %v1880 = vld [vmem:[%s12 + $0x1b8] sm:$0xff]
        %v1881 = vld [vmem:[%s12 + $0x1c0] sm:$0xff]
        %v1882 = vld [vmem:[%s12 + $0x1c8] sm:$0xff]
        %v1883 = vld [vmem:[%s12 + $0x1d0] sm:$0xff]
        %v1884 = vld [vmem:[%s12 + $0x1d8] sm:$0xff]
        %v1885 = vld [vmem:[%s12 + $0x1e0] sm:$0xff]
        %v1886 = vld [vmem:[%s12 + $0x1e8] sm:$0xff]
        %v1887 = vld [vmem:[%s12 + $0x1f0] sm:$0xff]
        %v1888 = vld [vmem:[%s12 + $0x1f8] sm:$0xff]
        %v1889 = vld [vmem:[%s12 + $0x200] sm:$0xff]
        %v1890 = vld [vmem:[%s12 + $0x208] sm:$0xff]
        %v1891 = vld [vmem:[%s12 + $0x210] sm:$0xff]
        %v1892 = vld [vmem:[%s12 + $0x218] sm:$0xff]
        %v1893 = vld [vmem:[%s12 + $0x220] sm:$0xff]
        %v1894 = vld [vmem:[%s12 + $0x228] sm:$0xff]
        %v1895 = vld [vmem:[%s12 + $0x230] sm:$0xff]
        %v1896 = vld [vmem:[%s12 + $0x238] sm:$0xff]
        %v1897 = vld [vmem:[%s12 + $0x240] sm:$0xff]
        %v1898 = vld [vmem:[%s12 + $0x248] sm:$0xff]
        %v1899 = vld [vmem:[%s12 + $0x250] sm:$0xff]
        %v1900 = vld [vmem:[%s12 + $0x258] sm:$0xff]
        %v1901 = vld [vmem:[%s12 + $0x260] sm:$0xff]
        %v1902 = vld [vmem:[%s12 + $0x268] sm:$0xff]
        %v1903 = vld [vmem:[%s12 + $0x270] sm:$0xff]
        %v1904 = vld [vmem:[%s12 + $0x278] sm:$0xff]
        %v1905 = vld [vmem:[%s12 + $0x280] sm:$0xff]
        %v1906 = vld [vmem:[%s12 + $0x288] sm:$0xff]
        %v1907 = vld [vmem:[%s12 + $0x290] sm:$0xff]
        %v1908 = vld [vmem:[%s12 + $0x298] sm:$0xff]
        %v1909 = vld [vmem:[%s12 + $0x2a0] sm:$0xff]
        %v1910 = vld [vmem:[%s12 + $0x2a8] sm:$0xff]
        %v1911 = vld [vmem:[%s12 + $0x2b0] sm:$0xff]
        %v1912 = vld [vmem:[%s12 + $0x2b8] sm:$0xff]
        %v1913 = vld [vmem:[%s12 + $0x2c0] sm:$0xff]
        %v1914 = vld [vmem:[%s12 + $0x2c8] sm:$0xff]
        %v1915 = vld [vmem:[%s12 + $0x2d0] sm:$0xff]
        %v1916 = vld [vmem:[%s12 + $0x2d8] sm:$0xff]
        %v1917 = vld [vmem:[%s12 + $0x2e0] sm:$0xff]
        %v1918 = vld [vmem:[%s12 + $0x2e8] sm:$0xff]
        %v1919 = vld [vmem:[%s12 + $0x2f0] sm:$0xff]
        %v1920 = vld [vmem:[%s12 + $0x2f8] sm:$0xff]
        %v1921 = vld [vmem:[%s12 + $0x300] sm:$0xff]
        %v1922 = vld [vmem:[%s12 + $0x308] sm:$0xff]
        %v1923 = vld [vmem:[%s12 + $0x310] sm:$0xff]
        %v1924 = vld [vmem:[%s12 + $0x318] sm:$0xff]
        %v1925 = vld [vmem:[%s12 + $0x320] sm:$0xff]
        %v1926 = vld [vmem:[%s12 + $0x328] sm:$0xff]
        %v1927 = vld [vmem:[%s12 + $0x330] sm:$0xff]
        %v1928 = vld [vmem:[%s12 + $0x338] sm:$0xff]
        %v1929 = vld [vmem:[%s12 + $0x340] sm:$0xff]
        %v1930 = vld [vmem:[%s12 + $0x348] sm:$0xff]
        %v1931 = vld [vmem:[%s12 + $0x350] sm:$0xff]
        %v1932 = vld [vmem:[%s12 + $0x358] sm:$0xff]
        %v1933 = vld [vmem:[%s12 + $0x360] sm:$0xff]
        %v1934 = vld [vmem:[%s12 + $0x368] sm:$0xff]
        %v1935 = vld [vmem:[%s12 + $0x370] sm:$0xff]
        %v1936 = vld [vmem:[%s12 + $0x378] sm:$0xff]
        %v1937 = vld [vmem:[%s12 + $0x380] sm:$0xff]
        %v1938 = vld [vmem:[%s12 + $0x388] sm:$0xff]
        %v1939 = vld [vmem:[%s12 + $0x390] sm:$0xff]
        %v1940 = vld [vmem:[%s12 + $0x398] sm:$0xff]
        %v1941 = vld [vmem:[%s12 + $0x3a0] sm:$0xff]
        %v1942 = vld [vmem:[%s12 + $0x3a8] sm:$0xff]
        %v1943 = vld [vmem:[%s12 + $0x3b0] sm:$0xff]
        %v1944 = vld [vmem:[%s12 + $0x3b8] sm:$0xff]
        %v1945 = vld [vmem:[%s12 + $0x3c0] sm:$0xff]
        %v1946 = vld [vmem:[%s12 + $0x3c8] sm:$0xff]
        %v1947 = vld [vmem:[%s12 + $0x3d0] sm:$0xff]
        %v1948 = vld [vmem:[%s12 + $0x3d8] sm:$0xff]
        %v1949 = vld [vmem:[%s12 + $0x3e0] sm:$0xff]
        %v1950 = vld [vmem:[%s12 + $0x3e8] sm:$0xff]
        %v1951 = vld [vmem:[%s12 + $0x3f0] sm:$0xff]
        %v1952 = vld [vmem:[%s12 + $0x3f8] sm:$0xff]
        %v1953 = vld [vmem:[%s13] sm:$0xff]
        %v1955 = vlaneseq
        %v1956 = vshrl.u32 %v1955, 7
        %v1957 = vsub.s32 0, %v1956
        %v1958 = vrot.slane %v1953, %v1957
        %v1959 = vlaneseq
        %v1960 = vshrl.u32 %v1959, 7
        %v1961 = vsub.s32 1, %v1960
        %v1962 = vrot.slane %v1953, %v1961
        %v1963 = vlaneseq
        %v1964 = vshrl.u32 %v1963, 7
        %v1965 = vsub.s32 2, %v1964
        %v1966 = vrot.slane %v1953, %v1965
        %v1967 = vlaneseq
        %v1968 = vshrl.u32 %v1967, 7
        %v1969 = vsub.s32 3, %v1968
        %v1970 = vrot.slane %v1953, %v1969
        %v1971 = vlaneseq
        %v1972 = vshrl.u32 %v1971, 7
        %v1973 = vsub.s32 4, %v1972
        %v1974 = vrot.slane %v1953, %v1973
        %v1975 = vlaneseq
        %v1976 = vshrl.u32 %v1975, 7
        %v1977 = vsub.s32 5, %v1976
        %v1978 = vrot.slane %v1953, %v1977
        %v1979 = vlaneseq
        %v1980 = vshrl.u32 %v1979, 7
        %v1981 = vsub.s32 6, %v1980
        %v1982 = vrot.slane %v1953, %v1981
        %v1983 = vlaneseq
        %v1984 = vshrl.u32 %v1983, 7
        %v1985 = vsub.s32 7, %v1984
        %v1986 = vrot.slane %v1953, %v1985
        %v2123 = vunpack.c.l.b16 %v1825
        %v2124 = vunpack.c.h.b16 %v1825
        %v2125 = vunpack.c.l.b16 %v1826
        %v2126 = vunpack.c.h.b16 %v1826
        %v2127 = vunpack.c.l.b16 %v1827
        %v2128 = vunpack.c.h.b16 %v1827
        %v2129 = vunpack.c.l.b16 %v1828
        %v2130 = vunpack.c.h.b16 %v1828
        %v2131 = vunpack.c.l.b16 %v1829
        %v2132 = vunpack.c.h.b16 %v1829
        %v2133 = vunpack.c.l.b16 %v1830
        %v2134 = vunpack.c.h.b16 %v1830
        %v2135 = vunpack.c.l.b16 %v1831
        %v2136 = vunpack.c.h.b16 %v1831
        %v2137 = vunpack.c.l.b16 %v1832
        %v2138 = vunpack.c.h.b16 %v1832
        %v2139 = vunpack.c.l.b16 %v1833
        %v2140 = vunpack.c.h.b16 %v1833
        %v2141 = vunpack.c.l.b16 %v1834
        %v2142 = vunpack.c.h.b16 %v1834
        %v2143 = vunpack.c.l.b16 %v1835
        %v2144 = vunpack.c.h.b16 %v1835
        %v2145 = vunpack.c.l.b16 %v1836
        %v2146 = vunpack.c.h.b16 %v1836
        %v2147 = vunpack.c.l.b16 %v1837
        %v2148 = vunpack.c.h.b16 %v1837
        %v2149 = vunpack.c.l.b16 %v1838
        %v2150 = vunpack.c.h.b16 %v1838
        %v2151 = vunpack.c.l.b16 %v1839
        %v2152 = vunpack.c.h.b16 %v1839
        %v2153 = vunpack.c.l.b16 %v1840
        %v2154 = vunpack.c.h.b16 %v1840
        %v2155 = vunpack.c.l.b16 %v1841
        %v2156 = vunpack.c.h.b16 %v1841
        %v2157 = vunpack.c.l.b16 %v1842
        %v2158 = vunpack.c.h.b16 %v1842
        %v2159 = vunpack.c.l.b16 %v1843
        %v2160 = vunpack.c.h.b16 %v1843
        %v2161 = vunpack.c.l.b16 %v1844
        %v2162 = vunpack.c.h.b16 %v1844
        %v2163 = vunpack.c.l.b16 %v1845
        %v2164 = vunpack.c.h.b16 %v1845
        %v2165 = vunpack.c.l.b16 %v1846
        %v2166 = vunpack.c.h.b16 %v1846
        %v2167 = vunpack.c.l.b16 %v1847
        %v2168 = vunpack.c.h.b16 %v1847
        %v2169 = vunpack.c.l.b16 %v1848
        %v2170 = vunpack.c.h.b16 %v1848
        %v2171 = vunpack.c.l.b16 %v1849
        %v2172 = vunpack.c.h.b16 %v1849
        %v2173 = vunpack.c.l.b16 %v1850
        %v2174 = vunpack.c.h.b16 %v1850
        %v2175 = vunpack.c.l.b16 %v1851
        %v2176 = vunpack.c.h.b16 %v1851
        %v2177 = vunpack.c.l.b16 %v1852
        %v2178 = vunpack.c.h.b16 %v1852
        %v2179 = vunpack.c.l.b16 %v1853
        %v2180 = vunpack.c.h.b16 %v1853
        %v2181 = vunpack.c.l.b16 %v1854
        %v2182 = vunpack.c.h.b16 %v1854
        %v2183 = vunpack.c.l.b16 %v1855
        %v2184 = vunpack.c.h.b16 %v1855
        %v2185 = vunpack.c.l.b16 %v1856
        %v2186 = vunpack.c.h.b16 %v1856
        %v2187 = vunpack.c.l.b16 %v1857
        %v2188 = vunpack.c.h.b16 %v1857
        %v2189 = vunpack.c.l.b16 %v1858
        %v2190 = vunpack.c.h.b16 %v1858
        %v2191 = vunpack.c.l.b16 %v1859
        %v2192 = vunpack.c.h.b16 %v1859
        %v2193 = vunpack.c.l.b16 %v1860
        %v2194 = vunpack.c.h.b16 %v1860
        %v2195 = vunpack.c.l.b16 %v1861
        %v2196 = vunpack.c.h.b16 %v1861
        %v2197 = vunpack.c.l.b16 %v1862
        %v2198 = vunpack.c.h.b16 %v1862
        %v2199 = vunpack.c.l.b16 %v1863
        %v2200 = vunpack.c.h.b16 %v1863
        %v2201 = vunpack.c.l.b16 %v1864
        %v2202 = vunpack.c.h.b16 %v1864
        %v2203 = vunpack.c.l.b16 %v1865
        %v2204 = vunpack.c.h.b16 %v1865
        %v2205 = vunpack.c.l.b16 %v1866
        %v2206 = vunpack.c.h.b16 %v1866
        %v2207 = vunpack.c.l.b16 %v1867
        %v2208 = vunpack.c.h.b16 %v1867
        %v2209 = vunpack.c.l.b16 %v1868
        %v2210 = vunpack.c.h.b16 %v1868
        %v2211 = vunpack.c.l.b16 %v1869
        %v2212 = vunpack.c.h.b16 %v1869
        %v2213 = vunpack.c.l.b16 %v1870
        %v2214 = vunpack.c.h.b16 %v1870
        %v2215 = vunpack.c.l.b16 %v1871
        %v2216 = vunpack.c.h.b16 %v1871
        %v2217 = vunpack.c.l.b16 %v1872
        %v2218 = vunpack.c.h.b16 %v1872
        %v2219 = vunpack.c.l.b16 %v1873
        %v2220 = vunpack.c.h.b16 %v1873
        %v2221 = vunpack.c.l.b16 %v1874
        %v2222 = vunpack.c.h.b16 %v1874
        %v2223 = vunpack.c.l.b16 %v1875
        %v2224 = vunpack.c.h.b16 %v1875
        %v2225 = vunpack.c.l.b16 %v1876
        %v2226 = vunpack.c.h.b16 %v1876
        %v2227 = vunpack.c.l.b16 %v1877
        %v2228 = vunpack.c.h.b16 %v1877
        %v2229 = vunpack.c.l.b16 %v1878
        %v2230 = vunpack.c.h.b16 %v1878
        %v2231 = vunpack.c.l.b16 %v1879
        %v2232 = vunpack.c.h.b16 %v1879
        %v2233 = vunpack.c.l.b16 %v1880
        %v2234 = vunpack.c.h.b16 %v1880
        %v2235 = vunpack.c.l.b16 %v1881
        %v2236 = vunpack.c.h.b16 %v1881
        %v2237 = vunpack.c.l.b16 %v1882
        %v2238 = vunpack.c.h.b16 %v1882
        %v2239 = vunpack.c.l.b16 %v1883
        %v2240 = vunpack.c.h.b16 %v1883
        %v2241 = vunpack.c.l.b16 %v1884
        %v2242 = vunpack.c.h.b16 %v1884
        %v2243 = vunpack.c.l.b16 %v1885
        %v2244 = vunpack.c.h.b16 %v1885
        %v2245 = vunpack.c.l.b16 %v1886
        %v2246 = vunpack.c.h.b16 %v1886
        %v2247 = vunpack.c.l.b16 %v1887
        %v2248 = vunpack.c.h.b16 %v1887
        %v2249 = vunpack.c.l.b16 %v1888
        %v2250 = vunpack.c.h.b16 %v1888
        %v2251 = vunpack.c.l.b16 %v1889
        %v2252 = vunpack.c.h.b16 %v1889
        %v2253 = vunpack.c.l.b16 %v1890
        %v2254 = vunpack.c.h.b16 %v1890
        %v2255 = vunpack.c.l.b16 %v1891
        %v2256 = vunpack.c.h.b16 %v1891
        %v2257 = vunpack.c.l.b16 %v1892
        %v2258 = vunpack.c.h.b16 %v1892
        %v2259 = vunpack.c.l.b16 %v1893
        %v2260 = vunpack.c.h.b16 %v1893
        %v2261 = vunpack.c.l.b16 %v1894
        %v2262 = vunpack.c.h.b16 %v1894
        %v2263 = vunpack.c.l.b16 %v1895
        %v2264 = vunpack.c.h.b16 %v1895
        %v2265 = vunpack.c.l.b16 %v1896
        %v2266 = vunpack.c.h.b16 %v1896
        %v2267 = vunpack.c.l.b16 %v1897
        %v2268 = vunpack.c.h.b16 %v1897
        %v2269 = vunpack.c.l.b16 %v1898
        %v2270 = vunpack.c.h.b16 %v1898
        %v2271 = vunpack.c.l.b16 %v1899
        %v2272 = vunpack.c.h.b16 %v1899
        %v2273 = vunpack.c.l.b16 %v1900
        %v2274 = vunpack.c.h.b16 %v1900
        %v2275 = vunpack.c.l.b16 %v1901
        %v2276 = vunpack.c.h.b16 %v1901
        %v2277 = vunpack.c.l.b16 %v1902
        %v2278 = vunpack.c.h.b16 %v1902
        %v2279 = vunpack.c.l.b16 %v1903
        %v2280 = vunpack.c.h.b16 %v1903
        %v2281 = vunpack.c.l.b16 %v1904
        %v2282 = vunpack.c.h.b16 %v1904
        %v2283 = vunpack.c.l.b16 %v1905
        %v2284 = vunpack.c.h.b16 %v1905
        %v2285 = vunpack.c.l.b16 %v1906
        %v2286 = vunpack.c.h.b16 %v1906
        %v2287 = vunpack.c.l.b16 %v1907
        %v2288 = vunpack.c.h.b16 %v1907
        %v2289 = vunpack.c.l.b16 %v1908
        %v2290 = vunpack.c.h.b16 %v1908
        %v2291 = vunpack.c.l.b16 %v1909
        %v2292 = vunpack.c.h.b16 %v1909
        %v2293 = vunpack.c.l.b16 %v1910
        %v2294 = vunpack.c.h.b16 %v1910
        %v2295 = vunpack.c.l.b16 %v1911
        %v2296 = vunpack.c.h.b16 %v1911
        %v2297 = vunpack.c.l.b16 %v1912
        %v2298 = vunpack.c.h.b16 %v1912
        %v2299 = vunpack.c.l.b16 %v1913
        %v2300 = vunpack.c.h.b16 %v1913
        %v2301 = vunpack.c.l.b16 %v1914
        %v2302 = vunpack.c.h.b16 %v1914
        %v2303 = vunpack.c.l.b16 %v1915
        %v2304 = vunpack.c.h.b16 %v1915
        %v2305 = vunpack.c.l.b16 %v1916
        %v2306 = vunpack.c.h.b16 %v1916
        %v2307 = vunpack.c.l.b16 %v1917
        %v2308 = vunpack.c.h.b16 %v1917
        %v2309 = vunpack.c.l.b16 %v1918
        %v2310 = vunpack.c.h.b16 %v1918
        %v2311 = vunpack.c.l.b16 %v1919
        %v2312 = vunpack.c.h.b16 %v1919
        %v2313 = vunpack.c.l.b16 %v1920
        %v2314 = vunpack.c.h.b16 %v1920
        %v2315 = vunpack.c.l.b16 %v1921
        %v2316 = vunpack.c.h.b16 %v1921
        %v2317 = vunpack.c.l.b16 %v1922
        %v2318 = vunpack.c.h.b16 %v1922
        %v2319 = vunpack.c.l.b16 %v1923
        %v2320 = vunpack.c.h.b16 %v1923
        %v2321 = vunpack.c.l.b16 %v1924
        %v2322 = vunpack.c.h.b16 %v1924
        %v2323 = vunpack.c.l.b16 %v1925
        %v2324 = vunpack.c.h.b16 %v1925
        %v2325 = vunpack.c.l.b16 %v1926
        %v2326 = vunpack.c.h.b16 %v1926
        %v2327 = vunpack.c.l.b16 %v1927
        %v2328 = vunpack.c.h.b16 %v1927
        %v2329 = vunpack.c.l.b16 %v1928
        %v2330 = vunpack.c.h.b16 %v1928
        %v2331 = vunpack.c.l.b16 %v1929
        %v2332 = vunpack.c.h.b16 %v1929
        %v2333 = vunpack.c.l.b16 %v1930
        %v2334 = vunpack.c.h.b16 %v1930
        %v2335 = vunpack.c.l.b16 %v1931
        %v2336 = vunpack.c.h.b16 %v1931
        %v2337 = vunpack.c.l.b16 %v1932
        %v2338 = vunpack.c.h.b16 %v1932
        %v2339 = vunpack.c.l.b16 %v1933
        %v2340 = vunpack.c.h.b16 %v1933
        %v2341 = vunpack.c.l.b16 %v1934
        %v2342 = vunpack.c.h.b16 %v1934
        %v2343 = vunpack.c.l.b16 %v1935
        %v2344 = vunpack.c.h.b16 %v1935
        %v2345 = vunpack.c.l.b16 %v1936
        %v2346 = vunpack.c.h.b16 %v1936
        %v2347 = vunpack.c.l.b16 %v1937
        %v2348 = vunpack.c.h.b16 %v1937
        %v2349 = vunpack.c.l.b16 %v1938
        %v2350 = vunpack.c.h.b16 %v1938
        %v2351 = vunpack.c.l.b16 %v1939
        %v2352 = vunpack.c.h.b16 %v1939
        %v2353 = vunpack.c.l.b16 %v1940
        %v2354 = vunpack.c.h.b16 %v1940
        %v2355 = vunpack.c.l.b16 %v1941
        %v2356 = vunpack.c.h.b16 %v1941
        %v2357 = vunpack.c.l.b16 %v1942
        %v2358 = vunpack.c.h.b16 %v1942
        %v2359 = vunpack.c.l.b16 %v1943
        %v2360 = vunpack.c.h.b16 %v1943
        %v2361 = vunpack.c.l.b16 %v1944
        %v2362 = vunpack.c.h.b16 %v1944
        %v2363 = vunpack.c.l.b16 %v1945
        %v2364 = vunpack.c.h.b16 %v1945
        %v2365 = vunpack.c.l.b16 %v1946
        %v2366 = vunpack.c.h.b16 %v1946
        %v2367 = vunpack.c.l.b16 %v1947
        %v2368 = vunpack.c.h.b16 %v1947
        %v2369 = vunpack.c.l.b16 %v1948
        %v2370 = vunpack.c.h.b16 %v1948
        %v2371 = vunpack.c.l.b16 %v1949
        %v2372 = vunpack.c.h.b16 %v1949
        %v2373 = vunpack.c.l.b16 %v1950
        %v2374 = vunpack.c.h.b16 %v1950
        %v2375 = vunpack.c.l.b16 %v1951
        %v2376 = vunpack.c.h.b16 %v1951
        %v2377 = vunpack.c.l.b16 %v1952
        %v2378 = vunpack.c.h.b16 %v1952
        %v2379 = vpack.c.b16 %v2131, %v2123
        %v2380 = vpack.c.b16 %v2132, %v2124
        %v2381 = vpack.c.b16 %v2133, %v2125
        %v2382 = vpack.c.b16 %v2134, %v2126
        %v2383 = vpack.c.b16 %v2135, %v2127
        %v2384 = vpack.c.b16 %v2136, %v2128
        %v2385 = vpack.c.b16 %v2137, %v2129
        %v2386 = vpack.c.b16 %v2138, %v2130
        %v2387 = vpack.c.b16 %v2147, %v2139
        %v2388 = vpack.c.b16 %v2148, %v2140
        %v2389 = vpack.c.b16 %v2149, %v2141
        %v2390 = vpack.c.b16 %v2150, %v2142
        %v2391 = vpack.c.b16 %v2151, %v2143
        %v2392 = vpack.c.b16 %v2152, %v2144
        %v2393 = vpack.c.b16 %v2153, %v2145
        %v2394 = vpack.c.b16 %v2154, %v2146
        %v2395 = vpack.c.b16 %v2163, %v2155
        %v2396 = vpack.c.b16 %v2164, %v2156
        %v2397 = vpack.c.b16 %v2165, %v2157
        %v2398 = vpack.c.b16 %v2166, %v2158
        %v2399 = vpack.c.b16 %v2167, %v2159
        %v2400 = vpack.c.b16 %v2168, %v2160
        %v2401 = vpack.c.b16 %v2169, %v2161
        %v2402 = vpack.c.b16 %v2170, %v2162
        %v2403 = vpack.c.b16 %v2179, %v2171
        %v2404 = vpack.c.b16 %v2180, %v2172
        %v2405 = vpack.c.b16 %v2181, %v2173
        %v2406 = vpack.c.b16 %v2182, %v2174
        %v2407 = vpack.c.b16 %v2183, %v2175
        %v2408 = vpack.c.b16 %v2184, %v2176
        %v2409 = vpack.c.b16 %v2185, %v2177
        %v2410 = vpack.c.b16 %v2186, %v2178
        %v2411 = vpack.c.b16 %v2195, %v2187
        %v2412 = vpack.c.b16 %v2196, %v2188
        %v2413 = vpack.c.b16 %v2197, %v2189
        %v2414 = vpack.c.b16 %v2198, %v2190
        %v2415 = vpack.c.b16 %v2199, %v2191
        %v2416 = vpack.c.b16 %v2200, %v2192
        %v2417 = vpack.c.b16 %v2201, %v2193
        %v2418 = vpack.c.b16 %v2202, %v2194
        %v2419 = vpack.c.b16 %v2211, %v2203
        %v2420 = vpack.c.b16 %v2212, %v2204
        %v2421 = vpack.c.b16 %v2213, %v2205
        %v2422 = vpack.c.b16 %v2214, %v2206
        %v2423 = vpack.c.b16 %v2215, %v2207
        %v2424 = vpack.c.b16 %v2216, %v2208
        %v2425 = vpack.c.b16 %v2217, %v2209
        %v2426 = vpack.c.b16 %v2218, %v2210
        %v2427 = vpack.c.b16 %v2227, %v2219
        %v2428 = vpack.c.b16 %v2228, %v2220
        %v2429 = vpack.c.b16 %v2229, %v2221
        %v2430 = vpack.c.b16 %v2230, %v2222
        %v2431 = vpack.c.b16 %v2231, %v2223
        %v2432 = vpack.c.b16 %v2232, %v2224
        %v2433 = vpack.c.b16 %v2233, %v2225
        %v2434 = vpack.c.b16 %v2234, %v2226
        %v2435 = vpack.c.b16 %v2243, %v2235
        %v2436 = vpack.c.b16 %v2244, %v2236
        %v2437 = vpack.c.b16 %v2245, %v2237
        %v2438 = vpack.c.b16 %v2246, %v2238
        %v2439 = vpack.c.b16 %v2247, %v2239
        %v2440 = vpack.c.b16 %v2248, %v2240
        %v2441 = vpack.c.b16 %v2249, %v2241
        %v2442 = vpack.c.b16 %v2250, %v2242
        %v2443 = vpack.c.b16 %v2259, %v2251
        %v2444 = vpack.c.b16 %v2260, %v2252
        %v2445 = vpack.c.b16 %v2261, %v2253
        %v2446 = vpack.c.b16 %v2262, %v2254
        %v2447 = vpack.c.b16 %v2263, %v2255
        %v2448 = vpack.c.b16 %v2264, %v2256
        %v2449 = vpack.c.b16 %v2265, %v2257
        %v2450 = vpack.c.b16 %v2266, %v2258
        %v2451 = vpack.c.b16 %v2275, %v2267
        %v2452 = vpack.c.b16 %v2276, %v2268
        %v2453 = vpack.c.b16 %v2277, %v2269
        %v2454 = vpack.c.b16 %v2278, %v2270
        %v2455 = vpack.c.b16 %v2279, %v2271
        %v2456 = vpack.c.b16 %v2280, %v2272
        %v2457 = vpack.c.b16 %v2281, %v2273
        %v2458 = vpack.c.b16 %v2282, %v2274
        %v2459 = vpack.c.b16 %v2291, %v2283
        %v2460 = vpack.c.b16 %v2292, %v2284
        %v2461 = vpack.c.b16 %v2293, %v2285
        %v2462 = vpack.c.b16 %v2294, %v2286
        %v2463 = vpack.c.b16 %v2295, %v2287
        %v2464 = vpack.c.b16 %v2296, %v2288
        %v2465 = vpack.c.b16 %v2297, %v2289
        %v2466 = vpack.c.b16 %v2298, %v2290
        %v2467 = vpack.c.b16 %v2307, %v2299
        %v2468 = vpack.c.b16 %v2308, %v2300
        %v2469 = vpack.c.b16 %v2309, %v2301
        %v2470 = vpack.c.b16 %v2310, %v2302
        %v2471 = vpack.c.b16 %v2311, %v2303
        %v2472 = vpack.c.b16 %v2312, %v2304
        %v2473 = vpack.c.b16 %v2313, %v2305
        %v2474 = vpack.c.b16 %v2314, %v2306
        %v2475 = vpack.c.b16 %v2323, %v2315
        %v2476 = vpack.c.b16 %v2324, %v2316
        %v2477 = vpack.c.b16 %v2325, %v2317
        %v2478 = vpack.c.b16 %v2326, %v2318
        %v2479 = vpack.c.b16 %v2327, %v2319
        %v2480 = vpack.c.b16 %v2328, %v2320
        %v2481 = vpack.c.b16 %v2329, %v2321
        %v2482 = vpack.c.b16 %v2330, %v2322
        %v2483 = vpack.c.b16 %v2339, %v2331
        %v2484 = vpack.c.b16 %v2340, %v2332
        %v2485 = vpack.c.b16 %v2341, %v2333
        %v2486 = vpack.c.b16 %v2342, %v2334
        %v2487 = vpack.c.b16 %v2343, %v2335
        %v2488 = vpack.c.b16 %v2344, %v2336
        %v2489 = vpack.c.b16 %v2345, %v2337
        %v2490 = vpack.c.b16 %v2346, %v2338
        %v2491 = vpack.c.b16 %v2355, %v2347
        %v2492 = vpack.c.b16 %v2356, %v2348
        %v2493 = vpack.c.b16 %v2357, %v2349
        %v2494 = vpack.c.b16 %v2358, %v2350
        %v2495 = vpack.c.b16 %v2359, %v2351
        %v2496 = vpack.c.b16 %v2360, %v2352
        %v2497 = vpack.c.b16 %v2361, %v2353
        %v2498 = vpack.c.b16 %v2362, %v2354
        %v2499 = vpack.c.b16 %v2371, %v2363
        %v2500 = vpack.c.b16 %v2372, %v2364
        %v2501 = vpack.c.b16 %v2373, %v2365
        %v2502 = vpack.c.b16 %v2374, %v2366
        %v2503 = vpack.c.b16 %v2375, %v2367
        %v2504 = vpack.c.b16 %v2376, %v2368
        %v2505 = vpack.c.b16 %v2377, %v2369
        %v2506 = vpack.c.b16 %v2378, %v2370
        %2635 = vmatprep.subr.bf16.mxu0 %v2380
        %2636 = vmatpush1.bf16.msra.mxu0 %v2379
        %2637 = vmatprep.subr.bf16.mxu0 %v2388
        %2638 = vmatpush1.bf16.msra.mxu0 %v2387
        %2639 = vmatprep.subr.bf16.mxu0 %v2396
        %2640 = vmatpush1.bf16.msra.mxu0 %v2395
        %2641 = vmatprep.subr.bf16.mxu0 %v2404
        %2642 = vmatpush1.bf16.msra.mxu0 %v2403
        %2643 = vmatprep.subr.bf16.mxu0 %v2412
        %2644 = vmatpush1.bf16.msra.mxu0 %v2411
        %2645 = vmatprep.subr.bf16.mxu0 %v2420
        %2646 = vmatpush1.bf16.msra.mxu0 %v2419
        %2647 = vmatprep.subr.bf16.mxu0 %v2428
        %2648 = vmatpush1.bf16.msra.mxu0 %v2427
        %2649 = vmatprep.subr.bf16.mxu0 %v2436
        %2650 = vmatpush1.bf16.msra.mxu0 %v2435
        %2651 = vmatprep.subr.bf16.mxu0 %v2444
        %2652 = vmatpush1.bf16.msra.mxu0 %v2443
        %2653 = vmatprep.subr.bf16.mxu0 %v2452
        %2654 = vmatpush1.bf16.msra.mxu0 %v2451
        %2655 = vmatprep.subr.bf16.mxu0 %v2460
        %2656 = vmatpush1.bf16.msra.mxu0 %v2459
        %2657 = vmatprep.subr.bf16.mxu0 %v2468
        %2658 = vmatpush1.bf16.msra.mxu0 %v2467
        %2659 = vmatprep.subr.bf16.mxu0 %v2476
        %2660 = vmatpush1.bf16.msra.mxu0 %v2475
        %2661 = vmatprep.subr.bf16.mxu0 %v2484
        %2662 = vmatpush1.bf16.msra.mxu0 %v2483
        %2663 = vmatprep.subr.bf16.mxu0 %v2492
        %2664 = vmatpush1.bf16.msra.mxu0 %v2491
        %2665 = vmatprep.subr.bf16.mxu0 %v2500
        %2666 = vmatpush1.bf16.msra.mxu0 %v2499
        %2667 = vmatprep.mubr.bf16.mxu0 %v1824
        %2668 = vmatmul.mubr.bf16.gmra.mrb[0].mxu0 %v1823
        %v2669 = vpop.f32.mrb[0].mxu0
        %v2670 = vadd.f32 %v1958, %v2669
        %v2671 = vpop.f32.mrb[0].mxu0
        %v2672 = vadd.f32 %v1962, %v2671
        %v2673 = vpop.f32.mrb[0].mxu0
        %v2674 = vpop.f32.mrb[0].mxu0
        %2675 = vdwg.mxu0
        %2676 = vmatprep.subr.bf16.mxu0 %v2382
        %2677 = vmatpush1.bf16.msra.mxu0 %v2381
        %2678 = vmatprep.subr.bf16.mxu0 %v2390
        %2679 = vmatpush1.bf16.msra.mxu0 %v2389
        %2680 = vmatprep.subr.bf16.mxu0 %v2398
        %2681 = vmatpush1.bf16.msra.mxu0 %v2397
        %2682 = vmatprep.subr.bf16.mxu0 %v2406
        %2683 = vmatpush1.bf16.msra.mxu0 %v2405
        %2684 = vmatprep.subr.bf16.mxu0 %v2414
        %2685 = vmatpush1.bf16.msra.mxu0 %v2413
        %2686 = vmatprep.subr.bf16.mxu0 %v2422
        %2687 = vmatpush1.bf16.msra.mxu0 %v2421
        %2688 = vmatprep.subr.bf16.mxu0 %v2430
        %2689 = vmatpush1.bf16.msra.mxu0 %v2429
        %2690 = vmatprep.subr.bf16.mxu0 %v2438
        %2691 = vmatpush1.bf16.msra.mxu0 %v2437
        %2692 = vmatprep.subr.bf16.mxu0 %v2446
        %2693 = vmatpush1.bf16.msra.mxu0 %v2445
        %2694 = vmatprep.subr.bf16.mxu0 %v2454
        %2695 = vmatpush1.bf16.msra.mxu0 %v2453
        %2696 = vmatprep.subr.bf16.mxu0 %v2462
        %2697 = vmatpush1.bf16.msra.mxu0 %v2461
        %2698 = vmatprep.subr.bf16.mxu0 %v2470
        %2699 = vmatpush1.bf16.msra.mxu0 %v2469
        %2700 = vmatprep.subr.bf16.mxu0 %v2478
        %2701 = vmatpush1.bf16.msra.mxu0 %v2477
        %2702 = vmatprep.subr.bf16.mxu0 %v2486
        %2703 = vmatpush1.bf16.msra.mxu0 %v2485
        %2704 = vmatprep.subr.bf16.mxu0 %v2494
        %2705 = vmatpush1.bf16.msra.mxu0 %v2493
        %2706 = vmatprep.subr.bf16.mxu0 %v2502
        %2707 = vmatpush1.bf16.msra.mxu0 %v2501
        %2708 = vmatprep.mubr.bf16.mxu0 %v1824
        %2709 = vmatmul.mubr.bf16.gmra.mrb[0].mxu0 %v1823
        %v2710 = vpop.f32.mrb[0].mxu0
        %v2711 = vadd.f32 %v1966, %v2710
        %v2712 = vpop.f32.mrb[0].mxu0
        %v2713 = vadd.f32 %v1970, %v2712
        %v2714 = vpop.f32.mrb[0].mxu0
        %v2715 = vpop.f32.mrb[0].mxu0
        %2716 = vdwg.mxu0
        %2717 = vmatprep.subr.bf16.mxu0 %v2384
        %2718 = vmatpush1.bf16.msra.mxu0 %v2383
        %2719 = vmatprep.subr.bf16.mxu0 %v2392
        %2720 = vmatpush1.bf16.msra.mxu0 %v2391
        %2721 = vmatprep.subr.bf16.mxu0 %v2400
        %2722 = vmatpush1.bf16.msra.mxu0 %v2399
        %2723 = vmatprep.subr.bf16.mxu0 %v2408
        %2724 = vmatpush1.bf16.msra.mxu0 %v2407
        %2725 = vmatprep.subr.bf16.mxu0 %v2416
        %2726 = vmatpush1.bf16.msra.mxu0 %v2415
        %2727 = vmatprep.subr.bf16.mxu0 %v2424
        %2728 = vmatpush1.bf16.msra.mxu0 %v2423
        %2729 = vmatprep.subr.bf16.mxu0 %v2432
        %2730 = vmatpush1.bf16.msra.mxu0 %v2431
        %2731 = vmatprep.subr.bf16.mxu0 %v2440
        %2732 = vmatpush1.bf16.msra.mxu0 %v2439
        %2733 = vmatprep.subr.bf16.mxu0 %v2448
        %2734 = vmatpush1.bf16.msra.mxu0 %v2447
        %2735 = vmatprep.subr.bf16.mxu0 %v2456
        %2736 = vmatpush1.bf16.msra.mxu0 %v2455
        %2737 = vmatprep.subr.bf16.mxu0 %v2464
        %2738 = vmatpush1.bf16.msra.mxu0 %v2463
        %2739 = vmatprep.subr.bf16.mxu0 %v2472
        %2740 = vmatpush1.bf16.msra.mxu0 %v2471
        %2741 = vmatprep.subr.bf16.mxu0 %v2480
        %2742 = vmatpush1.bf16.msra.mxu0 %v2479
        %2743 = vmatprep.subr.bf16.mxu0 %v2488
        %2744 = vmatpush1.bf16.msra.mxu0 %v2487
        %2745 = vmatprep.subr.bf16.mxu0 %v2496
        %2746 = vmatpush1.bf16.msra.mxu0 %v2495
        %2747 = vmatprep.subr.bf16.mxu0 %v2504
        %2748 = vmatpush1.bf16.msra.mxu0 %v2503
        %2749 = vmatprep.mubr.bf16.mxu0 %v1824
        %2750 = vmatmul.mubr.bf16.gmra.mrb[0].mxu0 %v1823
        %v2751 = vpop.f32.mrb[0].mxu0
        %v2752 = vadd.f32 %v1974, %v2751
        %v2753 = vpop.f32.mrb[0].mxu0
        %v2754 = vadd.f32 %v1978, %v2753
        %v2755 = vpop.f32.mrb[0].mxu0
        %v2756 = vpop.f32.mrb[0].mxu0
        %2757 = vdwg.mxu0
        %2758 = vmatprep.subr.bf16.mxu0 %v2386
        %2759 = vmatpush1.bf16.msra.mxu0 %v2385
        %2760 = vmatprep.subr.bf16.mxu0 %v2394
        %2761 = vmatpush1.bf16.msra.mxu0 %v2393
        %2762 = vmatprep.subr.bf16.mxu0 %v2402
        %2763 = vmatpush1.bf16.msra.mxu0 %v2401
        %2764 = vmatprep.subr.bf16.mxu0 %v2410
        %2765 = vmatpush1.bf16.msra.mxu0 %v2409
        %2766 = vmatprep.subr.bf16.mxu0 %v2418
        %2767 = vmatpush1.bf16.msra.mxu0 %v2417
        %2768 = vmatprep.subr.bf16.mxu0 %v2426
        %2769 = vmatpush1.bf16.msra.mxu0 %v2425
        %2770 = vmatprep.subr.bf16.mxu0 %v2434
        %2771 = vmatpush1.bf16.msra.mxu0 %v2433
        %2772 = vmatprep.subr.bf16.mxu0 %v2442
        %2773 = vmatpush1.bf16.msra.mxu0 %v2441
        %2774 = vmatprep.subr.bf16.mxu0 %v2450
        %2775 = vmatpush1.bf16.msra.mxu0 %v2449
        %2776 = vmatprep.subr.bf16.mxu0 %v2458
        %2777 = vmatpush1.bf16.msra.mxu0 %v2457
        %2778 = vmatprep.subr.bf16.mxu0 %v2466
        %2779 = vmatpush1.bf16.msra.mxu0 %v2465
        %2780 = vmatprep.subr.bf16.mxu0 %v2474
        %2781 = vmatpush1.bf16.msra.mxu0 %v2473
        %2782 = vmatprep.subr.bf16.mxu0 %v2482
        %2783 = vmatpush1.bf16.msra.mxu0 %v2481
        %2784 = vmatprep.subr.bf16.mxu0 %v2490
        %2785 = vmatpush1.bf16.msra.mxu0 %v2489
        %2786 = vmatprep.subr.bf16.mxu0 %v2498
        %2787 = vmatpush1.bf16.msra.mxu0 %v2497
        %2788 = vmatprep.subr.bf16.mxu0 %v2506
        %2789 = vmatpush1.bf16.msra.mxu0 %v2505
        %2790 = vmatprep.mubr.bf16.mxu0 %v1824
        %2791 = vmatmul.mubr.bf16.gmra.mrb[0].mxu0 %v1823
        %v2792 = vpop.f32.mrb[0].mxu0
        %v2793 = vadd.f32 %v1982, %v2792
        %v2794 = vpop.f32.mrb[0].mxu0
        %v2795 = vadd.f32 %v1986, %v2794
        %v2796 = vpop.f32.mrb[0].mxu0
        %v2797 = vpop.f32.mrb[0].mxu0
        %2798 = vdwg.mxu0
        %v2799 = vmax.f32 %v2670, 0.0
        %v2800 = vmax.f32 %v2672, 0.0
        %v2801 = vmax.f32 %v2711, 0.0
        %v2802 = vmax.f32 %v2713, 0.0
        %v2803 = vmax.f32 %v2752, 0.0
        %v2804 = vmax.f32 %v2754, 0.0
        %v2805 = vmax.f32 %v2793, 0.0
        %v2806 = vmax.f32 %v2795, 0.0
        %v2807 = vpack.c.bf16 %v2799, %v2799
        %v2808 = vpack.c.bf16 %v2800, %v2800
        %v2809 = vpack.c.bf16 %v2801, %v2801
        %v2810 = vpack.c.bf16 %v2802, %v2802
        %v2811 = vpack.c.bf16 %v2803, %v2803
        %v2812 = vpack.c.bf16 %v2804, %v2804
        %v2813 = vpack.c.bf16 %v2805, %v2805
        %v2814 = vpack.c.bf16 %v2806, %v2806
        %v2815 = vld [vmem:[%s14] sm:$0xff]
        %v2816 = vld [vmem:[%s14 + $0x8] sm:$0xff]
        %v2817 = vld [vmem:[%s14 + $0x10] sm:$0xff]
        %v2818 = vld [vmem:[%s14 + $0x18] sm:$0xff]
        %v2819 = vld [vmem:[%s14 + $0x20] sm:$0xff]
        %v2820 = vld [vmem:[%s14 + $0x28] sm:$0xff]
        %v2821 = vld [vmem:[%s14 + $0x30] sm:$0xff]
        %v2822 = vld [vmem:[%s14 + $0x38] sm:$0xff]
        %v2823 = vld [vmem:[%s14 + $0x40] sm:$0xff]
        %v2824 = vld [vmem:[%s14 + $0x48] sm:$0xff]
        %v2825 = vld [vmem:[%s14 + $0x50] sm:$0xff]
        %v2826 = vld [vmem:[%s14 + $0x58] sm:$0xff]
        %v2827 = vld [vmem:[%s14 + $0x60] sm:$0xff]
        %v2828 = vld [vmem:[%s14 + $0x68] sm:$0xff]
        %v2829 = vld [vmem:[%s14 + $0x70] sm:$0xff]
        %v2830 = vld [vmem:[%s14 + $0x78] sm:$0xff]
        %v2831 = vld [vmem:[%s14 + $0x80] sm:$0xff]
        %v2832 = vld [vmem:[%s14 + $0x88] sm:$0xff]
        %v2833 = vld [vmem:[%s14 + $0x90] sm:$0xff]
        %v2834 = vld [vmem:[%s14 + $0x98] sm:$0xff]
        %v2835 = vld [vmem:[%s14 + $0xa0] sm:$0xff]
        %v2836 = vld [vmem:[%s14 + $0xa8] sm:$0xff]
        %v2837 = vld [vmem:[%s14 + $0xb0] sm:$0xff]
        %v2838 = vld [vmem:[%s14 + $0xb8] sm:$0xff]
        %v2839 = vld [vmem:[%s14 + $0xc0] sm:$0xff]
        %v2840 = vld [vmem:[%s14 + $0xc8] sm:$0xff]
        %v2841 = vld [vmem:[%s14 + $0xd0] sm:$0xff]
        %v2842 = vld [vmem:[%s14 + $0xd8] sm:$0xff]
        %v2843 = vld [vmem:[%s14 + $0xe0] sm:$0xff]
        %v2844 = vld [vmem:[%s14 + $0xe8] sm:$0xff]
        %v2845 = vld [vmem:[%s14 + $0xf0] sm:$0xff]
        %v2846 = vld [vmem:[%s14 + $0xf8] sm:$0xff]
        %v2847 = vld [vmem:[%s14 + $0x100] sm:$0xff]
        %v2848 = vld [vmem:[%s14 + $0x108] sm:$0xff]
        %v2849 = vld [vmem:[%s14 + $0x110] sm:$0xff]
        %v2850 = vld [vmem:[%s14 + $0x118] sm:$0xff]
        %v2851 = vld [vmem:[%s14 + $0x120] sm:$0xff]
        %v2852 = vld [vmem:[%s14 + $0x128] sm:$0xff]
        %v2853 = vld [vmem:[%s14 + $0x130] sm:$0xff]
        %v2854 = vld [vmem:[%s14 + $0x138] sm:$0xff]
        %v2855 = vld [vmem:[%s14 + $0x140] sm:$0xff]
        %v2856 = vld [vmem:[%s14 + $0x148] sm:$0xff]
        %v2857 = vld [vmem:[%s14 + $0x150] sm:$0xff]
        %v2858 = vld [vmem:[%s14 + $0x158] sm:$0xff]
        %v2859 = vld [vmem:[%s14 + $0x160] sm:$0xff]
        %v2860 = vld [vmem:[%s14 + $0x168] sm:$0xff]
        %v2861 = vld [vmem:[%s14 + $0x170] sm:$0xff]
        %v2862 = vld [vmem:[%s14 + $0x178] sm:$0xff]
        %v2863 = vld [vmem:[%s14 + $0x180] sm:$0xff]
        %v2864 = vld [vmem:[%s14 + $0x188] sm:$0xff]
        %v2865 = vld [vmem:[%s14 + $0x190] sm:$0xff]
        %v2866 = vld [vmem:[%s14 + $0x198] sm:$0xff]
        %v2867 = vld [vmem:[%s14 + $0x1a0] sm:$0xff]
        %v2868 = vld [vmem:[%s14 + $0x1a8] sm:$0xff]
        %v2869 = vld [vmem:[%s14 + $0x1b0] sm:$0xff]
        %v2870 = vld [vmem:[%s14 + $0x1b8] sm:$0xff]
        %v2871 = vld [vmem:[%s14 + $0x1c0] sm:$0xff]
        %v2872 = vld [vmem:[%s14 + $0x1c8] sm:$0xff]
        %v2873 = vld [vmem:[%s14 + $0x1d0] sm:$0xff]
        %v2874 = vld [vmem:[%s14 + $0x1d8] sm:$0xff]
        %v2875 = vld [vmem:[%s14 + $0x1e0] sm:$0xff]
        %v2876 = vld [vmem:[%s14 + $0x1e8] sm:$0xff]
        %v2877 = vld [vmem:[%s14 + $0x1f0] sm:$0xff]
        %v2878 = vld [vmem:[%s14 + $0x1f8] sm:$0xff]
        %v2879 = vld [vmem:[%s14 + $0x200] sm:$0xff]
        %v2880 = vld [vmem:[%s14 + $0x208] sm:$0xff]
        %v2881 = vld [vmem:[%s14 + $0x210] sm:$0xff]
        %v2882 = vld [vmem:[%s14 + $0x218] sm:$0xff]
        %v2883 = vld [vmem:[%s14 + $0x220] sm:$0xff]
        %v2884 = vld [vmem:[%s14 + $0x228] sm:$0xff]
        %v2885 = vld [vmem:[%s14 + $0x230] sm:$0xff]
        %v2886 = vld [vmem:[%s14 + $0x238] sm:$0xff]
        %v2887 = vld [vmem:[%s14 + $0x240] sm:$0xff]
        %v2888 = vld [vmem:[%s14 + $0x248] sm:$0xff]
        %v2889 = vld [vmem:[%s14 + $0x250] sm:$0xff]
        %v2890 = vld [vmem:[%s14 + $0x258] sm:$0xff]
        %v2891 = vld [vmem:[%s14 + $0x260] sm:$0xff]
        %v2892 = vld [vmem:[%s14 + $0x268] sm:$0xff]
        %v2893 = vld [vmem:[%s14 + $0x270] sm:$0xff]
        %v2894 = vld [vmem:[%s14 + $0x278] sm:$0xff]
        %v2895 = vld [vmem:[%s14 + $0x280] sm:$0xff]
        %v2896 = vld [vmem:[%s14 + $0x288] sm:$0xff]
        %v2897 = vld [vmem:[%s14 + $0x290] sm:$0xff]
        %v2898 = vld [vmem:[%s14 + $0x298] sm:$0xff]
        %v2899 = vld [vmem:[%s14 + $0x2a0] sm:$0xff]
        %v2900 = vld [vmem:[%s14 + $0x2a8] sm:$0xff]
        %v2901 = vld [vmem:[%s14 + $0x2b0] sm:$0xff]
        %v2902 = vld [vmem:[%s14 + $0x2b8] sm:$0xff]
        %v2903 = vld [vmem:[%s14 + $0x2c0] sm:$0xff]
        %v2904 = vld [vmem:[%s14 + $0x2c8] sm:$0xff]
        %v2905 = vld [vmem:[%s14 + $0x2d0] sm:$0xff]
        %v2906 = vld [vmem:[%s14 + $0x2d8] sm:$0xff]
        %v2907 = vld [vmem:[%s14 + $0x2e0] sm:$0xff]
        %v2908 = vld [vmem:[%s14 + $0x2e8] sm:$0xff]
        %v2909 = vld [vmem:[%s14 + $0x2f0] sm:$0xff]
        %v2910 = vld [vmem:[%s14 + $0x2f8] sm:$0xff]
        %v2911 = vld [vmem:[%s14 + $0x300] sm:$0xff]
        %v2912 = vld [vmem:[%s14 + $0x308] sm:$0xff]
        %v2913 = vld [vmem:[%s14 + $0x310] sm:$0xff]
        %v2914 = vld [vmem:[%s14 + $0x318] sm:$0xff]
        %v2915 = vld [vmem:[%s14 + $0x320] sm:$0xff]
        %v2916 = vld [vmem:[%s14 + $0x328] sm:$0xff]
        %v2917 = vld [vmem:[%s14 + $0x330] sm:$0xff]
        %v2918 = vld [vmem:[%s14 + $0x338] sm:$0xff]
        %v2919 = vld [vmem:[%s14 + $0x340] sm:$0xff]
        %v2920 = vld [vmem:[%s14 + $0x348] sm:$0xff]
        %v2921 = vld [vmem:[%s14 + $0x350] sm:$0xff]
        %v2922 = vld [vmem:[%s14 + $0x358] sm:$0xff]
        %v2923 = vld [vmem:[%s14 + $0x360] sm:$0xff]
        %v2924 = vld [vmem:[%s14 + $0x368] sm:$0xff]
        %v2925 = vld [vmem:[%s14 + $0x370] sm:$0xff]
        %v2926 = vld [vmem:[%s14 + $0x378] sm:$0xff]
        %v2927 = vld [vmem:[%s14 + $0x380] sm:$0xff]
        %v2928 = vld [vmem:[%s14 + $0x388] sm:$0xff]
        %v2929 = vld [vmem:[%s14 + $0x390] sm:$0xff]
        %v2930 = vld [vmem:[%s14 + $0x398] sm:$0xff]
        %v2931 = vld [vmem:[%s14 + $0x3a0] sm:$0xff]
        %v2932 = vld [vmem:[%s14 + $0x3a8] sm:$0xff]
        %v2933 = vld [vmem:[%s14 + $0x3b0] sm:$0xff]
        %v2934 = vld [vmem:[%s14 + $0x3b8] sm:$0xff]
        %v2935 = vld [vmem:[%s14 + $0x3c0] sm:$0xff]
        %v2936 = vld [vmem:[%s14 + $0x3c8] sm:$0xff]
        %v2937 = vld [vmem:[%s14 + $0x3d0] sm:$0xff]
        %v2938 = vld [vmem:[%s14 + $0x3d8] sm:$0xff]
        %v2939 = vld [vmem:[%s14 + $0x3e0] sm:$0xff]
        %v2940 = vld [vmem:[%s14 + $0x3e8] sm:$0xff]
        %v2941 = vld [vmem:[%s14 + $0x3f0] sm:$0xff]
        %v2942 = vld [vmem:[%s14 + $0x3f8] sm:$0xff]
        %v2943 = vld [vmem:[%s15] sm:$0x3]
        %v2945 = vlaneseq
        %v2946 = vshrl.u32 %v2945, 7
        %v2947 = vsub.s32 0, %v2946
        %v2948 = vrot.slane %v2943, %v2947
        %v2949 = vlaneseq
        %v2950 = vshrl.u32 %v2949, 7
        %v2951 = vsub.s32 1, %v2950
        %v2952 = vrot.slane %v2943, %v2951
        %v3083 = vunpack.c.l.b16 %v2815
        %v3084 = vunpack.c.h.b16 %v2815
        %v3085 = vunpack.c.l.b16 %v2816
        %v3086 = vunpack.c.h.b16 %v2816
        %v3087 = vunpack.c.l.b16 %v2817
        %v3088 = vunpack.c.h.b16 %v2817
        %v3089 = vunpack.c.l.b16 %v2818
        %v3090 = vunpack.c.h.b16 %v2818
        %v3091 = vunpack.c.l.b16 %v2819
        %v3092 = vunpack.c.h.b16 %v2819
        %v3093 = vunpack.c.l.b16 %v2820
        %v3094 = vunpack.c.h.b16 %v2820
        %v3095 = vunpack.c.l.b16 %v2821
        %v3096 = vunpack.c.h.b16 %v2821
        %v3097 = vunpack.c.l.b16 %v2822
        %v3098 = vunpack.c.h.b16 %v2822
        %v3099 = vunpack.c.l.b16 %v2823
        %v3100 = vunpack.c.h.b16 %v2823
        %v3101 = vunpack.c.l.b16 %v2824
        %v3102 = vunpack.c.h.b16 %v2824
        %v3103 = vunpack.c.l.b16 %v2825
        %v3104 = vunpack.c.h.b16 %v2825
        %v3105 = vunpack.c.l.b16 %v2826
        %v3106 = vunpack.c.h.b16 %v2826
        %v3107 = vunpack.c.l.b16 %v2827
        %v3108 = vunpack.c.h.b16 %v2827
        %v3109 = vunpack.c.l.b16 %v2828
        %v3110 = vunpack.c.h.b16 %v2828
        %v3111 = vunpack.c.l.b16 %v2829
        %v3112 = vunpack.c.h.b16 %v2829
        %v3113 = vunpack.c.l.b16 %v2830
        %v3114 = vunpack.c.h.b16 %v2830
        %v3115 = vunpack.c.l.b16 %v2831
        %v3116 = vunpack.c.h.b16 %v2831
        %v3117 = vunpack.c.l.b16 %v2832
        %v3118 = vunpack.c.h.b16 %v2832
        %v3119 = vunpack.c.l.b16 %v2833
        %v3120 = vunpack.c.h.b16 %v2833
        %v3121 = vunpack.c.l.b16 %v2834
        %v3122 = vunpack.c.h.b16 %v2834
        %v3123 = vunpack.c.l.b16 %v2835
        %v3124 = vunpack.c.h.b16 %v2835
        %v3125 = vunpack.c.l.b16 %v2836
        %v3126 = vunpack.c.h.b16 %v2836
        %v3127 = vunpack.c.l.b16 %v2837
        %v3128 = vunpack.c.h.b16 %v2837
        %v3129 = vunpack.c.l.b16 %v2838
        %v3130 = vunpack.c.h.b16 %v2838
        %v3131 = vunpack.c.l.b16 %v2839
        %v3132 = vunpack.c.h.b16 %v2839
        %v3133 = vunpack.c.l.b16 %v2840
        %v3134 = vunpack.c.h.b16 %v2840
        %v3135 = vunpack.c.l.b16 %v2841
        %v3136 = vunpack.c.h.b16 %v2841
        %v3137 = vunpack.c.l.b16 %v2842
        %v3138 = vunpack.c.h.b16 %v2842
        %v3139 = vunpack.c.l.b16 %v2843
        %v3140 = vunpack.c.h.b16 %v2843
        %v3141 = vunpack.c.l.b16 %v2844
        %v3142 = vunpack.c.h.b16 %v2844
        %v3143 = vunpack.c.l.b16 %v2845
        %v3144 = vunpack.c.h.b16 %v2845
        %v3145 = vunpack.c.l.b16 %v2846
        %v3146 = vunpack.c.h.b16 %v2846
        %v3147 = vunpack.c.l.b16 %v2847
        %v3148 = vunpack.c.h.b16 %v2847
        %v3149 = vunpack.c.l.b16 %v2848
        %v3150 = vunpack.c.h.b16 %v2848
        %v3151 = vunpack.c.l.b16 %v2849
        %v3152 = vunpack.c.h.b16 %v2849
        %v3153 = vunpack.c.l.b16 %v2850
        %v3154 = vunpack.c.h.b16 %v2850
        %v3155 = vunpack.c.l.b16 %v2851
        %v3156 = vunpack.c.h.b16 %v2851
        %v3157 = vunpack.c.l.b16 %v2852
        %v3158 = vunpack.c.h.b16 %v2852
        %v3159 = vunpack.c.l.b16 %v2853
        %v3160 = vunpack.c.h.b16 %v2853
        %v3161 = vunpack.c.l.b16 %v2854
        %v3162 = vunpack.c.h.b16 %v2854
        %v3163 = vunpack.c.l.b16 %v2855
        %v3164 = vunpack.c.h.b16 %v2855
        %v3165 = vunpack.c.l.b16 %v2856
        %v3166 = vunpack.c.h.b16 %v2856
        %v3167 = vunpack.c.l.b16 %v2857
        %v3168 = vunpack.c.h.b16 %v2857
        %v3169 = vunpack.c.l.b16 %v2858
        %v3170 = vunpack.c.h.b16 %v2858
        %v3171 = vunpack.c.l.b16 %v2859
        %v3172 = vunpack.c.h.b16 %v2859
        %v3173 = vunpack.c.l.b16 %v2860
        %v3174 = vunpack.c.h.b16 %v2860
        %v3175 = vunpack.c.l.b16 %v2861
        %v3176 = vunpack.c.h.b16 %v2861
        %v3177 = vunpack.c.l.b16 %v2862
        %v3178 = vunpack.c.h.b16 %v2862
        %v3179 = vunpack.c.l.b16 %v2863
        %v3180 = vunpack.c.h.b16 %v2863
        %v3181 = vunpack.c.l.b16 %v2864
        %v3182 = vunpack.c.h.b16 %v2864
        %v3183 = vunpack.c.l.b16 %v2865
        %v3184 = vunpack.c.h.b16 %v2865
        %v3185 = vunpack.c.l.b16 %v2866
        %v3186 = vunpack.c.h.b16 %v2866
        %v3187 = vunpack.c.l.b16 %v2867
        %v3188 = vunpack.c.h.b16 %v2867
        %v3189 = vunpack.c.l.b16 %v2868
        %v3190 = vunpack.c.h.b16 %v2868
        %v3191 = vunpack.c.l.b16 %v2869
        %v3192 = vunpack.c.h.b16 %v2869
        %v3193 = vunpack.c.l.b16 %v2870
        %v3194 = vunpack.c.h.b16 %v2870
        %v3195 = vunpack.c.l.b16 %v2871
        %v3196 = vunpack.c.h.b16 %v2871
        %v3197 = vunpack.c.l.b16 %v2872
        %v3198 = vunpack.c.h.b16 %v2872
        %v3199 = vunpack.c.l.b16 %v2873
        %v3200 = vunpack.c.h.b16 %v2873
        %v3201 = vunpack.c.l.b16 %v2874
        %v3202 = vunpack.c.h.b16 %v2874
        %v3203 = vunpack.c.l.b16 %v2875
        %v3204 = vunpack.c.h.b16 %v2875
        %v3205 = vunpack.c.l.b16 %v2876
        %v3206 = vunpack.c.h.b16 %v2876
        %v3207 = vunpack.c.l.b16 %v2877
        %v3208 = vunpack.c.h.b16 %v2877
        %v3209 = vunpack.c.l.b16 %v2878
        %v3210 = vunpack.c.h.b16 %v2878
        %v3211 = vunpack.c.l.b16 %v2879
        %v3212 = vunpack.c.h.b16 %v2879
        %v3213 = vunpack.c.l.b16 %v2880
        %v3214 = vunpack.c.h.b16 %v2880
        %v3215 = vunpack.c.l.b16 %v2881
        %v3216 = vunpack.c.h.b16 %v2881
        %v3217 = vunpack.c.l.b16 %v2882
        %v3218 = vunpack.c.h.b16 %v2882
        %v3219 = vunpack.c.l.b16 %v2883
        %v3220 = vunpack.c.h.b16 %v2883
        %v3221 = vunpack.c.l.b16 %v2884
        %v3222 = vunpack.c.h.b16 %v2884
        %v3223 = vunpack.c.l.b16 %v2885
        %v3224 = vunpack.c.h.b16 %v2885
        %v3225 = vunpack.c.l.b16 %v2886
        %v3226 = vunpack.c.h.b16 %v2886
        %v3227 = vunpack.c.l.b16 %v2887
        %v3228 = vunpack.c.h.b16 %v2887
        %v3229 = vunpack.c.l.b16 %v2888
        %v3230 = vunpack.c.h.b16 %v2888
        %v3231 = vunpack.c.l.b16 %v2889
        %v3232 = vunpack.c.h.b16 %v2889
        %v3233 = vunpack.c.l.b16 %v2890
        %v3234 = vunpack.c.h.b16 %v2890
        %v3235 = vunpack.c.l.b16 %v2891
        %v3236 = vunpack.c.h.b16 %v2891
        %v3237 = vunpack.c.l.b16 %v2892
        %v3238 = vunpack.c.h.b16 %v2892
        %v3239 = vunpack.c.l.b16 %v2893
        %v3240 = vunpack.c.h.b16 %v2893
        %v3241 = vunpack.c.l.b16 %v2894
        %v3242 = vunpack.c.h.b16 %v2894
        %v3243 = vunpack.c.l.b16 %v2895
        %v3244 = vunpack.c.h.b16 %v2895
        %v3245 = vunpack.c.l.b16 %v2896
        %v3246 = vunpack.c.h.b16 %v2896
        %v3247 = vunpack.c.l.b16 %v2897
        %v3248 = vunpack.c.h.b16 %v2897
        %v3249 = vunpack.c.l.b16 %v2898
        %v3250 = vunpack.c.h.b16 %v2898
        %v3251 = vunpack.c.l.b16 %v2899
        %v3252 = vunpack.c.h.b16 %v2899
        %v3253 = vunpack.c.l.b16 %v2900
        %v3254 = vunpack.c.h.b16 %v2900
        %v3255 = vunpack.c.l.b16 %v2901
        %v3256 = vunpack.c.h.b16 %v2901
        %v3257 = vunpack.c.l.b16 %v2902
        %v3258 = vunpack.c.h.b16 %v2902
        %v3259 = vunpack.c.l.b16 %v2903
        %v3260 = vunpack.c.h.b16 %v2903
        %v3261 = vunpack.c.l.b16 %v2904
        %v3262 = vunpack.c.h.b16 %v2904
        %v3263 = vunpack.c.l.b16 %v2905
        %v3264 = vunpack.c.h.b16 %v2905
        %v3265 = vunpack.c.l.b16 %v2906
        %v3266 = vunpack.c.h.b16 %v2906
        %v3267 = vunpack.c.l.b16 %v2907
        %v3268 = vunpack.c.h.b16 %v2907
        %v3269 = vunpack.c.l.b16 %v2908
        %v3270 = vunpack.c.h.b16 %v2908
        %v3271 = vunpack.c.l.b16 %v2909
        %v3272 = vunpack.c.h.b16 %v2909
        %v3273 = vunpack.c.l.b16 %v2910
        %v3274 = vunpack.c.h.b16 %v2910
        %v3275 = vunpack.c.l.b16 %v2911
        %v3276 = vunpack.c.h.b16 %v2911
        %v3277 = vunpack.c.l.b16 %v2912
        %v3278 = vunpack.c.h.b16 %v2912
        %v3279 = vunpack.c.l.b16 %v2913
        %v3280 = vunpack.c.h.b16 %v2913
        %v3281 = vunpack.c.l.b16 %v2914
        %v3282 = vunpack.c.h.b16 %v2914
        %v3283 = vunpack.c.l.b16 %v2915
        %v3284 = vunpack.c.h.b16 %v2915
        %v3285 = vunpack.c.l.b16 %v2916
        %v3286 = vunpack.c.h.b16 %v2916
        %v3287 = vunpack.c.l.b16 %v2917
        %v3288 = vunpack.c.h.b16 %v2917
        %v3289 = vunpack.c.l.b16 %v2918
        %v3290 = vunpack.c.h.b16 %v2918
        %v3291 = vunpack.c.l.b16 %v2919
        %v3292 = vunpack.c.h.b16 %v2919
        %v3293 = vunpack.c.l.b16 %v2920
        %v3294 = vunpack.c.h.b16 %v2920
        %v3295 = vunpack.c.l.b16 %v2921
        %v3296 = vunpack.c.h.b16 %v2921
        %v3297 = vunpack.c.l.b16 %v2922
        %v3298 = vunpack.c.h.b16 %v2922
        %v3299 = vunpack.c.l.b16 %v2923
        %v3300 = vunpack.c.h.b16 %v2923
        %v3301 = vunpack.c.l.b16 %v2924
        %v3302 = vunpack.c.h.b16 %v2924
        %v3303 = vunpack.c.l.b16 %v2925
        %v3304 = vunpack.c.h.b16 %v2925
        %v3305 = vunpack.c.l.b16 %v2926
        %v3306 = vunpack.c.h.b16 %v2926
        %v3307 = vunpack.c.l.b16 %v2927
        %v3308 = vunpack.c.h.b16 %v2927
        %v3309 = vunpack.c.l.b16 %v2928
        %v3310 = vunpack.c.h.b16 %v2928
        %v3311 = vunpack.c.l.b16 %v2929
        %v3312 = vunpack.c.h.b16 %v2929
        %v3313 = vunpack.c.l.b16 %v2930
        %v3314 = vunpack.c.h.b16 %v2930
        %v3315 = vunpack.c.l.b16 %v2931
        %v3316 = vunpack.c.h.b16 %v2931
        %v3317 = vunpack.c.l.b16 %v2932
        %v3318 = vunpack.c.h.b16 %v2932
        %v3319 = vunpack.c.l.b16 %v2933
        %v3320 = vunpack.c.h.b16 %v2933
        %v3321 = vunpack.c.l.b16 %v2934
        %v3322 = vunpack.c.h.b16 %v2934
        %v3323 = vunpack.c.l.b16 %v2935
        %v3324 = vunpack.c.h.b16 %v2935
        %v3325 = vunpack.c.l.b16 %v2936
        %v3326 = vunpack.c.h.b16 %v2936
        %v3327 = vunpack.c.l.b16 %v2937
        %v3328 = vunpack.c.h.b16 %v2937
        %v3329 = vunpack.c.l.b16 %v2938
        %v3330 = vunpack.c.h.b16 %v2938
        %v3331 = vunpack.c.l.b16 %v2939
        %v3332 = vunpack.c.h.b16 %v2939
        %v3333 = vunpack.c.l.b16 %v2940
        %v3334 = vunpack.c.h.b16 %v2940
        %v3335 = vunpack.c.l.b16 %v2941
        %v3336 = vunpack.c.h.b16 %v2941
        %v3337 = vunpack.c.l.b16 %v2942
        %v3338 = vunpack.c.h.b16 %v2942
        %v3339 = vpack.c.b16 %v3085, %v3083
        %v3340 = vpack.c.b16 %v3086, %v3084
        %v3341 = vpack.c.b16 %v3089, %v3087
        %v3342 = vpack.c.b16 %v3090, %v3088
        %v3343 = vpack.c.b16 %v3093, %v3091
        %v3344 = vpack.c.b16 %v3094, %v3092
        %v3345 = vpack.c.b16 %v3097, %v3095
        %v3346 = vpack.c.b16 %v3098, %v3096
        %v3347 = vpack.c.b16 %v3101, %v3099
        %v3348 = vpack.c.b16 %v3102, %v3100
        %v3349 = vpack.c.b16 %v3105, %v3103
        %v3350 = vpack.c.b16 %v3106, %v3104
        %v3351 = vpack.c.b16 %v3109, %v3107
        %v3352 = vpack.c.b16 %v3110, %v3108
        %v3353 = vpack.c.b16 %v3113, %v3111
        %v3354 = vpack.c.b16 %v3114, %v3112
        %v3355 = vpack.c.b16 %v3117, %v3115
        %v3356 = vpack.c.b16 %v3118, %v3116
        %v3357 = vpack.c.b16 %v3121, %v3119
        %v3358 = vpack.c.b16 %v3122, %v3120
        %v3359 = vpack.c.b16 %v3125, %v3123
        %v3360 = vpack.c.b16 %v3126, %v3124
        %v3361 = vpack.c.b16 %v3129, %v3127
        %v3362 = vpack.c.b16 %v3130, %v3128
        %v3363 = vpack.c.b16 %v3133, %v3131
        %v3364 = vpack.c.b16 %v3134, %v3132
        %v3365 = vpack.c.b16 %v3137, %v3135
        %v3366 = vpack.c.b16 %v3138, %v3136
        %v3367 = vpack.c.b16 %v3141, %v3139
        %v3368 = vpack.c.b16 %v3142, %v3140
        %v3369 = vpack.c.b16 %v3145, %v3143
        %v3370 = vpack.c.b16 %v3146, %v3144
        %v3371 = vpack.c.b16 %v3149, %v3147
        %v3372 = vpack.c.b16 %v3150, %v3148
        %v3373 = vpack.c.b16 %v3153, %v3151
        %v3374 = vpack.c.b16 %v3154, %v3152
        %v3375 = vpack.c.b16 %v3157, %v3155
        %v3376 = vpack.c.b16 %v3158, %v3156
        %v3377 = vpack.c.b16 %v3161, %v3159
        %v3378 = vpack.c.b16 %v3162, %v3160
        %v3379 = vpack.c.b16 %v3165, %v3163
        %v3380 = vpack.c.b16 %v3166, %v3164
        %v3381 = vpack.c.b16 %v3169, %v3167
        %v3382 = vpack.c.b16 %v3170, %v3168
        %v3383 = vpack.c.b16 %v3173, %v3171
        %v3384 = vpack.c.b16 %v3174, %v3172
        %v3385 = vpack.c.b16 %v3177, %v3175
        %v3386 = vpack.c.b16 %v3178, %v3176
        %v3387 = vpack.c.b16 %v3181, %v3179
        %v3388 = vpack.c.b16 %v3182, %v3180
        %v3389 = vpack.c.b16 %v3185, %v3183
        %v3390 = vpack.c.b16 %v3186, %v3184
        %v3391 = vpack.c.b16 %v3189, %v3187
        %v3392 = vpack.c.b16 %v3190, %v3188
        %v3393 = vpack.c.b16 %v3193, %v3191
        %v3394 = vpack.c.b16 %v3194, %v3192
        %v3395 = vpack.c.b16 %v3197, %v3195
        %v3396 = vpack.c.b16 %v3198, %v3196
        %v3397 = vpack.c.b16 %v3201, %v3199
        %v3398 = vpack.c.b16 %v3202, %v3200
        %v3399 = vpack.c.b16 %v3205, %v3203
        %v3400 = vpack.c.b16 %v3206, %v3204
        %v3401 = vpack.c.b16 %v3209, %v3207
        %v3402 = vpack.c.b16 %v3210, %v3208
        %v3403 = vpack.c.b16 %v3213, %v3211
        %v3404 = vpack.c.b16 %v3214, %v3212
        %v3405 = vpack.c.b16 %v3217, %v3215
        %v3406 = vpack.c.b16 %v3218, %v3216
        %v3407 = vpack.c.b16 %v3221, %v3219
        %v3408 = vpack.c.b16 %v3222, %v3220
        %v3409 = vpack.c.b16 %v3225, %v3223
        %v3410 = vpack.c.b16 %v3226, %v3224
        %v3411 = vpack.c.b16 %v3229, %v3227
        %v3412 = vpack.c.b16 %v3230, %v3228
        %v3413 = vpack.c.b16 %v3233, %v3231
        %v3414 = vpack.c.b16 %v3234, %v3232
        %v3415 = vpack.c.b16 %v3237, %v3235
        %v3416 = vpack.c.b16 %v3238, %v3236
        %v3417 = vpack.c.b16 %v3241, %v3239
        %v3418 = vpack.c.b16 %v3242, %v3240
        %v3419 = vpack.c.b16 %v3245, %v3243
        %v3420 = vpack.c.b16 %v3246, %v3244
        %v3421 = vpack.c.b16 %v3249, %v3247
        %v3422 = vpack.c.b16 %v3250, %v3248
        %v3423 = vpack.c.b16 %v3253, %v3251
        %v3424 = vpack.c.b16 %v3254, %v3252
        %v3425 = vpack.c.b16 %v3257, %v3255
        %v3426 = vpack.c.b16 %v3258, %v3256
        %v3427 = vpack.c.b16 %v3261, %v3259
        %v3428 = vpack.c.b16 %v3262, %v3260
        %v3429 = vpack.c.b16 %v3265, %v3263
        %v3430 = vpack.c.b16 %v3266, %v3264
        %v3431 = vpack.c.b16 %v3269, %v3267
        %v3432 = vpack.c.b16 %v3270, %v3268
        %v3433 = vpack.c.b16 %v3273, %v3271
        %v3434 = vpack.c.b16 %v3274, %v3272
        %v3435 = vpack.c.b16 %v3277, %v3275
        %v3436 = vpack.c.b16 %v3278, %v3276
        %v3437 = vpack.c.b16 %v3281, %v3279
        %v3438 = vpack.c.b16 %v3282, %v3280
        %v3439 = vpack.c.b16 %v3285, %v3283
        %v3440 = vpack.c.b16 %v3286, %v3284
        %v3441 = vpack.c.b16 %v3289, %v3287
        %v3442 = vpack.c.b16 %v3290, %v3288
        %v3443 = vpack.c.b16 %v3293, %v3291
        %v3444 = vpack.c.b16 %v3294, %v3292
        %v3445 = vpack.c.b16 %v3297, %v3295
        %v3446 = vpack.c.b16 %v3298, %v3296
        %v3447 = vpack.c.b16 %v3301, %v3299
        %v3448 = vpack.c.b16 %v3302, %v3300
        %v3449 = vpack.c.b16 %v3305, %v3303
        %v3450 = vpack.c.b16 %v3306, %v3304
        %v3451 = vpack.c.b16 %v3309, %v3307
        %v3452 = vpack.c.b16 %v3310, %v3308
        %v3453 = vpack.c.b16 %v3313, %v3311
        %v3454 = vpack.c.b16 %v3314, %v3312
        %v3455 = vpack.c.b16 %v3317, %v3315
        %v3456 = vpack.c.b16 %v3318, %v3316
        %v3457 = vpack.c.b16 %v3321, %v3319
        %v3458 = vpack.c.b16 %v3322, %v3320
        %v3459 = vpack.c.b16 %v3325, %v3323
        %v3460 = vpack.c.b16 %v3326, %v3324
        %v3461 = vpack.c.b16 %v3329, %v3327
        %v3462 = vpack.c.b16 %v3330, %v3328
        %v3463 = vpack.c.b16 %v3333, %v3331
        %v3464 = vpack.c.b16 %v3334, %v3332
        %v3465 = vpack.c.b16 %v3337, %v3335
        %v3466 = vpack.c.b16 %v3338, %v3336
        %3595 = vmatprep.subr.bf16.mxu0 %v3340
        %3596 = vmatpush1.bf16.msra.mxu0 %v3339
        %3597 = vmatprep.subr.bf16.mxu0 %v3342
        %3598 = vmatpush1.bf16.msra.mxu0 %v3341
        %3599 = vmatprep.subr.bf16.mxu0 %v3344
        %3600 = vmatpush1.bf16.msra.mxu0 %v3343
        %3601 = vmatprep.subr.bf16.mxu0 %v3346
        %3602 = vmatpush1.bf16.msra.mxu0 %v3345
        %3603 = vmatprep.subr.bf16.mxu0 %v3348
        %3604 = vmatpush1.bf16.msra.mxu0 %v3347
        %3605 = vmatprep.subr.bf16.mxu0 %v3350
        %3606 = vmatpush1.bf16.msra.mxu0 %v3349
        %3607 = vmatprep.subr.bf16.mxu0 %v3352
        %3608 = vmatpush1.bf16.msra.mxu0 %v3351
        %3609 = vmatprep.subr.bf16.mxu0 %v3354
        %3610 = vmatpush1.bf16.msra.mxu0 %v3353
        %3611 = vmatprep.subr.bf16.mxu0 %v3356
        %3612 = vmatpush1.bf16.msra.mxu0 %v3355
        %3613 = vmatprep.subr.bf16.mxu0 %v3358
        %3614 = vmatpush1.bf16.msra.mxu0 %v3357
        %3615 = vmatprep.subr.bf16.mxu0 %v3360
        %3616 = vmatpush1.bf16.msra.mxu0 %v3359
        %3617 = vmatprep.subr.bf16.mxu0 %v3362
        %3618 = vmatpush1.bf16.msra.mxu0 %v3361
        %3619 = vmatprep.subr.bf16.mxu0 %v3364
        %3620 = vmatpush1.bf16.msra.mxu0 %v3363
        %3621 = vmatprep.subr.bf16.mxu0 %v3366
        %3622 = vmatpush1.bf16.msra.mxu0 %v3365
        %3623 = vmatprep.subr.bf16.mxu0 %v3368
        %3624 = vmatpush1.bf16.msra.mxu0 %v3367
        %3625 = vmatprep.subr.bf16.mxu0 %v3370
        %3626 = vmatpush1.bf16.msra.mxu0 %v3369
        %3627 = vmatprep.mubr.bf16.mxu0 %v2808
        %3628 = vmatmul.mubr.bf16.gmra.mrb[0].mxu0 %v2807
        %v3629 = vpop.f32.mrb[0].mxu0
        %v3630 = vadd.f32 %v2948, %v3629
        %v3631 = vpop.f32.mrb[0].mxu0
        %v3632 = vadd.f32 %v2952, %v3631
        %v3633 = vpop.f32.mrb[0].mxu0
        %v3634 = vpop.f32.mrb[0].mxu0
        %3635 = vdwg.mxu0
        %3636 = vmatprep.subr.bf16.mxu0 %v3372
        %3637 = vmatpush1.bf16.msra.mxu0 %v3371
        %3638 = vmatprep.subr.bf16.mxu0 %v3374
        %3639 = vmatpush1.bf16.msra.mxu0 %v3373
        %3640 = vmatprep.subr.bf16.mxu0 %v3376
        %3641 = vmatpush1.bf16.msra.mxu0 %v3375
        %3642 = vmatprep.subr.bf16.mxu0 %v3378
        %3643 = vmatpush1.bf16.msra.mxu0 %v3377
        %3644 = vmatprep.subr.bf16.mxu0 %v3380
        %3645 = vmatpush1.bf16.msra.mxu0 %v3379
        %3646 = vmatprep.subr.bf16.mxu0 %v3382
        %3647 = vmatpush1.bf16.msra.mxu0 %v3381
        %3648 = vmatprep.subr.bf16.mxu0 %v3384
        %3649 = vmatpush1.bf16.msra.mxu0 %v3383
        %3650 = vmatprep.subr.bf16.mxu0 %v3386
        %3651 = vmatpush1.bf16.msra.mxu0 %v3385
        %3652 = vmatprep.subr.bf16.mxu0 %v3388
        %3653 = vmatpush1.bf16.msra.mxu0 %v3387
        %3654 = vmatprep.subr.bf16.mxu0 %v3390
        %3655 = vmatpush1.bf16.msra.mxu0 %v3389
        %3656 = vmatprep.subr.bf16.mxu0 %v3392
        %3657 = vmatpush1.bf16.msra.mxu0 %v3391
        %3658 = vmatprep.subr.bf16.mxu0 %v3394
        %3659 = vmatpush1.bf16.msra.mxu0 %v3393
        %3660 = vmatprep.subr.bf16.mxu0 %v3396
        %3661 = vmatpush1.bf16.msra.mxu0 %v3395
        %3662 = vmatprep.subr.bf16.mxu0 %v3398
        %3663 = vmatpush1.bf16.msra.mxu0 %v3397
        %3664 = vmatprep.subr.bf16.mxu0 %v3400
        %3665 = vmatpush1.bf16.msra.mxu0 %v3399
        %3666 = vmatprep.subr.bf16.mxu0 %v3402
        %3667 = vmatpush1.bf16.msra.mxu0 %v3401
        %3668 = vmatprep.mubr.bf16.mxu0 %v2810
        %3669 = vmatmul.mubr.bf16.gmra.mrb[0].mxu0 %v2809
        %v3670 = vpop.f32.mrb[0].mxu0
        %v3671 = vadd.f32 %v3630, %v3670
        %v3672 = vpop.f32.mrb[0].mxu0
        %v3673 = vadd.f32 %v3632, %v3672
        %v3674 = vpop.f32.mrb[0].mxu0
        %v3675 = vpop.f32.mrb[0].mxu0
        %3676 = vdwg.mxu0
        %3677 = vmatprep.subr.bf16.mxu0 %v3404
        %3678 = vmatpush1.bf16.msra.mxu0 %v3403
        %3679 = vmatprep.subr.bf16.mxu0 %v3406
        %3680 = vmatpush1.bf16.msra.mxu0 %v3405
        %3681 = vmatprep.subr.bf16.mxu0 %v3408
        %3682 = vmatpush1.bf16.msra.mxu0 %v3407
        %3683 = vmatprep.subr.bf16.mxu0 %v3410
        %3684 = vmatpush1.bf16.msra.mxu0 %v3409
        %3685 = vmatprep.subr.bf16.mxu0 %v3412
        %3686 = vmatpush1.bf16.msra.mxu0 %v3411
        %3687 = vmatprep.subr.bf16.mxu0 %v3414
        %3688 = vmatpush1.bf16.msra.mxu0 %v3413
        %3689 = vmatprep.subr.bf16.mxu0 %v3416
        %3690 = vmatpush1.bf16.msra.mxu0 %v3415
        %3691 = vmatprep.subr.bf16.mxu0 %v3418
        %3692 = vmatpush1.bf16.msra.mxu0 %v3417
        %3693 = vmatprep.subr.bf16.mxu0 %v3420
        %3694 = vmatpush1.bf16.msra.mxu0 %v3419
        %3695 = vmatprep.subr.bf16.mxu0 %v3422
        %3696 = vmatpush1.bf16.msra.mxu0 %v3421
        %3697 = vmatprep.subr.bf16.mxu0 %v3424
        %3698 = vmatpush1.bf16.msra.mxu0 %v3423
        %3699 = vmatprep.subr.bf16.mxu0 %v3426
        %3700 = vmatpush1.bf16.msra.mxu0 %v3425
        %3701 = vmatprep.subr.bf16.mxu0 %v3428
        %3702 = vmatpush1.bf16.msra.mxu0 %v3427
        %3703 = vmatprep.subr.bf16.mxu0 %v3430
        %3704 = vmatpush1.bf16.msra.mxu0 %v3429
        %3705 = vmatprep.subr.bf16.mxu0 %v3432
        %3706 = vmatpush1.bf16.msra.mxu0 %v3431
        %3707 = vmatprep.subr.bf16.mxu0 %v3434
        %3708 = vmatpush1.bf16.msra.mxu0 %v3433
        %3709 = vmatprep.mubr.bf16.mxu0 %v2812
        %3710 = vmatmul.mubr.bf16.gmra.mrb[0].mxu0 %v2811
        %v3711 = vpop.f32.mrb[0].mxu0
        %v3712 = vadd.f32 %v3671, %v3711
        %v3713 = vpop.f32.mrb[0].mxu0
        %v3714 = vadd.f32 %v3673, %v3713
        %v3715 = vpop.f32.mrb[0].mxu0
        %v3716 = vpop.f32.mrb[0].mxu0
        %3717 = vdwg.mxu0
        %3718 = vmatprep.subr.bf16.mxu0 %v3436
        %3719 = vmatpush1.bf16.msra.mxu0 %v3435
        %3720 = vmatprep.subr.bf16.mxu0 %v3438
        %3721 = vmatpush1.bf16.msra.mxu0 %v3437
        %3722 = vmatprep.subr.bf16.mxu0 %v3440
        %3723 = vmatpush1.bf16.msra.mxu0 %v3439
        %3724 = vmatprep.subr.bf16.mxu0 %v3442
        %3725 = vmatpush1.bf16.msra.mxu0 %v3441
        %3726 = vmatprep.subr.bf16.mxu0 %v3444
        %3727 = vmatpush1.bf16.msra.mxu0 %v3443
        %3728 = vmatprep.subr.bf16.mxu0 %v3446
        %3729 = vmatpush1.bf16.msra.mxu0 %v3445
        %3730 = vmatprep.subr.bf16.mxu0 %v3448
        %3731 = vmatpush1.bf16.msra.mxu0 %v3447
        %3732 = vmatprep.subr.bf16.mxu0 %v3450
        %3733 = vmatpush1.bf16.msra.mxu0 %v3449
        %3734 = vmatprep.subr.bf16.mxu0 %v3452
        %3735 = vmatpush1.bf16.msra.mxu0 %v3451
        %3736 = vmatprep.subr.bf16.mxu0 %v3454
        %3737 = vmatpush1.bf16.msra.mxu0 %v3453
        %3738 = vmatprep.subr.bf16.mxu0 %v3456
        %3739 = vmatpush1.bf16.msra.mxu0 %v3455
        %3740 = vmatprep.subr.bf16.mxu0 %v3458
        %3741 = vmatpush1.bf16.msra.mxu0 %v3457
        %3742 = vmatprep.subr.bf16.mxu0 %v3460
        %3743 = vmatpush1.bf16.msra.mxu0 %v3459
        %3744 = vmatprep.subr.bf16.mxu0 %v3462
        %3745 = vmatpush1.bf16.msra.mxu0 %v3461
        %3746 = vmatprep.subr.bf16.mxu0 %v3464
        %3747 = vmatpush1.bf16.msra.mxu0 %v3463
        %3748 = vmatprep.subr.bf16.mxu0 %v3466
        %3749 = vmatpush1.bf16.msra.mxu0 %v3465
        %3750 = vmatprep.mubr.bf16.mxu0 %v2814
        %3751 = vmatmul.mubr.bf16.gmra.mrb[0].mxu0 %v2813
        %v3752 = vpop.f32.mrb[0].mxu0
        %v3753 = vadd.f32 %v3712, %v3752
        %v3754 = vpop.f32.mrb[0].mxu0
        %v3755 = vadd.f32 %v3714, %v3754
        %v3756 = vpop.f32.mrb[0].mxu0
        %v3757 = vpop.f32.mrb[0].mxu0
        %3758 = vdwg.mxu0
        %v3759 = vadd.f32 %v1777, %v3753
        %v3760 = vadd.f32 %v1778, %v3755
        %3761 = vst [vmem:[%s514] sm:$0xff] %v3759
        %3762 = vst [vmem:[%s514 + $0x8] sm:$0xff] %v3760
        %s3763 = sand.u32 %s379, 1
        %s3764 = scalar_lea.sflag [#allocation3], %s3763
        %s3765 = sand.u32 %s379, 1
        %s3766 = smul.addr %s3765, 16
        %s3767 = scalar_lea.vmem [#allocation2], %s3766
        // Predicated region
        $region85: #{transformer_block.1} parent=83 // pred_check
          %p3768 = pneg %p389
        $region86: #{transformer_block.1} parent=83 // pred_check_branch
          %3770 = sbr.rel (%p3768) target = $region88
        $region87: #{transformer_block.1} parent=83 // pred_region
          %s3772 = ssub.s32 256, 256
          %3773 = vsyncadd %s3764, %s3772
          %s3774 = smul.addr %s30, 2
          %s3775 = smul.addr %s3774, 128
          %s3776 = scalar_lea.hbm %s16, %s3775
          %s3778 = sshll.u32 %s3767, 4
          %s3779 = int_to_ptr.vmem [resolvable:$true] %s3778
          %3781 = dma.vmem_to_hbm [thread:$0]  %s3779, 256, %s3776, %s3764
        $region88: #{transformer_block.1} parent=83 // pred_fallthru
          _
      $region84: #{transformer_block.1} parent=5 // pred_fallthru
        _
      %p3782 = scmp.le.s32.totalorder 2, %s25
      // Predicated region
      $region89: #{transformer_block.1} parent=5 // pred_check
        %p3783 = pneg %p3782
      $region90: #{transformer_block.1} parent=5 // pred_check_branch
        %3785 = sbr.rel (%p3783) target = $region92
      $region91: #{transformer_block.1} parent=5 // pred_region
        %s3786 = ssub.s32 %s25, 2
        // Predicated region
        $region93: #{transformer_block.1} parent=91 // pred_check
          %p3787 = pneg %p395
        $region94: #{transformer_block.1} parent=91 // pred_check_branch
          %3789 = sbr.rel (%p3787) target = $region96
        $region95: #{transformer_block.1} parent=91 // pred_region
          %s3790 = sand.u32 %s380, 1
          %s3791 = scalar_lea.sflag [#allocation3], %s3790
          %s3792 = sand.u32 %s380, 1
          %s3793 = smul.addr %s3792, 16
          %s3794 = scalar_lea.vmem [#allocation2], %s3793
          %3795 = dma.done %s3791, 256
        $region96: #{transformer_block.1} parent=91 // pred_fallthru
          _
      $region92: #{transformer_block.1} parent=5 // pred_fallthru
        _
    $region6: #{transformer_block.1} parent=1 // loop_footer
      %s29 = sadd.s32 1, %s25
    $region7: #{transformer_block.1} parent=1 // loop_footer_branch
      %24 = sbr.rel target = $region3
    $region8: #{transformer_block.1} parent=1 // loop_exit
      _
    %3796 = vsyncpa [#allocation3], 1
    %s3797 = scalar_lea.sflag [#allocation3], 1
    %3798 = vsyncpa %s3797, 1

</llo_original>
